<compile_context>
chip_gen: v6e
topology: v6e:2x2x1
jax: 0.10.0
libtpu: 0.0.40
codegen_flags: <defaults>
</compile_context>

<pallas_src>
import functools
import numpy as np

import jax
import jax.numpy as jnp
from jax.experimental import pallas as pl
from jax.experimental.pallas import tpu as pltpu


LANE = 128


# ----------------------------------------------------------------------------
# small helpers
# ----------------------------------------------------------------------------
def _round_up(n, m=LANE):
    return ((n + m - 1) // m) * m


def _mm(a, w):
    # a: [M, K] (any float), w: [N, K] (bf16) -> [M, N] f32  (a @ w.T on MXU)
    return jax.lax.dot_general(a.astype(w.dtype), w, (((1,), (1,)), ((), ())),
                               preferred_element_type=jnp.float32)


_SQRT_2_OVER_PI = 0.7978845608028654


def _gelu(x):
    # tanh-approximate GELU (EUP slot).  TODO(synk): swap to exact erf GELU if
    # strict parity with F.gelu(default) is required (delta ~1e-3).
    return 0.5 * x * (1.0 + jnp.tanh(_SQRT_2_OVER_PI * (x + 0.044715 * x * x * x)))


def _layer_norm(x, g, b, eps=1e-5):
    # one-pass statistics: Var = E[x^2] - E[x]^2 (one lane-reduce fewer per LN)
    m = jnp.mean(x, axis=-1, keepdims=True)
    m2 = jnp.mean(x * x, axis=-1, keepdims=True)
    v = jnp.maximum(m2 - m * m, 0.0)
    return (x - m) * jax.lax.rsqrt(v + eps) * g + b


def _sigmoid(x):
    # numerically stable logistic, exact division (used for final head outputs)
    z = jnp.exp(-jnp.abs(x))
    return jnp.where(x >= 0.0, 1.0 / (1.0 + z), z / (1.0 + z))


def _softplus(x):
    # stable softplus, including PyTorch's threshold=20 exact-linear branch
    sp = jnp.maximum(x, 0.0) + jnp.log(1.0 + jnp.exp(-jnp.abs(x)))
    return jnp.where(x > 20.0, x, sp)


def _softmax_exact(x):
    x = x - jnp.max(x, axis=-1, keepdims=True)
    e = jnp.exp(x)
    return e / jnp.sum(e, axis=-1, keepdims=True)


def _softmax_approx(x):
    # used only inside the encoder attention; reciprocal goes to the EUP slot
    x = x - jnp.max(x, axis=-1, keepdims=True)
    e = jnp.exp(x)
    return e * pl.reciprocal(jnp.sum(e, axis=-1, keepdims=True), approx=True)


def _pad_lanes(v):
    # pad the last dim up to a multiple of 128 so the packed output store is
    # lane-dense (no masked vst epilogues)
    w = v.shape[-1]
    tgt = _round_up(w)
    if tgt == w:
        return v
    return jnp.concatenate([v, jnp.zeros((v.shape[0], tgt - w), v.dtype)], axis=-1)


# ----------------------------------------------------------------------------
# the single fused kernel: embed -> num_layers encoder layers -> pool -> heads
# grid = (num_layers,), activation resident in VMEM scratch across the grid
# ----------------------------------------------------------------------------
def fused_forward_kernel(*refs, num_heads, batch, seq):
    (x_ref, pos_ref, emb_w, emb_b, hmask_ref) = refs[0:5]
    (wqkv, bqkv, wo_w, wo_b, ln1_w, ln1_b,
     w1, b1, w2, b2, ln2_w, ln2_b) = refs[5:17]
    (heads_w1, heads_b1, aln_w, aln_b, aw2, ab2, aw3, ab3,
     hln_w, hln_b, hw2, hb2, fw2, fb2, fw3, fb3, ow2, ob2) = refs[17:35]
    out_ref = refs[35]
    h_scr = refs[36]

    layer = pl.program_id(0)
    n_layers = pl.num_programs(0)

    M, H = h_scr.shape                       # M = batch * seq
    Hp = hmask_ref.shape[-1]                 # per-segment padded width (>= H)
    nh = num_heads
    dh = H // nh
    G = nh * batch                           # folded (head, batch) batch dim
    scale = 1.0 / float(np.sqrt(dh))
    bf16 = jnp.bfloat16

    # ---- stage 0: input embedding + positional encoding (runs once) --------
    @pl.when(layer == 0)
    def _embed():
        # x / pos are pre-flattened to [M, *] in the wrapper: no reshapes here
        h_scr[...] = _mm(x_ref[...], emb_w[...]) + emb_b[...] + pos_ref[...]

    # ---- one post-norm TransformerEncoderLayer per grid step ---------------
    x = h_scr[...]                                                 # [M, H] f32

    # fused QKV projection; each segment zero-padded to Hp output rows so the
    # slices below are lane-tile aligned.  Cast to bf16 once.
    qkv = _mm(x, wqkv[0]) + bqkv[0]                                # [M, 3*Hp]
    q = qkv[:, 0:Hp].astype(bf16)
    k = qkv[:, Hp:2 * Hp].astype(bf16)
    v = qkv[:, 2 * Hp:3 * Hp].astype(bf16)

    # per-head column mask [nh, 1, Hp]; masking Q restricts the score
    # contraction to head h's columns, masking V restricts the output columns,
    # so no per-head slicing / stacking is ever needed.
    mask = hmask_ref[...].astype(bf16)
    qg = (jnp.broadcast_to(q[None], (nh, M, Hp)) * mask).reshape(G, seq, Hp)
    kg = jnp.broadcast_to(k[None], (nh, M, Hp)).reshape(G, seq, Hp)
    vg = (jnp.broadcast_to(v[None], (nh, M, Hp)) * mask).reshape(G, seq, Hp)

    s = jnp.einsum("gqd,gkd->gqk", qg, kg,
                   preferred_element_type=jnp.float32) * scale      # [G, S, S]
    p = _softmax_approx(s).astype(bf16)
    og = jnp.einsum("gqk,gkd->gqd", p, vg,
                    preferred_element_type=jnp.float32)             # [G, S, Hp]

    # heads occupy disjoint (masked) columns -> summing over the head axis
    # reassembles the [M, Hp] multi-head output.
    og = og.reshape(nh, M, Hp)
    attn = og[0]
    for h in range(1, nh):
        attn = attn + og[h]
    attn = _mm(attn, wo_w[0]) + wo_b[0]                              # [M, H]

    # post-norm (PyTorch default norm_first=False); dropout = identity
    x1 = _layer_norm(x + attn, ln1_w[0], ln1_b[0])
    hmid = _gelu(_mm(x1, w1[0]) + b1[0])
    ff = _mm(hmid, w2[0]) + b2[0]
    h_scr[...] = _layer_norm(x1 + ff, ln2_w[0], ln2_b[0])

    # ---- final step: mean pool + all four strategy heads, packed output ----
    @pl.when(layer == n_layers - 1)
    def _heads():
        hh = h_scr[...]
        agg = jnp.sum(hh.reshape(batch, seq, H), axis=1) * (1.0 / seq)  # [B, H]

        i1 = aln_w.shape[-1]
        i2 = hln_w.shape[-1]
        obj_mid_p = ow2.shape[-1]

        # all four heads' first linear + GELU fused into one wide matmul;
        # segment widths (i1, i2, i1, obj_mid_p) start on 128-lane boundaries
        # for the default config (obj segment zero-padded in init_params).
        z = _gelu(_mm(agg, heads_w1[...]) + heads_b1[...])
        za = z[:, 0:i1]
        zh = z[:, i1:i1 + i2]
        zf = z[:, i1 + i2:2 * i1 + i2]
        zo = z[:, 2 * i1 + i2:2 * i1 + i2 + obj_mid_p]

        # architecture_generator: Lin+GELU -> LN -> (Dropout) -> Lin+GELU -> Lin -> Sigmoid
        a = _layer_norm(za, aln_w[...], aln_b[...])
        a = _gelu(_mm(a, aw2[...]) + ab2[...])
        arch = _sigmoid(_mm(a, aw3[...]) + ab3[...])

        # hyperparameter_generator: Lin+GELU -> LN -> Lin -> Softplus
        hgen = _layer_norm(zh, hln_w[...], hln_b[...])
        hyp = _softplus(_mm(hgen, hw2[...]) + hb2[...])

        # feature_selector: Lin+GELU -> Lin+GELU -> Lin -> Sigmoid
        f = _gelu(_mm(zf, fw2[...]) + fb2[...])
        feat = _sigmoid(_mm(f, fw3[...]) + fb3[...])

        # objective_weight_generator: Lin+GELU -> Lin -> Softmax (exact)
        obj = _softmax_exact(_mm(zo, ow2[...]) + ob2[...])

        # single lane-dense packed store (each segment padded to 128 lanes)
        out_ref[...] = jnp.concatenate(
            [_pad_lanes(arch), _pad_lanes(hyp), _pad_lanes(feat),
             _pad_lanes(obj), _pad_lanes(agg)], axis=-1)


# ----------------------------------------------------------------------------
# BlockSpec helpers
# ----------------------------------------------------------------------------
def _const_index_map(ndim):
    def index_map(l):
        return (0,) * ndim
    return index_map


def _layer_index_map(ndim):
    def index_map(l):
        return (l,) + (0,) * (ndim - 1)
    return index_map


_LAYER_KEYS = ("wqkv", "bqkv", "wo", "bo", "ln1_w", "ln1_b",
               "w1", "b1", "w2", "b2", "ln2_w", "ln2_b")
_HEAD_KEYS = ("heads_w1", "heads_b1", "aln_w", "aln_b", "aw2", "ab2", "aw3", "ab3",
              "hln_w", "hln_b", "hw2", "hb2", "fw2", "fb2", "fw3", "fb3",
              "ow2", "ob2")


# ----------------------------------------------------------------------------
# deterministic parameter initialization (shapes match the PyTorch __init__);
# matmul weights stored bf16 (halves weight-stream bytes; int8/fp8 are the next
# lever for large H), biases / LN params / pos encoding f32.
# ----------------------------------------------------------------------------
def _pad_to(a, axis, size):
    if a.shape[axis] == size:
        return a
    pad_shape = list(a.shape)
    pad_shape[axis] = size - a.shape[axis]
    return jnp.concatenate([a, jnp.zeros(pad_shape, a.dtype)], axis=axis)


def init_params(key, input_dim, hidden_dim, num_layers, num_heads, max_seq):
    assert hidden_dim % num_heads == 0
    H = hidden_dim
    Hp = _round_up(H)
    i1 = max(256, H // 2)
    i2 = max(128, H // 4)
    arch_out = max(64, H // 6)
    hyp_out = max(32, H // 12)
    feat_out = max(50, H // 8)
    obj_out = max(8, min(16, H // 48))
    obj_mid = max(64, H // 6)
    obj_mid_p = _round_up(obj_mid)

    keys = iter(jax.random.split(key, 64 + 8 * num_layers))
    nk = lambda: next(keys)

    def linear(in_dim, out_dim):
        kw, kb = jax.random.split(nk())
        lim = 1.0 / np.sqrt(in_dim)
        w = jax.random.uniform(kw, (out_dim, in_dim), jnp.float32, -lim, lim)
        b = jax.random.uniform(kb, (1, out_dim), jnp.float32, -lim, lim)
        return w.astype(jnp.bfloat16), b

    p = {"num_heads": num_heads, "input_dim": input_dim,
         "hidden_dim": hidden_dim, "num_layers": num_layers, "max_seq": max_seq,
         "arch_out": arch_out, "hyp_out": hyp_out,
         "feat_out": feat_out, "obj_out": obj_out}

    p["emb_w"], p["emb_b"] = linear(input_dim, H)
    p["pos"] = jax.random.normal(nk(), (max_seq, H), jnp.float32)

    # constant per-head column mask [nh, 1, Hp]
    dh = H // num_heads
    hm = np.zeros((num_heads, 1, Hp), np.float32)
    for h in range(num_heads):
        hm[h, 0, h * dh:(h + 1) * dh] = 1.0
    p["hmask"] = jnp.asarray(hm)

    stacks = {k: [] for k in _LAYER_KEYS}
    for _ in range(num_layers):
        wq, bq = linear(H, H)
        wk, bk = linear(H, H)
        wv, bv = linear(H, H)
        wo, bo = linear(H, H)
        w1, b1 = linear(H, H * 4)
        w2, b2 = linear(H * 4, H)
        # each QKV segment padded to Hp output rows -> tile-aligned slices
        stacks["wqkv"].append(jnp.concatenate(
            [_pad_to(wq, 0, Hp), _pad_to(wk, 0, Hp), _pad_to(wv, 0, Hp)], axis=0))
        stacks["bqkv"].append(jnp.concatenate(
            [_pad_to(bq, 1, Hp), _pad_to(bk, 1, Hp), _pad_to(bv, 1, Hp)], axis=1))
        stacks["wo"].append(_pad_to(wo, 1, Hp))   # accepts the Hp-wide attn output
        stacks["bo"].append(bo)
        stacks["ln1_w"].append(jnp.ones((1, H), jnp.float32))
        stacks["ln1_b"].append(jnp.zeros((1, H), jnp.float32))
        stacks["w1"].append(w1)
        stacks["b1"].append(b1)
        stacks["w2"].append(w2)
        stacks["b2"].append(b2)
        stacks["ln2_w"].append(jnp.ones((1, H), jnp.float32))
        stacks["ln2_b"].append(jnp.zeros((1, H), jnp.float32))
    for kname, vals in stacks.items():
        p[kname] = jnp.stack(vals, axis=0)               # leading layer axis

    # four heads' first linears fused: [arch(i1) | hyp(i2) | feat(i1) | obj(pad 128)]
    aw1, ab1 = linear(H, i1)
    hw1, hb1 = linear(H, i2)
    fw1, fb1 = linear(H, i1)
    ow1, ob1 = linear(H, obj_mid)
    p["heads_w1"] = jnp.concatenate(
        [aw1, hw1, fw1, _pad_to(ow1, 0, obj_mid_p)], axis=0)
    p["heads_b1"] = jnp.concatenate(
        [ab1, hb1, fb1, _pad_to(ob1, 1, obj_mid_p)], axis=1)

    p["aln_w"] = jnp.ones((1, i1), jnp.float32)
    p["aln_b"] = jnp.zeros((1, i1), jnp.float32)
    p["aw2"], p["ab2"] = linear(i1, i2)
    p["aw3"], p["ab3"] = linear(i2, arch_out)

    p["hln_w"] = jnp.ones((1, i2), jnp.float32)
    p["hln_b"] = jnp.zeros((1, i2), jnp.float32)
    p["hw2"], p["hb2"] = linear(i2, hyp_out)

    p["fw2"], p["fb2"] = linear(i1, i2)
    p["fw3"], p["fb3"] = linear(i2, feat_out)

    ow2, ob2 = linear(obj_mid, obj_out)
    p["ow2"] = _pad_to(ow2, 1, obj_mid_p)     # extra zero input-cols: exact
    p["ob2"] = ob2
    return p


# ----------------------------------------------------------------------------
# full forward: input massaging in plain JAX, everything else in ONE kernel
# ----------------------------------------------------------------------------
def strategy_generator_forward(params, market_context, existing_strategies=None):
    x = jnp.asarray(market_context, jnp.float32)
    batch = x.shape[0]
    if x.ndim == 2:
        x = x[:, None, :]
    elif x.ndim > 3:
        x = x.reshape(batch, -1, x.shape[-1])

    if existing_strategies is not None:
        es = jnp.asarray(existing_strategies, jnp.float32)
        if es.ndim == 2:
            es = es[:, None, :]
        if es.ndim != 3:
            raise ValueError("existing_strategies must be 2D or 3D")
        if x.shape[-1] != es.shape[-1]:
            # TODO(synk): dynamic runtime recreation of context_projector (nn.Linear
            # created inside forward) has no clean static-kernel equivalent.
            raise NotImplementedError("context dim must match strategy dim")
        x = jnp.concatenate([x, es], axis=1)

    if x.shape[-1] != params["input_dim"]:
        # TODO(synk): dynamic runtime recreation of input_projector not implemented.
        raise NotImplementedError("input feature dim must match input_dim")

    B, S, Din = x.shape
    M = B * S
    H = params["hidden_dim"]
    L = params["num_layers"]
    max_seq = params["max_seq"]

    pos = params["pos"]
    if S <= max_seq:
        pos_slice = pos[:S]
    else:
        # PyTorch adds PE only to the first max_seq tokens -> zero-pad beyond it
        pos_slice = jnp.concatenate(
            [pos, jnp.zeros((S - max_seq, H), jnp.float32)], axis=0)
    # pre-tile the positional encoding and pre-flatten the input in the wrapper
    # so grid step 0 needs no in-kernel reshapes / broadcasts.
    pos_flat = jnp.broadcast_to(pos_slice[None], (B, S, H)).reshape(M, H)
    x_flat = x.reshape(M, Din)

    const_inputs = [x_flat, pos_flat, params["emb_w"], params["emb_b"],
                    params["hmask"]]
    layer_inputs = [params[k] for k in _LAYER_KEYS]
    head_inputs = [params[k] for k in _HEAD_KEYS]

    # Grid-invariant inputs (constant index maps) are fetched once; only the
    # per-layer stacked weights advance with the grid (and get prefetched).
    in_specs = (
        [pl.BlockSpec(a.shape, _const_index_map(a.ndim)) for a in const_inputs]
        + [pl.BlockSpec((1,) + a.shape[1:], _layer_index_map(a.ndim))
           for a in layer_inputs]
        + [pl.BlockSpec(a.shape, _const_index_map(a.ndim)) for a in head_inputs]
    )

    head_dims = [params["arch_out"], params["hyp_out"], params["feat_out"],
                 params["obj_out"], H]
    seg_widths = [_round_up(d) for d in head_dims]
    offsets = [0]
    for w_ in seg_widths[:-1]:
        offsets.append(offsets[-1] + w_)
    out_w = int(sum(seg_widths))

    fused = pl.pallas_call(
        functools.partial(fused_forward_kernel,
                          num_heads=params["num_heads"], batch=B, seq=S),
        out_shape=jax.ShapeDtypeStruct((B, out_w), jnp.float32),
        grid=(L,),
        in_specs=in_specs,
        out_specs=pl.BlockSpec((B, out_w), _const_index_map(2)),
        scratch_shapes=[pltpu.VMEM((M, H), jnp.float32)],
        compiler_params=pltpu.CompilerParams(
            # layer axis carries the activation in VMEM scratch -> sequential.
            # vmem_limit left at the default; raise it for large hidden_dim on
            # v5e/v6e, and chunk w1/w2 (or un-pin head weights) on v7x (64 MiB).
            dimension_semantics=("arbitrary",),
        ),
    )
    packed = fused(*(const_inputs + layer_inputs + head_inputs))

    arch = packed[:, offsets[0]:offsets[0] + head_dims[0]]
    hyp = packed[:, offsets[1]:offsets[1] + head_dims[1]]
    feat = packed[:, offsets[2]:offsets[2] + head_dims[2]]
    obj = packed[:, offsets[3]:offsets[3] + head_dims[3]]
    agg = packed[:, offsets[4]:offsets[4] + head_dims[4]]

    return {"architecture_params": arch,
            "hyperparameters": hyp,
            "feature_weights": feat,
            "objective_weights": obj,
            "encoded_context": agg}


# ----------------------------------------------------------------------------
if __name__ == "__main__":
    INPUT_DIM = 64
    HIDDEN_DIM = 64
    NUM_LAYERS = 2
    NUM_HEADS = 4
    MAX_SEQ = 16
    B, S = 2, 8

    key = jax.random.PRNGKey(0)
    pkey, xkey = jax.random.split(key)
    params = init_params(pkey, INPUT_DIM, HIDDEN_DIM, NUM_LAYERS, NUM_HEADS, MAX_SEQ)
    market_context = jax.random.normal(xkey, (B, S, INPUT_DIM), jnp.float32)

    out = strategy_generator_forward(params, market_context)
    out = jax.tree_util.tree_map(jax.block_until_ready, out)

    assert out["architecture_params"].shape == (B, max(64, HIDDEN_DIM // 6))
    assert out["hyperparameters"].shape == (B, max(32, HIDDEN_DIM // 12))
    assert out["feature_weights"].shape == (B, max(50, HIDDEN_DIM // 8))
    assert out["objective_weights"].shape == (B, max(8, min(16, HIDDEN_DIM // 48)))
    assert out["encoded_context"].shape == (B, HIDDEN_DIM)

    for name in ("architecture_params", "hyperparameters", "feature_weights",
                 "objective_weights", "encoded_context"):
        assert bool(jnp.all(jnp.isfinite(out[name]))), name
    assert bool(jnp.all((out["architecture_params"] >= 0.0)
                        & (out["architecture_params"] <= 1.0)))
    assert bool(jnp.all((out["feature_weights"] >= 0.0)
                        & (out["feature_weights"] <= 1.0)))
    assert bool(jnp.all(out["hyperparameters"] >= 0.0))
    row_sums = jnp.sum(out["objective_weights"], axis=-1)
    assert bool(jnp.all(jnp.abs(row_sums - 1.0) < 1e-3))

    print("KERNEL_OK")
</pallas_src>

<mosaic_0001>
module attributes {stable_mosaic.version = 11 : i64} {
  func.func @fused_forward_kernel(%arg0: i32, %arg1: memref<16x64xf32, #tpu.memory_space<vmem>>, %arg2: memref<16x64xf32, #tpu.memory_space<vmem>>, %arg3: memref<64x64xbf16, #tpu.memory_space<vmem>>, %arg4: memref<1x64xf32, #tpu.memory_space<vmem>>, %arg5: memref<4x1x128xf32, #tpu.memory_space<vmem>>, %arg6: memref<1x384x64xbf16, #tpu.memory_space<vmem>>, %arg7: memref<1x1x384xf32, #tpu.memory_space<vmem>>, %arg8: memref<1x64x128xbf16, #tpu.memory_space<vmem>>, %arg9: memref<1x1x64xf32, #tpu.memory_space<vmem>>, %arg10: memref<1x1x64xf32, #tpu.memory_space<vmem>>, %arg11: memref<1x1x64xf32, #tpu.memory_space<vmem>>, %arg12: memref<1x256x64xbf16, #tpu.memory_space<vmem>>, %arg13: memref<1x1x256xf32, #tpu.memory_space<vmem>>, %arg14: memref<1x64x256xbf16, #tpu.memory_space<vmem>>, %arg15: memref<1x1x64xf32, #tpu.memory_space<vmem>>, %arg16: memref<1x1x64xf32, #tpu.memory_space<vmem>>, %arg17: memref<1x1x64xf32, #tpu.memory_space<vmem>>, %arg18: memref<768x64xbf16, #tpu.memory_space<vmem>>, %arg19: memref<1x768xf32, #tpu.memory_space<vmem>>, %arg20: memref<1x256xf32, #tpu.memory_space<vmem>>, %arg21: memref<1x256xf32, #tpu.memory_space<vmem>>, %arg22: memref<128x256xbf16, #tpu.memory_space<vmem>>, %arg23: memref<1x128xf32, #tpu.memory_space<vmem>>, %arg24: memref<64x128xbf16, #tpu.memory_space<vmem>>, %arg25: memref<1x64xf32, #tpu.memory_space<vmem>>, %arg26: memref<1x128xf32, #tpu.memory_space<vmem>>, %arg27: memref<1x128xf32, #tpu.memory_space<vmem>>, %arg28: memref<32x128xbf16, #tpu.memory_space<vmem>>, %arg29: memref<1x32xf32, #tpu.memory_space<vmem>>, %arg30: memref<128x256xbf16, #tpu.memory_space<vmem>>, %arg31: memref<1x128xf32, #tpu.memory_space<vmem>>, %arg32: memref<50x128xbf16, #tpu.memory_space<vmem>>, %arg33: memref<1x50xf32, #tpu.memory_space<vmem>>, %arg34: memref<8x128xbf16, #tpu.memory_space<vmem>>, %arg35: memref<1x8xf32, #tpu.memory_space<vmem>>, %arg36: memref<2x640xf32, #tpu.memory_space<vmem>>, %arg37: memref<16x64xf32, #tpu.memory_space<vmem>>) attributes {dimension_semantics = [#tpu.dimension_semantics<arbitrary>], iteration_bounds = array<i64: 2>, scalar_prefetch = 0 : i64, scratch_operands = 1 : i64, tpu.core_type = #tpu.core_type<tc>, window_params = [{pipeline_mode = #tpu.pipeline_mode<synchronous>, transform_indices = @transform_0, window_bounds = array<i64: 16, 64>}, {pipeline_mode = #tpu.pipeline_mode<synchronous>, transform_indices = @transform_1, window_bounds = array<i64: 16, 64>}, {pipeline_mode = #tpu.pipeline_mode<synchronous>, transform_indices = @transform_2, window_bounds = array<i64: 64, 64>}, {pipeline_mode = #tpu.pipeline_mode<synchronous>, transform_indices = @transform_3, window_bounds = array<i64: 1, 64>}, {pipeline_mode = #tpu.pipeline_mode<synchronous>, transform_indices = @transform_4, window_bounds = array<i64: 4, 1, 128>}, {transform_indices = @transform_5, window_bounds = array<i64: 1, 384, 64>}, {transform_indices = @transform_6, window_bounds = array<i64: 1, 1, 384>}, {transform_indices = @transform_7, window_bounds = array<i64: 1, 64, 128>}, {transform_indices = @transform_8, window_bounds = array<i64: 1, 1, 64>}, {transform_indices = @transform_9, window_bounds = array<i64: 1, 1, 64>}, {transform_indices = @transform_10, window_bounds = array<i64: 1, 1, 64>}, {transform_indices = @transform_11, window_bounds = array<i64: 1, 256, 64>}, {transform_indices = @transform_12, window_bounds = array<i64: 1, 1, 256>}, {transform_indices = @transform_13, window_bounds = array<i64: 1, 64, 256>}, {transform_indices = @transform_14, window_bounds = array<i64: 1, 1, 64>}, {transform_indices = @transform_15, window_bounds = array<i64: 1, 1, 64>}, {transform_indices = @transform_16, window_bounds = array<i64: 1, 1, 64>}, {pipeline_mode = #tpu.pipeline_mode<synchronous>, transform_indices = @transform_17, window_bounds = array<i64: 768, 64>}, {pipeline_mode = #tpu.pipeline_mode<synchronous>, transform_indices = @transform_18, window_bounds = array<i64: 1, 768>}, {pipeline_mode = #tpu.pipeline_mode<synchronous>, transform_indices = @transform_19, window_bounds = array<i64: 1, 256>}, {pipeline_mode = #tpu.pipeline_mode<synchronous>, transform_indices = @transform_20, window_bounds = array<i64: 1, 256>}, {pipeline_mode = #tpu.pipeline_mode<synchronous>, transform_indices = @transform_21, window_bounds = array<i64: 128, 256>}, {pipeline_mode = #tpu.pipeline_mode<synchronous>, transform_indices = @transform_22, window_bounds = array<i64: 1, 128>}, {pipeline_mode = #tpu.pipeline_mode<synchronous>, transform_indices = @transform_23, window_bounds = array<i64: 64, 128>}, {pipeline_mode = #tpu.pipeline_mode<synchronous>, transform_indices = @transform_24, window_bounds = array<i64: 1, 64>}, {pipeline_mode = #tpu.pipeline_mode<synchronous>, transform_indices = @transform_25, window_bounds = array<i64: 1, 128>}, {pipeline_mode = #tpu.pipeline_mode<synchronous>, transform_indices = @transform_26, window_bounds = array<i64: 1, 128>}, {pipeline_mode = #tpu.pipeline_mode<synchronous>, transform_indices = @transform_27, window_bounds = array<i64: 32, 128>}, {pipeline_mode = #tpu.pipeline_mode<synchronous>, transform_indices = @transform_28, window_bounds = array<i64: 1, 32>}, {pipeline_mode = #tpu.pipeline_mode<synchronous>, transform_indices = @transform_29, window_bounds = array<i64: 128, 256>}, {pipeline_mode = #tpu.pipeline_mode<synchronous>, transform_indices = @transform_30, window_bounds = array<i64: 1, 128>}, {pipeline_mode = #tpu.pipeline_mode<synchronous>, transform_indices = @transform_31, window_bounds = array<i64: 50, 128>}, {pipeline_mode = #tpu.pipeline_mode<synchronous>, transform_indices = @transform_32, window_bounds = array<i64: 1, 50>}, {pipeline_mode = #tpu.pipeline_mode<synchronous>, transform_indices = @transform_33, window_bounds = array<i64: 8, 128>}, {pipeline_mode = #tpu.pipeline_mode<synchronous>, transform_indices = @transform_34, window_bounds = array<i64: 1, 8>}, {pipeline_mode = #tpu.pipeline_mode<synchronous>, transform_indices = @transform_35, window_bounds = array<i64: 2, 640>}]} {
    %c0_i32 = arith.constant 0 : i32
    %0 = arith.cmpi eq, %arg0, %c0_i32 : i32
    %1 = arith.extui %0 : i1 to i32
    %c0_i32_0 = arith.constant 0 : i32
    %2 = arith.cmpi ne, %1, %c0_i32_0 : i32
    scf.if %2 {
      %c0_68 = arith.constant 0 : index
      %c0_69 = arith.constant 0 : index
      %162 = vector.load %arg1[%c0_68, %c0_69] : memref<16x64xf32, #tpu.memory_space<vmem>>, vector<16x64xf32>
      %c0_70 = arith.constant 0 : index
      %c0_71 = arith.constant 0 : index
      %163 = vector.load %arg3[%c0_70, %c0_71] : memref<64x64xbf16, #tpu.memory_space<vmem>>, vector<64x64xbf16>
      %164 = arith.truncf %162 : vector<16x64xf32> to vector<16x64xbf16>
      %cst_72 = arith.constant dense<0.000000e+00> : vector<16x64xf32>
      %165 = tpu.matmul %164, %163, %cst_72 {dimension_numbers = #tpu.dot_dimension_numbers<[1], [1], [0], [0], [0, 0, 1, 0], [], []>} : vector<16x64xbf16>, vector<64x64xbf16>, vector<16x64xf32> -> vector<16x64xf32>
      %c0_73 = arith.constant 0 : index
      %c0_74 = arith.constant 0 : index
      %166 = vector.load %arg4[%c0_73, %c0_74] : memref<1x64xf32, #tpu.memory_space<vmem>>, vector<1x64xf32>
      %167 = vector.broadcast %166 : vector<1x64xf32> to vector<16x64xf32>
      %168 = arith.addf %165, %167 : vector<16x64xf32>
      %c0_75 = arith.constant 0 : index
      %c0_76 = arith.constant 0 : index
      %169 = vector.load %arg2[%c0_75, %c0_76] : memref<16x64xf32, #tpu.memory_space<vmem>>, vector<16x64xf32>
      %170 = arith.addf %168, %169 : vector<16x64xf32>
      %c0_77 = arith.constant 0 : index
      %c0_78 = arith.constant 0 : index
      %171 = vector.load %arg37[%c0_77, %c0_78] : memref<16x64xf32, #tpu.memory_space<vmem>>, vector<16x64xf32>
      tpu.vector_store %arg37[%c0_77, %c0_78], %170 {strides = array<i32>} : memref<16x64xf32, #tpu.memory_space<vmem>>, vector<16x64xf32>,
    } else {
    }
    %c0 = arith.constant 0 : index
    %c0_1 = arith.constant 0 : index
    %3 = vector.load %arg37[%c0, %c0_1] : memref<16x64xf32, #tpu.memory_space<vmem>>, vector<16x64xf32>
    %c0_2 = arith.constant 0 : index
    %c0_3 = arith.constant 0 : index
    %c0_4 = arith.constant 0 : index
    %4 = vector.load %arg6[%c0_2, %c0_3, %c0_4] : memref<1x384x64xbf16, #tpu.memory_space<vmem>>, vector<1x384x64xbf16>
    %5 = vector.shape_cast %4 : vector<1x384x64xbf16> to vector<384x64xbf16>
    %6 = arith.truncf %3 : vector<16x64xf32> to vector<16x64xbf16>
    %cst = arith.constant dense<0.000000e+00> : vector<16x384xf32>
    %7 = tpu.matmul %6, %5, %cst {dimension_numbers = #tpu.dot_dimension_numbers<[1], [1], [0], [0], [0, 0, 1, 0], [], []>} : vector<16x64xbf16>, vector<384x64xbf16>, vector<16x384xf32> -> vector<16x384xf32>
    %c0_5 = arith.constant 0 : index
    %c0_6 = arith.constant 0 : index
    %c0_7 = arith.constant 0 : index
    %8 = vector.load %arg7[%c0_5, %c0_6, %c0_7] : memref<1x1x384xf32, #tpu.memory_space<vmem>>, vector<1x1x384xf32>
    %9 = vector.shape_cast %8 : vector<1x1x384xf32> to vector<1x384xf32>
    %10 = vector.broadcast %9 : vector<1x384xf32> to vector<16x384xf32>
    %11 = arith.addf %7, %10 : vector<16x384xf32>
    %12 = vector.extract_strided_slice %11 {offsets = [0, 0], sizes = [16, 128], strides = [1, 1]} : vector<16x384xf32> to vector<16x128xf32>
    %13 = arith.truncf %12 : vector<16x128xf32> to vector<16x128xbf16>
    %14 = vector.extract_strided_slice %11 {offsets = [0, 128], sizes = [16, 128], strides = [1, 1]} : vector<16x384xf32> to vector<16x128xf32>
    %15 = arith.truncf %14 : vector<16x128xf32> to vector<16x128xbf16>
    %16 = vector.extract_strided_slice %11 {offsets = [0, 256], sizes = [16, 128], strides = [1, 1]} : vector<16x384xf32> to vector<16x128xf32>
    %17 = arith.truncf %16 : vector<16x128xf32> to vector<16x128xbf16>
    %c0_8 = arith.constant 0 : index
    %c0_9 = arith.constant 0 : index
    %c0_10 = arith.constant 0 : index
    %18 = vector.load %arg5[%c0_8, %c0_9, %c0_10] : memref<4x1x128xf32, #tpu.memory_space<vmem>>, vector<4x1x128xf32>
    %19 = arith.truncf %18 : vector<4x1x128xf32> to vector<4x1x128xbf16>
    %20 = vector.shape_cast %13 : vector<16x128xbf16> to vector<1x16x128xbf16>
    %21 = vector.shape_cast %20 : vector<1x16x128xbf16> to vector<1x16x128xbf16>
    %22 = vector.broadcast %21 : vector<1x16x128xbf16> to vector<4x16x128xbf16>
    %23 = vector.broadcast %19 : vector<4x1x128xbf16> to vector<4x16x128xbf16>
    %24 = arith.mulf %22, %23 : vector<4x16x128xbf16>
    %25 = vector.shape_cast %24 : vector<4x16x128xbf16> to vector<8x8x128xbf16>
    %26 = vector.shape_cast %15 : vector<16x128xbf16> to vector<1x16x128xbf16>
    %27 = vector.shape_cast %26 : vector<1x16x128xbf16> to vector<1x16x128xbf16>
    %28 = vector.broadcast %27 : vector<1x16x128xbf16> to vector<4x16x128xbf16>
    %29 = vector.shape_cast %28 : vector<4x16x128xbf16> to vector<8x8x128xbf16>
    %30 = vector.shape_cast %17 : vector<16x128xbf16> to vector<1x16x128xbf16>
    %31 = vector.shape_cast %30 : vector<1x16x128xbf16> to vector<1x16x128xbf16>
    %32 = vector.broadcast %31 : vector<1x16x128xbf16> to vector<4x16x128xbf16>
    %33 = vector.broadcast %19 : vector<4x1x128xbf16> to vector<4x16x128xbf16>
    %34 = arith.mulf %32, %33 : vector<4x16x128xbf16>
    %35 = vector.shape_cast %34 : vector<4x16x128xbf16> to vector<8x8x128xbf16>
    "tpu.trace_start"() <{level = 10 : i32, message = "gqd,gkd->gqk"}> : () -> ()
    %cst_11 = arith.constant dense<0.000000e+00> : vector<8x8x8xf32>
    %36 = tpu.matmul %25, %29, %cst_11 {dimension_numbers = #tpu.dot_dimension_numbers<[2], [2], [1], [1], [0, 0, 0, 1, 1, 1], [0], [0]>} : vector<8x8x128xbf16>, vector<8x8x128xbf16>, vector<8x8x8xf32> -> vector<8x8x8xf32>
    "tpu.trace_stop"() : () -> ()
    %cst_12 = arith.constant 2.500000e-01 : f32
    %37 = vector.broadcast %cst_12 : f32 to vector<8x8x8xf32>
    %38 = arith.mulf %36, %37 : vector<8x8x8xf32>
    %cst_13 = arith.constant dense<0xFF800000> : vector<8x8xf32>
    %39 = vector.multi_reduction <maximumf>, %38, %cst_13 [2] : vector<8x8x8xf32> to vector<8x8xf32>
    %40 = vector.shape_cast %39 : vector<8x8xf32> to vector<8x8x1xf32>
    %41 = vector.broadcast %40 : vector<8x8x1xf32> to vector<8x8x8xf32>
    %42 = arith.subf %38, %41 : vector<8x8x8xf32>
    %43 = math.exp %42 : vector<8x8x8xf32>
    %cst_14 = arith.constant dense<0.000000e+00> : vector<8x8xf32>
    %44 = vector.multi_reduction <add>, %43, %cst_14 [2] : vector<8x8x8xf32> to vector<8x8xf32>
    %45 = vector.shape_cast %44 : vector<8x8xf32> to vector<8x8x1xf32>
    %46 = tpu.reciprocal %45 {approx = true} : vector<8x8x1xf32> -> vector<8x8x1xf32>
    %47 = vector.broadcast %46 : vector<8x8x1xf32> to vector<8x8x8xf32>
    %48 = arith.mulf %43, %47 : vector<8x8x8xf32>
    %49 = arith.truncf %48 : vector<8x8x8xf32> to vector<8x8x8xbf16>
    "tpu.trace_start"() <{level = 10 : i32, message = "gqk,gkd->gqd"}> : () -> ()
    %cst_15 = arith.constant dense<0.000000e+00> : vector<8x8x128xf32>
    %50 = tpu.matmul %49, %35, %cst_15 {dimension_numbers = #tpu.dot_dimension_numbers<[2], [1], [1], [2], [0, 0, 0, 1, 1, 2], [0], [0]>} : vector<8x8x8xbf16>, vector<8x8x128xbf16>, vector<8x8x128xf32> -> vector<8x8x128xf32>
    "tpu.trace_stop"() : () -> ()
    %51 = vector.shape_cast %50 : vector<8x8x128xf32> to vector<4x16x128xf32>
    %52 = vector.extract_strided_slice %51 {offsets = [0, 0, 0], sizes = [1, 16, 128], strides = [1, 1, 1]} : vector<4x16x128xf32> to vector<1x16x128xf32>
    %53 = vector.shape_cast %52 : vector<1x16x128xf32> to vector<16x128xf32>
    %54 = vector.extract_strided_slice %51 {offsets = [1, 0, 0], sizes = [1, 16, 128], strides = [1, 1, 1]} : vector<4x16x128xf32> to vector<1x16x128xf32>
    %55 = vector.shape_cast %54 : vector<1x16x128xf32> to vector<16x128xf32>
    %56 = arith.addf %53, %55 : vector<16x128xf32>
    %57 = vector.extract_strided_slice %51 {offsets = [2, 0, 0], sizes = [1, 16, 128], strides = [1, 1, 1]} : vector<4x16x128xf32> to vector<1x16x128xf32>
    %58 = vector.shape_cast %57 : vector<1x16x128xf32> to vector<16x128xf32>
    %59 = arith.addf %56, %58 : vector<16x128xf32>
    %60 = vector.extract_strided_slice %51 {offsets = [3, 0, 0], sizes = [1, 16, 128], strides = [1, 1, 1]} : vector<4x16x128xf32> to vector<1x16x128xf32>
    %61 = vector.shape_cast %60 : vector<1x16x128xf32> to vector<16x128xf32>
    %62 = arith.addf %59, %61 : vector<16x128xf32>
    %c0_16 = arith.constant 0 : index
    %c0_17 = arith.constant 0 : index
    %c0_18 = arith.constant 0 : index
    %63 = vector.load %arg8[%c0_16, %c0_17, %c0_18] : memref<1x64x128xbf16, #tpu.memory_space<vmem>>, vector<1x64x128xbf16>
    %64 = vector.shape_cast %63 : vector<1x64x128xbf16> to vector<64x128xbf16>
    %65 = arith.truncf %62 : vector<16x128xf32> to vector<16x128xbf16>
    %cst_19 = arith.constant dense<0.000000e+00> : vector<16x64xf32>
    %66 = tpu.matmul %65, %64, %cst_19 {dimension_numbers = #tpu.dot_dimension_numbers<[1], [1], [0], [0], [0, 0, 1, 0], [], []>} : vector<16x128xbf16>, vector<64x128xbf16>, vector<16x64xf32> -> vector<16x64xf32>
    %c0_20 = arith.constant 0 : index
    %c0_21 = arith.constant 0 : index
    %c0_22 = arith.constant 0 : index
    %67 = vector.load %arg9[%c0_20, %c0_21, %c0_22] : memref<1x1x64xf32, #tpu.memory_space<vmem>>, vector<1x1x64xf32>
    %68 = vector.shape_cast %67 : vector<1x1x64xf32> to vector<1x64xf32>
    %69 = vector.broadcast %68 : vector<1x64xf32> to vector<16x64xf32>
    %70 = arith.addf %66, %69 : vector<16x64xf32>
    %71 = arith.addf %3, %70 : vector<16x64xf32>
    %c0_23 = arith.constant 0 : index
    %c0_24 = arith.constant 0 : index
    %c0_25 = arith.constant 0 : index
    %72 = vector.load %arg10[%c0_23, %c0_24, %c0_25] : memref<1x1x64xf32, #tpu.memory_space<vmem>>, vector<1x1x64xf32>
    %73 = vector.shape_cast %72 : vector<1x1x64xf32> to vector<1x64xf32>
    %c0_26 = arith.constant 0 : index
    %c0_27 = arith.constant 0 : index
    %c0_28 = arith.constant 0 : index
    %74 = vector.load %arg11[%c0_26, %c0_27, %c0_28] : memref<1x1x64xf32, #tpu.memory_space<vmem>>, vector<1x1x64xf32>
    %75 = vector.shape_cast %74 : vector<1x1x64xf32> to vector<1x64xf32>
    %cst_29 = arith.constant dense<0.000000e+00> : vector<16xf32>
    %76 = vector.multi_reduction <add>, %71, %cst_29 [1] : vector<16x64xf32> to vector<16xf32>
    %77 = vector.shape_cast %76 : vector<16xf32> to vector<16x1xf32>
    %cst_30 = arith.constant 6.400000e+01 : f32
    %78 = vector.broadcast %cst_30 : f32 to vector<16x1xf32>
    %79 = arith.divf %77, %78 : vector<16x1xf32>
    %80 = arith.mulf %71, %71 : vector<16x64xf32>
    %cst_31 = arith.constant dense<0.000000e+00> : vector<16xf32>
    %81 = vector.multi_reduction <add>, %80, %cst_31 [1] : vector<16x64xf32> to vector<16xf32>
    %82 = vector.shape_cast %81 : vector<16xf32> to vector<16x1xf32>
    %cst_32 = arith.constant 6.400000e+01 : f32
    %83 = vector.broadcast %cst_32 : f32 to vector<16x1xf32>
    %84 = arith.divf %82, %83 : vector<16x1xf32>
    %85 = arith.mulf %79, %79 : vector<16x1xf32>
    %86 = arith.subf %84, %85 : vector<16x1xf32>
    %cst_33 = arith.constant 0.000000e+00 : f32
    %87 = vector.broadcast %cst_33 : f32 to vector<16x1xf32>
    %88 = arith.maximumf %86, %87 : vector<16x1xf32>
    %89 = vector.broadcast %79 : vector<16x1xf32> to vector<16x64xf32>
    %90 = arith.subf %71, %89 : vector<16x64xf32>
    %cst_34 = arith.constant 9.99999974E-6 : f32
    %91 = vector.broadcast %cst_34 : f32 to vector<16x1xf32>
    %92 = arith.addf %88, %91 : vector<16x1xf32>
    %93 = math.rsqrt %92 : vector<16x1xf32>
    %94 = vector.broadcast %93 : vector<16x1xf32> to vector<16x64xf32>
    %95 = arith.mulf %90, %94 : vector<16x64xf32>
    %96 = vector.broadcast %73 : vector<1x64xf32> to vector<16x64xf32>
    %97 = arith.mulf %95, %96 : vector<16x64xf32>
    %98 = vector.broadcast %75 : vector<1x64xf32> to vector<16x64xf32>
    %99 = arith.addf %97, %98 : vector<16x64xf32>
    %c0_35 = arith.constant 0 : index
    %c0_36 = arith.constant 0 : index
    %c0_37 = arith.constant 0 : index
    %100 = vector.load %arg12[%c0_35, %c0_36, %c0_37] : memref<1x256x64xbf16, #tpu.memory_space<vmem>>, vector<1x256x64xbf16>
    %101 = vector.shape_cast %100 : vector<1x256x64xbf16> to vector<256x64xbf16>
    %102 = arith.truncf %99 : vector<16x64xf32> to vector<16x64xbf16>
    %cst_38 = arith.constant dense<0.000000e+00> : vector<16x256xf32>
    %103 = tpu.matmul %102, %101, %cst_38 {dimension_numbers = #tpu.dot_dimension_numbers<[1], [1], [0], [0], [0, 0, 1, 0], [], []>} : vector<16x64xbf16>, vector<256x64xbf16>, vector<16x256xf32> -> vector<16x256xf32>
    %c0_39 = arith.constant 0 : index
    %c0_40 = arith.constant 0 : index
    %c0_41 = arith.constant 0 : index
    %104 = vector.load %arg13[%c0_39, %c0_40, %c0_41] : memref<1x1x256xf32, #tpu.memory_space<vmem>>, vector<1x1x256xf32>
    %105 = vector.shape_cast %104 : vector<1x1x256xf32> to vector<1x256xf32>
    %106 = vector.broadcast %105 : vector<1x256xf32> to vector<16x256xf32>
    %107 = arith.addf %103, %106 : vector<16x256xf32>
    %cst_42 = arith.constant 5.000000e-01 : f32
    %108 = vector.broadcast %cst_42 : f32 to vector<16x256xf32>
    %109 = arith.mulf %108, %107 : vector<16x256xf32>
    %cst_43 = arith.constant 4.471500e-02 : f32
    %110 = vector.broadcast %cst_43 : f32 to vector<16x256xf32>
    %111 = arith.mulf %110, %107 : vector<16x256xf32>
    %112 = arith.mulf %111, %107 : vector<16x256xf32>
    %113 = arith.mulf %112, %107 : vector<16x256xf32>
    %114 = arith.addf %107, %113 : vector<16x256xf32>
    %cst_44 = arith.constant 0.797884583 : f32
    %115 = vector.broadcast %cst_44 : f32 to vector<16x256xf32>
    %116 = arith.mulf %115, %114 : vector<16x256xf32>
    %117 = math.tanh %116 : vector<16x256xf32>
    %cst_45 = arith.constant 1.000000e+00 : f32
    %118 = vector.broadcast %cst_45 : f32 to vector<16x256xf32>
    %119 = arith.addf %118, %117 : vector<16x256xf32>
    %120 = arith.mulf %109, %119 : vector<16x256xf32>
    %c0_46 = arith.constant 0 : index
    %c0_47 = arith.constant 0 : index
    %c0_48 = arith.constant 0 : index
    %121 = vector.load %arg14[%c0_46, %c0_47, %c0_48] : memref<1x64x256xbf16, #tpu.memory_space<vmem>>, vector<1x64x256xbf16>
    %122 = vector.shape_cast %121 : vector<1x64x256xbf16> to vector<64x256xbf16>
    %123 = arith.truncf %120 : vector<16x256xf32> to vector<16x256xbf16>
    %cst_49 = arith.constant dense<0.000000e+00> : vector<16x64xf32>
    %124 = tpu.matmul %123, %122, %cst_49 {dimension_numbers = #tpu.dot_dimension_numbers<[1], [1], [0], [0], [0, 0, 1, 0], [], []>} : vector<16x256xbf16>, vector<64x256xbf16>, vector<16x64xf32> -> vector<16x64xf32>
    %c0_50 = arith.constant 0 : index
    %c0_51 = arith.constant 0 : index
    %c0_52 = arith.constant 0 : index
    %125 = vector.load %arg15[%c0_50, %c0_51, %c0_52] : memref<1x1x64xf32, #tpu.memory_space<vmem>>, vector<1x1x64xf32>
    %126 = vector.shape_cast %125 : vector<1x1x64xf32> to vector<1x64xf32>
    %127 = vector.broadcast %126 : vector<1x64xf32> to vector<16x64xf32>
    %128 = arith.addf %124, %127 : vector<16x64xf32>
    %129 = arith.addf %99, %128 : vector<16x64xf32>
    %c0_53 = arith.constant 0 : index
    %c0_54 = arith.constant 0 : index
    %c0_55 = arith.constant 0 : index
    %130 = vector.load %arg16[%c0_53, %c0_54, %c0_55] : memref<1x1x64xf32, #tpu.memory_space<vmem>>, vector<1x1x64xf32>
    %131 = vector.shape_cast %130 : vector<1x1x64xf32> to vector<1x64xf32>
    %c0_56 = arith.constant 0 : index
    %c0_57 = arith.constant 0 : index
    %c0_58 = arith.constant 0 : index
    %132 = vector.load %arg17[%c0_56, %c0_57, %c0_58] : memref<1x1x64xf32, #tpu.memory_space<vmem>>, vector<1x1x64xf32>
    %133 = vector.shape_cast %132 : vector<1x1x64xf32> to vector<1x64xf32>
    %cst_59 = arith.constant dense<0.000000e+00> : vector<16xf32>
    %134 = vector.multi_reduction <add>, %129, %cst_59 [1] : vector<16x64xf32> to vector<16xf32>
    %135 = vector.shape_cast %134 : vector<16xf32> to vector<16x1xf32>
    %cst_60 = arith.constant 6.400000e+01 : f32
    %136 = vector.broadcast %cst_60 : f32 to vector<16x1xf32>
    %137 = arith.divf %135, %136 : vector<16x1xf32>
    %138 = arith.mulf %129, %129 : vector<16x64xf32>
    %cst_61 = arith.constant dense<0.000000e+00> : vector<16xf32>
    %139 = vector.multi_reduction <add>, %138, %cst_61 [1] : vector<16x64xf32> to vector<16xf32>
    %140 = vector.shape_cast %139 : vector<16xf32> to vector<16x1xf32>
    %cst_62 = arith.constant 6.400000e+01 : f32
    %141 = vector.broadcast %cst_62 : f32 to vector<16x1xf32>
    %142 = arith.divf %140, %141 : vector<16x1xf32>
    %143 = arith.mulf %137, %137 : vector<16x1xf32>
    %144 = arith.subf %142, %143 : vector<16x1xf32>
    %cst_63 = arith.constant 0.000000e+00 : f32
    %145 = vector.broadcast %cst_63 : f32 to vector<16x1xf32>
    %146 = arith.maximumf %144, %145 : vector<16x1xf32>
    %147 = vector.broadcast %137 : vector<16x1xf32> to vector<16x64xf32>
    %148 = arith.subf %129, %147 : vector<16x64xf32>
    %cst_64 = arith.constant 9.99999974E-6 : f32
    %149 = vector.broadcast %cst_64 : f32 to vector<16x1xf32>
    %150 = arith.addf %146, %149 : vector<16x1xf32>
    %151 = math.rsqrt %150 : vector<16x1xf32>
    %152 = vector.broadcast %151 : vector<16x1xf32> to vector<16x64xf32>
    %153 = arith.mulf %148, %152 : vector<16x64xf32>
    %154 = vector.broadcast %131 : vector<1x64xf32> to vector<16x64xf32>
    %155 = arith.mulf %153, %154 : vector<16x64xf32>
    %156 = vector.broadcast %133 : vector<1x64xf32> to vector<16x64xf32>
    %157 = arith.addf %155, %156 : vector<16x64xf32>
    %c0_65 = arith.constant 0 : index
    %c0_66 = arith.constant 0 : index
    %158 = vector.load %arg37[%c0_65, %c0_66] : memref<16x64xf32, #tpu.memory_space<vmem>>, vector<16x64xf32>
    tpu.vector_store %arg37[%c0_65, %c0_66], %157 {strides = array<i32>} : memref<16x64xf32, #tpu.memory_space<vmem>>, vector<16x64xf32>,
    %c1_i32 = arith.constant 1 : i32
    %159 = arith.cmpi eq, %arg0, %c1_i32 : i32
    %160 = arith.extui %159 : i1 to i32
    %c0_i32_67 = arith.constant 0 : i32
    %161 = arith.cmpi ne, %160, %c0_i32_67 : i32
    scf.if %161 {
      %c0_68 = arith.constant 0 : index
      %c0_69 = arith.constant 0 : index
      %162 = vector.load %arg37[%c0_68, %c0_69] : memref<16x64xf32, #tpu.memory_space<vmem>>, vector<16x64xf32>
      %163 = vector.shape_cast %162 : vector<16x64xf32> to vector<2x8x64xf32>
      %cst_70 = arith.constant dense<0.000000e+00> : vector<2x64xf32>
      %164 = vector.multi_reduction <add>, %163, %cst_70 [1] : vector<2x8x64xf32> to vector<2x64xf32>
      %cst_71 = arith.constant 1.250000e-01 : f32
      %165 = vector.broadcast %cst_71 : f32 to vector<2x64xf32>
      %166 = arith.mulf %164, %165 : vector<2x64xf32>
      %c0_72 = arith.constant 0 : index
      %c0_73 = arith.constant 0 : index
      %167 = vector.load %arg18[%c0_72, %c0_73] : memref<768x64xbf16, #tpu.memory_space<vmem>>, vector<768x64xbf16>
      %168 = arith.truncf %166 : vector<2x64xf32> to vector<2x64xbf16>
      %cst_74 = arith.constant dense<0.000000e+00> : vector<2x768xf32>
      %169 = tpu.matmul %168, %167, %cst_74 {dimension_numbers = #tpu.dot_dimension_numbers<[1], [1], [0], [0], [0, 0, 1, 0], [], []>} : vector<2x64xbf16>, vector<768x64xbf16>, vector<2x768xf32> -> vector<2x768xf32>
      %c0_75 = arith.constant 0 : index
      %c0_76 = arith.constant 0 : index
      %170 = vector.load %arg19[%c0_75, %c0_76] : memref<1x768xf32, #tpu.memory_space<vmem>>, vector<1x768xf32>
      %171 = vector.broadcast %170 : vector<1x768xf32> to vector<2x768xf32>
      %172 = arith.addf %169, %171 : vector<2x768xf32>
      %cst_77 = arith.constant 5.000000e-01 : f32
      %173 = vector.broadcast %cst_77 : f32 to vector<2x768xf32>
      %174 = arith.mulf %173, %172 : vector<2x768xf32>
      %cst_78 = arith.constant 4.471500e-02 : f32
      %175 = vector.broadcast %cst_78 : f32 to vector<2x768xf32>
      %176 = arith.mulf %175, %172 : vector<2x768xf32>
      %177 = arith.mulf %176, %172 : vector<2x768xf32>
      %178 = arith.mulf %177, %172 : vector<2x768xf32>
      %179 = arith.addf %172, %178 : vector<2x768xf32>
      %cst_79 = arith.constant 0.797884583 : f32
      %180 = vector.broadcast %cst_79 : f32 to vector<2x768xf32>
      %181 = arith.mulf %180, %179 : vector<2x768xf32>
      %182 = math.tanh %181 : vector<2x768xf32>
      %cst_80 = arith.constant 1.000000e+00 : f32
      %183 = vector.broadcast %cst_80 : f32 to vector<2x768xf32>
      %184 = arith.addf %183, %182 : vector<2x768xf32>
      %185 = arith.mulf %174, %184 : vector<2x768xf32>
      %186 = vector.extract_strided_slice %185 {offsets = [0, 0], sizes = [2, 256], strides = [1, 1]} : vector<2x768xf32> to vector<2x256xf32>
      %187 = vector.extract_strided_slice %185 {offsets = [0, 256], sizes = [2, 128], strides = [1, 1]} : vector<2x768xf32> to vector<2x128xf32>
      %188 = vector.extract_strided_slice %185 {offsets = [0, 384], sizes = [2, 256], strides = [1, 1]} : vector<2x768xf32> to vector<2x256xf32>
      %189 = vector.extract_strided_slice %185 {offsets = [0, 640], sizes = [2, 128], strides = [1, 1]} : vector<2x768xf32> to vector<2x128xf32>
      %c0_81 = arith.constant 0 : index
      %c0_82 = arith.constant 0 : index
      %190 = vector.load %arg20[%c0_81, %c0_82] : memref<1x256xf32, #tpu.memory_space<vmem>>, vector<1x256xf32>
      %c0_83 = arith.constant 0 : index
      %c0_84 = arith.constant 0 : index
      %191 = vector.load %arg21[%c0_83, %c0_84] : memref<1x256xf32, #tpu.memory_space<vmem>>, vector<1x256xf32>
      %cst_85 = arith.constant dense<0.000000e+00> : vector<2xf32>
      %192 = vector.multi_reduction <add>, %186, %cst_85 [1] : vector<2x256xf32> to vector<2xf32>
      %193 = vector.shape_cast %192 : vector<2xf32> to vector<2x1xf32>
      %cst_86 = arith.constant 2.560000e+02 : f32
      %194 = vector.broadcast %cst_86 : f32 to vector<2x1xf32>
      %195 = arith.divf %193, %194 : vector<2x1xf32>
      %196 = arith.mulf %186, %186 : vector<2x256xf32>
      %cst_87 = arith.constant dense<0.000000e+00> : vector<2xf32>
      %197 = vector.multi_reduction <add>, %196, %cst_87 [1] : vector<2x256xf32> to vector<2xf32>
      %198 = vector.shape_cast %197 : vector<2xf32> to vector<2x1xf32>
      %cst_88 = arith.constant 2.560000e+02 : f32
      %199 = vector.broadcast %cst_88 : f32 to vector<2x1xf32>
      %200 = arith.divf %198, %199 : vector<2x1xf32>
      %201 = arith.mulf %195, %195 : vector<2x1xf32>
      %202 = arith.subf %200, %201 : vector<2x1xf32>
      %cst_89 = arith.constant 0.000000e+00 : f32
      %203 = vector.broadcast %cst_89 : f32 to vector<2x1xf32>
      %204 = arith.maximumf %202, %203 : vector<2x1xf32>
      %205 = vector.broadcast %195 : vector<2x1xf32> to vector<2x256xf32>
      %206 = arith.subf %186, %205 : vector<2x256xf32>
      %cst_90 = arith.constant 9.99999974E-6 : f32
      %207 = vector.broadcast %cst_90 : f32 to vector<2x1xf32>
      %208 = arith.addf %204, %207 : vector<2x1xf32>
      %209 = math.rsqrt %208 : vector<2x1xf32>
      %210 = vector.broadcast %209 : vector<2x1xf32> to vector<2x256xf32>
      %211 = arith.mulf %206, %210 : vector<2x256xf32>
      %212 = vector.broadcast %190 : vector<1x256xf32> to vector<2x256xf32>
      %213 = arith.mulf %211, %212 : vector<2x256xf32>
      %214 = vector.broadcast %191 : vector<1x256xf32> to vector<2x256xf32>
      %215 = arith.addf %213, %214 : vector<2x256xf32>
      %c0_91 = arith.constant 0 : index
      %c0_92 = arith.constant 0 : index
      %216 = vector.load %arg22[%c0_91, %c0_92] : memref<128x256xbf16, #tpu.memory_space<vmem>>, vector<128x256xbf16>
      %217 = arith.truncf %215 : vector<2x256xf32> to vector<2x256xbf16>
      %cst_93 = arith.constant dense<0.000000e+00> : vector<2x128xf32>
      %218 = tpu.matmul %217, %216, %cst_93 {dimension_numbers = #tpu.dot_dimension_numbers<[1], [1], [0], [0], [0, 0, 1, 0], [], []>} : vector<2x256xbf16>, vector<128x256xbf16>, vector<2x128xf32> -> vector<2x128xf32>
      %c0_94 = arith.constant 0 : index
      %c0_95 = arith.constant 0 : index
      %219 = vector.load %arg23[%c0_94, %c0_95] : memref<1x128xf32, #tpu.memory_space<vmem>>, vector<1x128xf32>
      %220 = vector.broadcast %219 : vector<1x128xf32> to vector<2x128xf32>
      %221 = arith.addf %218, %220 : vector<2x128xf32>
      %cst_96 = arith.constant 5.000000e-01 : f32
      %222 = vector.broadcast %cst_96 : f32 to vector<2x128xf32>
      %223 = arith.mulf %222, %221 : vector<2x128xf32>
      %cst_97 = arith.constant 4.471500e-02 : f32
      %224 = vector.broadcast %cst_97 : f32 to vector<2x128xf32>
      %225 = arith.mulf %224, %221 : vector<2x128xf32>
      %226 = arith.mulf %225, %221 : vector<2x128xf32>
      %227 = arith.mulf %226, %221 : vector<2x128xf32>
      %228 = arith.addf %221, %227 : vector<2x128xf32>
      %cst_98 = arith.constant 0.797884583 : f32
      %229 = vector.broadcast %cst_98 : f32 to vector<2x128xf32>
      %230 = arith.mulf %229, %228 : vector<2x128xf32>
      %231 = math.tanh %230 : vector<2x128xf32>
      %cst_99 = arith.constant 1.000000e+00 : f32
      %232 = vector.broadcast %cst_99 : f32 to vector<2x128xf32>
      %233 = arith.addf %232, %231 : vector<2x128xf32>
      %234 = arith.mulf %223, %233 : vector<2x128xf32>
      %c0_100 = arith.constant 0 : index
      %c0_101 = arith.constant 0 : index
      %235 = vector.load %arg24[%c0_100, %c0_101] : memref<64x128xbf16, #tpu.memory_space<vmem>>, vector<64x128xbf16>
      %236 = arith.truncf %234 : vector<2x128xf32> to vector<2x128xbf16>
      %cst_102 = arith.constant dense<0.000000e+00> : vector<2x64xf32>
      %237 = tpu.matmul %236, %235, %cst_102 {dimension_numbers = #tpu.dot_dimension_numbers<[1], [1], [0], [0], [0, 0, 1, 0], [], []>} : vector<2x128xbf16>, vector<64x128xbf16>, vector<2x64xf32> -> vector<2x64xf32>
      %c0_103 = arith.constant 0 : index
      %c0_104 = arith.constant 0 : index
      %238 = vector.load %arg25[%c0_103, %c0_104] : memref<1x64xf32, #tpu.memory_space<vmem>>, vector<1x64xf32>
      %239 = vector.broadcast %238 : vector<1x64xf32> to vector<2x64xf32>
      %240 = arith.addf %237, %239 : vector<2x64xf32>
      %241 = math.absf %240 : vector<2x64xf32>
      %cst_105 = arith.constant 0.000000e+00 : f32
      %242 = vector.broadcast %cst_105 : f32 to vector<2x64xf32>
      %243 = arith.subf %242, %241 : vector<2x64xf32>
      %244 = math.exp %243 : vector<2x64xf32>
      %cst_106 = arith.constant 0.000000e+00 : f32
      %245 = vector.broadcast %cst_106 : f32 to vector<2x64xf32>
      %246 = arith.cmpf oge, %240, %245 : vector<2x64xf32>
      %cst_107 = arith.constant 1.000000e+00 : f32
      %247 = vector.broadcast %cst_107 : f32 to vector<2x64xf32>
      %248 = arith.addf %247, %244 : vector<2x64xf32>
      %cst_108 = arith.constant 1.000000e+00 : f32
      %249 = vector.broadcast %cst_108 : f32 to vector<2x64xf32>
      %250 = arith.divf %249, %248 : vector<2x64xf32>
      %cst_109 = arith.constant 1.000000e+00 : f32
      %251 = vector.broadcast %cst_109 : f32 to vector<2x64xf32>
      %252 = arith.addf %251, %244 : vector<2x64xf32>
      %253 = arith.divf %244, %252 : vector<2x64xf32>
      %254 = arith.select %246, %250, %253 : vector<2x64xi1>, vector<2x64xf32>
      %c0_110 = arith.constant 0 : index
      %c0_111 = arith.constant 0 : index
      %255 = vector.load %arg26[%c0_110, %c0_111] : memref<1x128xf32, #tpu.memory_space<vmem>>, vector<1x128xf32>
      %c0_112 = arith.constant 0 : index
      %c0_113 = arith.constant 0 : index
      %256 = vector.load %arg27[%c0_112, %c0_113] : memref<1x128xf32, #tpu.memory_space<vmem>>, vector<1x128xf32>
      %cst_114 = arith.constant dense<0.000000e+00> : vector<2xf32>
      %257 = vector.multi_reduction <add>, %187, %cst_114 [1] : vector<2x128xf32> to vector<2xf32>
      %258 = vector.shape_cast %257 : vector<2xf32> to vector<2x1xf32>
      %cst_115 = arith.constant 1.280000e+02 : f32
      %259 = vector.broadcast %cst_115 : f32 to vector<2x1xf32>
      %260 = arith.divf %258, %259 : vector<2x1xf32>
      %261 = arith.mulf %187, %187 : vector<2x128xf32>
      %cst_116 = arith.constant dense<0.000000e+00> : vector<2xf32>
      %262 = vector.multi_reduction <add>, %261, %cst_116 [1] : vector<2x128xf32> to vector<2xf32>
      %263 = vector.shape_cast %262 : vector<2xf32> to vector<2x1xf32>
      %cst_117 = arith.constant 1.280000e+02 : f32
      %264 = vector.broadcast %cst_117 : f32 to vector<2x1xf32>
      %265 = arith.divf %263, %264 : vector<2x1xf32>
      %266 = arith.mulf %260, %260 : vector<2x1xf32>
      %267 = arith.subf %265, %266 : vector<2x1xf32>
      %cst_118 = arith.constant 0.000000e+00 : f32
      %268 = vector.broadcast %cst_118 : f32 to vector<2x1xf32>
      %269 = arith.maximumf %267, %268 : vector<2x1xf32>
      %270 = vector.broadcast %260 : vector<2x1xf32> to vector<2x128xf32>
      %271 = arith.subf %187, %270 : vector<2x128xf32>
      %cst_119 = arith.constant 9.99999974E-6 : f32
      %272 = vector.broadcast %cst_119 : f32 to vector<2x1xf32>
      %273 = arith.addf %269, %272 : vector<2x1xf32>
      %274 = math.rsqrt %273 : vector<2x1xf32>
      %275 = vector.broadcast %274 : vector<2x1xf32> to vector<2x128xf32>
      %276 = arith.mulf %271, %275 : vector<2x128xf32>
      %277 = vector.broadcast %255 : vector<1x128xf32> to vector<2x128xf32>
      %278 = arith.mulf %276, %277 : vector<2x128xf32>
      %279 = vector.broadcast %256 : vector<1x128xf32> to vector<2x128xf32>
      %280 = arith.addf %278, %279 : vector<2x128xf32>
      %c0_120 = arith.constant 0 : index
      %c0_121 = arith.constant 0 : index
      %281 = vector.load %arg28[%c0_120, %c0_121] : memref<32x128xbf16, #tpu.memory_space<vmem>>, vector<32x128xbf16>
      %282 = arith.truncf %280 : vector<2x128xf32> to vector<2x128xbf16>
      %cst_122 = arith.constant dense<0.000000e+00> : vector<2x32xf32>
      %283 = tpu.matmul %282, %281, %cst_122 {dimension_numbers = #tpu.dot_dimension_numbers<[1], [1], [0], [0], [0, 0, 1, 0], [], []>} : vector<2x128xbf16>, vector<32x128xbf16>, vector<2x32xf32> -> vector<2x32xf32>
      %c0_123 = arith.constant 0 : index
      %c0_124 = arith.constant 0 : index
      %284 = vector.load %arg29[%c0_123, %c0_124] : memref<1x32xf32, #tpu.memory_space<vmem>>, vector<1x32xf32>
      %285 = vector.broadcast %284 : vector<1x32xf32> to vector<2x32xf32>
      %286 = arith.addf %283, %285 : vector<2x32xf32>
      %cst_125 = arith.constant 0.000000e+00 : f32
      %287 = vector.broadcast %cst_125 : f32 to vector<2x32xf32>
      %288 = arith.maximumf %286, %287 : vector<2x32xf32>
      %289 = math.absf %286 : vector<2x32xf32>
      %cst_126 = arith.constant 0.000000e+00 : f32
      %290 = vector.broadcast %cst_126 : f32 to vector<2x32xf32>
      %291 = arith.subf %290, %289 : vector<2x32xf32>
      %292 = math.exp %291 : vector<2x32xf32>
      %cst_127 = arith.constant 1.000000e+00 : f32
      %293 = vector.broadcast %cst_127 : f32 to vector<2x32xf32>
      %294 = arith.addf %293, %292 : vector<2x32xf32>
      %295 = math.log %294 : vector<2x32xf32>
      %296 = arith.addf %288, %295 : vector<2x32xf32>
      %cst_128 = arith.constant 2.000000e+01 : f32
      %297 = vector.broadcast %cst_128 : f32 to vector<2x32xf32>
      %298 = arith.cmpf ogt, %286, %297 : vector<2x32xf32>
      %299 = arith.select %298, %286, %296 : vector<2x32xi1>, vector<2x32xf32>
      %c0_129 = arith.constant 0 : index
      %c0_130 = arith.constant 0 : index
      %300 = vector.load %arg30[%c0_129, %c0_130] : memref<128x256xbf16, #tpu.memory_space<vmem>>, vector<128x256xbf16>
      %301 = arith.truncf %188 : vector<2x256xf32> to vector<2x256xbf16>
      %cst_131 = arith.constant dense<0.000000e+00> : vector<2x128xf32>
      %302 = tpu.matmul %301, %300, %cst_131 {dimension_numbers = #tpu.dot_dimension_numbers<[1], [1], [0], [0], [0, 0, 1, 0], [], []>} : vector<2x256xbf16>, vector<128x256xbf16>, vector<2x128xf32> -> vector<2x128xf32>
      %c0_132 = arith.constant 0 : index
      %c0_133 = arith.constant 0 : index
      %303 = vector.load %arg31[%c0_132, %c0_133] : memref<1x128xf32, #tpu.memory_space<vmem>>, vector<1x128xf32>
      %304 = vector.broadcast %303 : vector<1x128xf32> to vector<2x128xf32>
      %305 = arith.addf %302, %304 : vector<2x128xf32>
      %cst_134 = arith.constant 5.000000e-01 : f32
      %306 = vector.broadcast %cst_134 : f32 to vector<2x128xf32>
      %307 = arith.mulf %306, %305 : vector<2x128xf32>
      %cst_135 = arith.constant 4.471500e-02 : f32
      %308 = vector.broadcast %cst_135 : f32 to vector<2x128xf32>
      %309 = arith.mulf %308, %305 : vector<2x128xf32>
      %310 = arith.mulf %309, %305 : vector<2x128xf32>
      %311 = arith.mulf %310, %305 : vector<2x128xf32>
      %312 = arith.addf %305, %311 : vector<2x128xf32>
      %cst_136 = arith.constant 0.797884583 : f32
      %313 = vector.broadcast %cst_136 : f32 to vector<2x128xf32>
      %314 = arith.mulf %313, %312 : vector<2x128xf32>
      %315 = math.tanh %314 : vector<2x128xf32>
      %cst_137 = arith.constant 1.000000e+00 : f32
      %316 = vector.broadcast %cst_137 : f32 to vector<2x128xf32>
      %317 = arith.addf %316, %315 : vector<2x128xf32>
      %318 = arith.mulf %307, %317 : vector<2x128xf32>
      %c0_138 = arith.constant 0 : index
      %c0_139 = arith.constant 0 : index
      %319 = vector.load %arg32[%c0_138, %c0_139] : memref<50x128xbf16, #tpu.memory_space<vmem>>, vector<50x128xbf16>
      %320 = arith.truncf %318 : vector<2x128xf32> to vector<2x128xbf16>
      %cst_140 = arith.constant dense<0.000000e+00> : vector<2x50xf32>
      %321 = tpu.matmul %320, %319, %cst_140 {dimension_numbers = #tpu.dot_dimension_numbers<[1], [1], [0], [0], [0, 0, 1, 0], [], []>} : vector<2x128xbf16>, vector<50x128xbf16>, vector<2x50xf32> -> vector<2x50xf32>
      %c0_141 = arith.constant 0 : index
      %c0_142 = arith.constant 0 : index
      %322 = vector.load %arg33[%c0_141, %c0_142] : memref<1x50xf32, #tpu.memory_space<vmem>>, vector<1x50xf32>
      %323 = vector.broadcast %322 : vector<1x50xf32> to vector<2x50xf32>
      %324 = arith.addf %321, %323 : vector<2x50xf32>
      %325 = math.absf %324 : vector<2x50xf32>
      %cst_143 = arith.constant 0.000000e+00 : f32
      %326 = vector.broadcast %cst_143 : f32 to vector<2x50xf32>
      %327 = arith.subf %326, %325 : vector<2x50xf32>
      %328 = math.exp %327 : vector<2x50xf32>
      %cst_144 = arith.constant 0.000000e+00 : f32
      %329 = vector.broadcast %cst_144 : f32 to vector<2x50xf32>
      %330 = arith.cmpf oge, %324, %329 : vector<2x50xf32>
      %cst_145 = arith.constant 1.000000e+00 : f32
      %331 = vector.broadcast %cst_145 : f32 to vector<2x50xf32>
      %332 = arith.addf %331, %328 : vector<2x50xf32>
      %cst_146 = arith.constant 1.000000e+00 : f32
      %333 = vector.broadcast %cst_146 : f32 to vector<2x50xf32>
      %334 = arith.divf %333, %332 : vector<2x50xf32>
      %cst_147 = arith.constant 1.000000e+00 : f32
      %335 = vector.broadcast %cst_147 : f32 to vector<2x50xf32>
      %336 = arith.addf %335, %328 : vector<2x50xf32>
      %337 = arith.divf %328, %336 : vector<2x50xf32>
      %338 = arith.select %330, %334, %337 : vector<2x50xi1>, vector<2x50xf32>
      %c0_148 = arith.constant 0 : index
      %c0_149 = arith.constant 0 : index
      %339 = vector.load %arg34[%c0_148, %c0_149] : memref<8x128xbf16, #tpu.memory_space<vmem>>, vector<8x128xbf16>
      %340 = arith.truncf %189 : vector<2x128xf32> to vector<2x128xbf16>
      %cst_150 = arith.constant dense<0.000000e+00> : vector<2x8xf32>
      %341 = tpu.matmul %340, %339, %cst_150 {dimension_numbers = #tpu.dot_dimension_numbers<[1], [1], [0], [0], [0, 0, 1, 0], [], []>} : vector<2x128xbf16>, vector<8x128xbf16>, vector<2x8xf32> -> vector<2x8xf32>
      %c0_151 = arith.constant 0 : index
      %c0_152 = arith.constant 0 : index
      %342 = vector.load %arg35[%c0_151, %c0_152] : memref<1x8xf32, #tpu.memory_space<vmem>>, vector<1x8xf32>
      %343 = vector.broadcast %342 : vector<1x8xf32> to vector<2x8xf32>
      %344 = arith.addf %341, %343 : vector<2x8xf32>
      %cst_153 = arith.constant dense<0xFF800000> : vector<2xf32>
      %345 = vector.multi_reduction <maximumf>, %344, %cst_153 [1] : vector<2x8xf32> to vector<2xf32>
      %346 = vector.shape_cast %345 : vector<2xf32> to vector<2x1xf32>
      %347 = vector.broadcast %346 : vector<2x1xf32> to vector<2x8xf32>
      %348 = arith.subf %344, %347 : vector<2x8xf32>
      %349 = math.exp %348 : vector<2x8xf32>
      %cst_154 = arith.constant dense<0.000000e+00> : vector<2xf32>
      %350 = vector.multi_reduction <add>, %349, %cst_154 [1] : vector<2x8xf32> to vector<2xf32>
      %351 = vector.shape_cast %350 : vector<2xf32> to vector<2x1xf32>
      %352 = vector.broadcast %351 : vector<2x1xf32> to vector<2x8xf32>
      %353 = arith.divf %349, %352 : vector<2x8xf32>
      %cst_155 = arith.constant 0.000000e+00 : f32
      %354 = vector.broadcast %cst_155 : f32 to vector<2x64xf32>
      %355 = tpu.concatenate %254, %354 in 1 : vector<2x64xf32>, vector<2x64xf32> -> vector<2x128xf32>
      %cst_156 = arith.constant 0.000000e+00 : f32
      %356 = vector.broadcast %cst_156 : f32 to vector<2x96xf32>
      %357 = tpu.concatenate %299, %356 in 1 : vector<2x32xf32>, vector<2x96xf32> -> vector<2x128xf32>
      %cst_157 = arith.constant 0.000000e+00 : f32
      %358 = vector.broadcast %cst_157 : f32 to vector<2x78xf32>
      %359 = tpu.concatenate %338, %358 in 1 : vector<2x50xf32>, vector<2x78xf32> -> vector<2x128xf32>
      %cst_158 = arith.constant 0.000000e+00 : f32
      %360 = vector.broadcast %cst_158 : f32 to vector<2x120xf32>
      %361 = tpu.concatenate %353, %360 in 1 : vector<2x8xf32>, vector<2x120xf32> -> vector<2x128xf32>
      %cst_159 = arith.constant 0.000000e+00 : f32
      %362 = vector.broadcast %cst_159 : f32 to vector<2x64xf32>
      %363 = tpu.concatenate %166, %362 in 1 : vector<2x64xf32>, vector<2x64xf32> -> vector<2x128xf32>
      %364 = tpu.concatenate %355, %357, %359, %361, %363 in 1 : vector<2x128xf32>, vector<2x128xf32>, vector<2x128xf32>, vector<2x128xf32>, vector<2x128xf32> -> vector<2x640xf32>
      %c0_160 = arith.constant 0 : index
      %c0_161 = arith.constant 0 : index
      %365 = vector.load %arg36[%c0_160, %c0_161] : memref<2x640xf32, #tpu.memory_space<vmem>>, vector<2x640xf32>
      tpu.vector_store %arg36[%c0_160, %c0_161], %364 {strides = array<i32>} : memref<2x640xf32, #tpu.memory_space<vmem>>, vector<2x640xf32>,
    } else {
    }
    return
  }
  func.func @transform_0(%arg0: i32) -> (i32, i32) {
    %c0_i32 = arith.constant 0 : i32
    %c0_i32_0 = arith.constant 0 : i32
    %c0_i32_1 = arith.constant 0 : i32
    return %c0_i32, %c0_i32_0 : i32, i32
  }
  func.func @transform_1(%arg0: i32) -> (i32, i32) {
    %c0_i32 = arith.constant 0 : i32
    %c0_i32_0 = arith.constant 0 : i32
    %c0_i32_1 = arith.constant 0 : i32
    return %c0_i32, %c0_i32_0 : i32, i32
  }
  func.func @transform_2(%arg0: i32) -> (i32, i32) {
    %c0_i32 = arith.constant 0 : i32
    %c0_i32_0 = arith.constant 0 : i32
    %c0_i32_1 = arith.constant 0 : i32
    return %c0_i32, %c0_i32_0 : i32, i32
  }
  func.func @transform_3(%arg0: i32) -> (i32, i32) {
    %c0_i32 = arith.constant 0 : i32
    %c0_i32_0 = arith.constant 0 : i32
    %c0_i32_1 = arith.constant 0 : i32
    return %c0_i32, %c0_i32_0 : i32, i32
  }
  func.func @transform_4(%arg0: i32) -> (i32, i32, i32) {
    %c0_i32 = arith.constant 0 : i32
    %c0_i32_0 = arith.constant 0 : i32
    %c0_i32_1 = arith.constant 0 : i32
    %c0_i32_2 = arith.constant 0 : i32
    return %c0_i32, %c0_i32_0, %c0_i32_1 : i32, i32, i32
  }
  func.func @transform_5(%arg0: i32) -> (i32, i32, i32) {
    %c0_i32 = arith.constant 0 : i32
    %c0_i32_0 = arith.constant 0 : i32
    %c0_i32_1 = arith.constant 0 : i32
    return %arg0, %c0_i32, %c0_i32_0 : i32, i32, i32
  }
  func.func @transform_6(%arg0: i32) -> (i32, i32, i32) {
    %c0_i32 = arith.constant 0 : i32
    %c0_i32_0 = arith.constant 0 : i32
    %c0_i32_1 = arith.constant 0 : i32
    return %arg0, %c0_i32, %c0_i32_0 : i32, i32, i32
  }
  func.func @transform_7(%arg0: i32) -> (i32, i32, i32) {
    %c0_i32 = arith.constant 0 : i32
    %c0_i32_0 = arith.constant 0 : i32
    %c0_i32_1 = arith.constant 0 : i32
    return %arg0, %c0_i32, %c0_i32_0 : i32, i32, i32
  }
  func.func @transform_8(%arg0: i32) -> (i32, i32, i32) {
    %c0_i32 = arith.constant 0 : i32
    %c0_i32_0 = arith.constant 0 : i32
    %c0_i32_1 = arith.constant 0 : i32
    return %arg0, %c0_i32, %c0_i32_0 : i32, i32, i32
  }
  func.func @transform_9(%arg0: i32) -> (i32, i32, i32) {
    %c0_i32 = arith.constant 0 : i32
    %c0_i32_0 = arith.constant 0 : i32
    %c0_i32_1 = arith.constant 0 : i32
    return %arg0, %c0_i32, %c0_i32_0 : i32, i32, i32
  }
  func.func @transform_10(%arg0: i32) -> (i32, i32, i32) {
    %c0_i32 = arith.constant 0 : i32
    %c0_i32_0 = arith.constant 0 : i32
    %c0_i32_1 = arith.constant 0 : i32
    return %arg0, %c0_i32, %c0_i32_0 : i32, i32, i32
  }
  func.func @transform_11(%arg0: i32) -> (i32, i32, i32) {
    %c0_i32 = arith.constant 0 : i32
    %c0_i32_0 = arith.constant 0 : i32
    %c0_i32_1 = arith.constant 0 : i32
    return %arg0, %c0_i32, %c0_i32_0 : i32, i32, i32
  }
  func.func @transform_12(%arg0: i32) -> (i32, i32, i32) {
    %c0_i32 = arith.constant 0 : i32
    %c0_i32_0 = arith.constant 0 : i32
    %c0_i32_1 = arith.constant 0 : i32
    return %arg0, %c0_i32, %c0_i32_0 : i32, i32, i32
  }
  func.func @transform_13(%arg0: i32) -> (i32, i32, i32) {
    %c0_i32 = arith.constant 0 : i32
    %c0_i32_0 = arith.constant 0 : i32
    %c0_i32_1 = arith.constant 0 : i32
    return %arg0, %c0_i32, %c0_i32_0 : i32, i32, i32
  }
  func.func @transform_14(%arg0: i32) -> (i32, i32, i32) {
    %c0_i32 = arith.constant 0 : i32
    %c0_i32_0 = arith.constant 0 : i32
    %c0_i32_1 = arith.constant 0 : i32
    return %arg0, %c0_i32, %c0_i32_0 : i32, i32, i32
  }
  func.func @transform_15(%arg0: i32) -> (i32, i32, i32) {
    %c0_i32 = arith.constant 0 : i32
    %c0_i32_0 = arith.constant 0 : i32
    %c0_i32_1 = arith.constant 0 : i32
    return %arg0, %c0_i32, %c0_i32_0 : i32, i32, i32
  }
  func.func @transform_16(%arg0: i32) -> (i32, i32, i32) {
    %c0_i32 = arith.constant 0 : i32
    %c0_i32_0 = arith.constant 0 : i32
    %c0_i32_1 = arith.constant 0 : i32
    return %arg0, %c0_i32, %c0_i32_0 : i32, i32, i32
  }
  func.func @transform_17(%arg0: i32) -> (i32, i32) {
    %c0_i32 = arith.constant 0 : i32
    %c0_i32_0 = arith.constant 0 : i32
    %c0_i32_1 = arith.constant 0 : i32
    return %c0_i32, %c0_i32_0 : i32, i32
  }
  func.func @transform_18(%arg0: i32) -> (i32, i32) {
    %c0_i32 = arith.constant 0 : i32
    %c0_i32_0 = arith.constant 0 : i32
    %c0_i32_1 = arith.constant 0 : i32
    return %c0_i32, %c0_i32_0 : i32, i32
  }
  func.func @transform_19(%arg0: i32) -> (i32, i32) {
    %c0_i32 = arith.constant 0 : i32
    %c0_i32_0 = arith.constant 0 : i32
    %c0_i32_1 = arith.constant 0 : i32
    return %c0_i32, %c0_i32_0 : i32, i32
  }
  func.func @transform_20(%arg0: i32) -> (i32, i32) {
    %c0_i32 = arith.constant 0 : i32
    %c0_i32_0 = arith.constant 0 : i32
    %c0_i32_1 = arith.constant 0 : i32
    return %c0_i32, %c0_i32_0 : i32, i32
  }
  func.func @transform_21(%arg0: i32) -> (i32, i32) {
    %c0_i32 = arith.constant 0 : i32
    %c0_i32_0 = arith.constant 0 : i32
    %c0_i32_1 = arith.constant 0 : i32
    return %c0_i32, %c0_i32_0 : i32, i32
  }
  func.func @transform_22(%arg0: i32) -> (i32, i32) {
    %c0_i32 = arith.constant 0 : i32
    %c0_i32_0 = arith.constant 0 : i32
    %c0_i32_1 = arith.constant 0 : i32
    return %c0_i32, %c0_i32_0 : i32, i32
  }
  func.func @transform_23(%arg0: i32) -> (i32, i32) {
    %c0_i32 = arith.constant 0 : i32
    %c0_i32_0 = arith.constant 0 : i32
    %c0_i32_1 = arith.constant 0 : i32
    return %c0_i32, %c0_i32_0 : i32, i32
  }
  func.func @transform_24(%arg0: i32) -> (i32, i32) {
    %c0_i32 = arith.constant 0 : i32
    %c0_i32_0 = arith.constant 0 : i32
    %c0_i32_1 = arith.constant 0 : i32
    return %c0_i32, %c0_i32_0 : i32, i32
  }
  func.func @transform_25(%arg0: i32) -> (i32, i32) {
    %c0_i32 = arith.constant 0 : i32
    %c0_i32_0 = arith.constant 0 : i32
    %c0_i32_1 = arith.constant 0 : i32
    return %c0_i32, %c0_i32_0 : i32, i32
  }
  func.func @transform_26(%arg0: i32) -> (i32, i32) {
    %c0_i32 = arith.constant 0 : i32
    %c0_i32_0 = arith.constant 0 : i32
    %c0_i32_1 = arith.constant 0 : i32
    return %c0_i32, %c0_i32_0 : i32, i32
  }
  func.func @transform_27(%arg0: i32) -> (i32, i32) {
    %c0_i32 = arith.constant 0 : i32
    %c0_i32_0 = arith.constant 0 : i32
    %c0_i32_1 = arith.constant 0 : i32
    return %c0_i32, %c0_i32_0 : i32, i32
  }
  func.func @transform_28(%arg0: i32) -> (i32, i32) {
    %c0_i32 = arith.constant 0 : i32
    %c0_i32_0 = arith.constant 0 : i32
    %c0_i32_1 = arith.constant 0 : i32
    return %c0_i32, %c0_i32_0 : i32, i32
  }
  func.func @transform_29(%arg0: i32) -> (i32, i32) {
    %c0_i32 = arith.constant 0 : i32
    %c0_i32_0 = arith.constant 0 : i32
    %c0_i32_1 = arith.constant 0 : i32
    return %c0_i32, %c0_i32_0 : i32, i32
  }
  func.func @transform_30(%arg0: i32) -> (i32, i32) {
    %c0_i32 = arith.constant 0 : i32
    %c0_i32_0 = arith.constant 0 : i32
    %c0_i32_1 = arith.constant 0 : i32
    return %c0_i32, %c0_i32_0 : i32, i32
  }
  func.func @transform_31(%arg0: i32) -> (i32, i32) {
    %c0_i32 = arith.constant 0 : i32
    %c0_i32_0 = arith.constant 0 : i32
    %c0_i32_1 = arith.constant 0 : i32
    return %c0_i32, %c0_i32_0 : i32, i32
  }
  func.func @transform_32(%arg0: i32) -> (i32, i32) {
    %c0_i32 = arith.constant 0 : i32
    %c0_i32_0 = arith.constant 0 : i32
    %c0_i32_1 = arith.constant 0 : i32
    return %c0_i32, %c0_i32_0 : i32, i32
  }
  func.func @transform_33(%arg0: i32) -> (i32, i32) {
    %c0_i32 = arith.constant 0 : i32
    %c0_i32_0 = arith.constant 0 : i32
    %c0_i32_1 = arith.constant 0 : i32
    return %c0_i32, %c0_i32_0 : i32, i32
  }
  func.func @transform_34(%arg0: i32) -> (i32, i32) {
    %c0_i32 = arith.constant 0 : i32
    %c0_i32_0 = arith.constant 0 : i32
    %c0_i32_1 = arith.constant 0 : i32
    return %c0_i32, %c0_i32_0 : i32, i32
  }
  func.func @transform_35(%arg0: i32) -> (i32, i32) {
    %c0_i32 = arith.constant 0 : i32
    %c0_i32_0 = arith.constant 0 : i32
    %c0_i32_1 = arith.constant 0 : i32
    return %c0_i32, %c0_i32_0 : i32, i32
  }
}

</mosaic_0001>

<llo_original>
// kernel: tpu_custom_call.1
$region0: #{tpu_custom_call.1}
  #allocation0 [shape = 'u32[]', space=smem, size = 0x4, offset = 0x4, fixed_abs, tag = 'smem constant byte address 0x4 - core index']
  #allocation1 [shape = 'u32[144,128]{1,0:T(1,128)}', space=vmem, size = 0x12000, scoped, tag = 'internal scratch']
  #allocation2 [shape = 'f32[16,64]{1,0:T(8,128)}', space=vmem, size = 0x2000, scoped, tag = 'scratch operand']
  %s0 = inlined_call_operand.smem [shape: u32[36], index: -1, kind: input, shape index: {}]
  %s1 = sld [smem:[%s0]]
  %s2 = scalar_lea.smem %s0, 1
  %s3 = sld [smem:[%s2]]
  %s4 = scalar_lea.smem %s0, 2
  %s5 = sld [smem:[%s4]]
  %s6 = scalar_lea.smem %s0, 3
  %s7 = sld [smem:[%s6]]
  %s8 = scalar_lea.smem %s0, 4
  %s9 = sld [smem:[%s8]]
  %s10 = scalar_lea.smem %s0, 5
  %s11 = sld [smem:[%s10]]
  %s12 = scalar_lea.smem %s0, 6
  %s13 = sld [smem:[%s12]]
  %s14 = scalar_lea.smem %s0, 7
  %s15 = sld [smem:[%s14]]
  %s16 = scalar_lea.smem %s0, 8
  %s17 = sld [smem:[%s16]]
  %s18 = scalar_lea.smem %s0, 9
  %s19 = sld [smem:[%s18]]
  %s20 = scalar_lea.smem %s0, 10
  %s21 = sld [smem:[%s20]]
  %s22 = scalar_lea.smem %s0, 11
  %s23 = sld [smem:[%s22]]
  %s24 = scalar_lea.smem %s0, 12
  %s25 = sld [smem:[%s24]]
  %s26 = scalar_lea.smem %s0, 13
  %s27 = sld [smem:[%s26]]
  %s28 = scalar_lea.smem %s0, 14
  %s29 = sld [smem:[%s28]]
  %s30 = scalar_lea.smem %s0, 15
  %s31 = sld [smem:[%s30]]
  %s32 = scalar_lea.smem %s0, 16
  %s33 = sld [smem:[%s32]]
  %s34 = scalar_lea.smem %s0, 17
  %s35 = sld [smem:[%s34]]
  %s36 = scalar_lea.smem %s0, 18
  %s37 = sld [smem:[%s36]]
  %s38 = scalar_lea.smem %s0, 19
  %s39 = sld [smem:[%s38]]
  %s40 = scalar_lea.smem %s0, 20
  %s41 = sld [smem:[%s40]]
  %s42 = scalar_lea.smem %s0, 21
  %s43 = sld [smem:[%s42]]
  %s44 = scalar_lea.smem %s0, 22
  %s45 = sld [smem:[%s44]]
  %s46 = scalar_lea.smem %s0, 23
  %s47 = sld [smem:[%s46]]
  %s48 = scalar_lea.smem %s0, 24
  %s49 = sld [smem:[%s48]]
  %s50 = scalar_lea.smem %s0, 25
  %s51 = sld [smem:[%s50]]
  %s52 = scalar_lea.smem %s0, 26
  %s53 = sld [smem:[%s52]]
  %s54 = scalar_lea.smem %s0, 27
  %s55 = sld [smem:[%s54]]
  %s56 = scalar_lea.smem %s0, 28
  %s57 = sld [smem:[%s56]]
  %s58 = scalar_lea.smem %s0, 29
  %s59 = sld [smem:[%s58]]
  %s60 = scalar_lea.smem %s0, 30
  %s61 = sld [smem:[%s60]]
  %s62 = scalar_lea.smem %s0, 31
  %s63 = sld [smem:[%s62]]
  %s64 = scalar_lea.smem %s0, 32
  %s65 = sld [smem:[%s64]]
  %s66 = scalar_lea.smem %s0, 33
  %s67 = sld [smem:[%s66]]
  %s68 = scalar_lea.smem %s0, 34
  %s69 = sld [smem:[%s68]]
  %s70 = scalar_lea.smem %s0, 35
  %s71 = sld [smem:[%s70]]
  %s72 = sld [smem:[#allocation0]]
  $region181: #{tpu_custom_call.1} parent=0
    _
  %s74 = ssub.s32 1, %s72
  %s75 = scalar_select 0, %s74, %s72
  $region1: #{tpu_custom_call.1} parent=0
    #allocation3 [shape = 'u8[5120]{0}', space=vmem, size = 0x1400, scoped, tag = 'output window, operand 0, single buffered']
    #allocation4 [shape = 's32[2]{0}', space=sflag, size = 0x8, scoped, tag = 'scoped memory for tpu_custom_call.1']
    %76 = vsyncpa [#allocation4], 0
    loop: start=0, step=1, limit=4
    $region2: #{tpu_custom_call.1} parent=1 // loop_pre_header
      _
    $region3: #{tpu_custom_call.1} parent=1 // loop_header
      %s78 = sphi 0, %s82
      %p79 = scmp.ge.s32.totalorder %s78, 4
      %s86 = sphi 0, %s86
      %s88 = sphi 0, %s86
      %s89 = sphi 0, %s88
      %s103 = sphi 0, %s89
      %s107 = sphi 0, %s107
      %s109 = sphi 0, %s107
      %s110 = sphi 0, %s109
      %s124 = sphi 0, %s110
      %s128 = sphi 0, %s128
      %s130 = sphi 0, %s128
      %s131 = sphi 0, %s130
      %s145 = sphi 0, %s131
      %s149 = sphi 0, %s149
      %s151 = sphi 0, %s149
      %s152 = sphi 0, %s151
      %s166 = sphi 0, %s152
      %s170 = sphi 0, %s170
      %s172 = sphi 0, %s170
      %s173 = sphi 0, %s172
      %s187 = sphi 0, %s173
      %s193 = sphi 0, %s195
      %s196 = sphi 0, %s193
      %s197 = sphi 0, %s196
      %s213 = sphi 0, %s197
      %s219 = sphi 0, %s221
      %s222 = sphi 0, %s219
      %s223 = sphi 0, %s222
      %s239 = sphi 0, %s223
      %s245 = sphi 0, %s247
      %s248 = sphi 0, %s245
      %s249 = sphi 0, %s248
      %s265 = sphi 0, %s249
      %s271 = sphi 0, %s273
      %s274 = sphi 0, %s271
      %s275 = sphi 0, %s274
      %s291 = sphi 0, %s275
      %s297 = sphi 0, %s299
      %s300 = sphi 0, %s297
      %s301 = sphi 0, %s300
      %s317 = sphi 0, %s301
      %s323 = sphi 0, %s325
      %s326 = sphi 0, %s323
      %s327 = sphi 0, %s326
      %s343 = sphi 0, %s327
      %s349 = sphi 0, %s351
      %s352 = sphi 0, %s349
      %s353 = sphi 0, %s352
      %s369 = sphi 0, %s353
      %s375 = sphi 0, %s377
      %s378 = sphi 0, %s375
      %s379 = sphi 0, %s378
      %s395 = sphi 0, %s379
      %s401 = sphi 0, %s403
      %s404 = sphi 0, %s401
      %s405 = sphi 0, %s404
      %s421 = sphi 0, %s405
      %s427 = sphi 0, %s429
      %s430 = sphi 0, %s427
      %s431 = sphi 0, %s430
      %s447 = sphi 0, %s431
      %s453 = sphi 0, %s455
      %s456 = sphi 0, %s453
      %s457 = sphi 0, %s456
      %s473 = sphi 0, %s457
      %s479 = sphi 0, %s481
      %s482 = sphi 0, %s479
      %s483 = sphi 0, %s482
      %s499 = sphi 0, %s483
      %s503 = sphi 0, %s503
      %s505 = sphi 0, %s503
      %s506 = sphi 0, %s505
      %s520 = sphi 0, %s506
      %s524 = sphi 0, %s524
      %s526 = sphi 0, %s524
      %s527 = sphi 0, %s526
      %s541 = sphi 0, %s527
      %s545 = sphi 0, %s545
      %s547 = sphi 0, %s545
      %s548 = sphi 0, %s547
      %s562 = sphi 0, %s548
      %s566 = sphi 0, %s566
      %s568 = sphi 0, %s566
      %s569 = sphi 0, %s568
      %s583 = sphi 0, %s569
      %s587 = sphi 0, %s587
      %s589 = sphi 0, %s587
      %s590 = sphi 0, %s589
      %s604 = sphi 0, %s590
      %s608 = sphi 0, %s608
      %s610 = sphi 0, %s608
      %s611 = sphi 0, %s610
      %s625 = sphi 0, %s611
      %s629 = sphi 0, %s629
      %s631 = sphi 0, %s629
      %s632 = sphi 0, %s631
      %s646 = sphi 0, %s632
      %s650 = sphi 0, %s650
      %s652 = sphi 0, %s650
      %s653 = sphi 0, %s652
      %s667 = sphi 0, %s653
      %s671 = sphi 0, %s671
      %s673 = sphi 0, %s671
      %s674 = sphi 0, %s673
      %s688 = sphi 0, %s674
      %s692 = sphi 0, %s692
      %s694 = sphi 0, %s692
      %s695 = sphi 0, %s694
      %s709 = sphi 0, %s695
      %s713 = sphi 0, %s713
      %s715 = sphi 0, %s713
      %s716 = sphi 0, %s715
      %s730 = sphi 0, %s716
      %s734 = sphi 0, %s734
      %s736 = sphi 0, %s734
      %s737 = sphi 0, %s736
      %s751 = sphi 0, %s737
      %s755 = sphi 0, %s755
      %s757 = sphi 0, %s755
      %s758 = sphi 0, %s757
      %s772 = sphi 0, %s758
      %s776 = sphi 0, %s776
      %s778 = sphi 0, %s776
      %s779 = sphi 0, %s778
      %s793 = sphi 0, %s779
      %s797 = sphi 0, %s797
      %s799 = sphi 0, %s797
      %s800 = sphi 0, %s799
      %s814 = sphi 0, %s800
      %s818 = sphi 0, %s818
      %s820 = sphi 0, %s818
      %s821 = sphi 0, %s820
      %s835 = sphi 0, %s821
      %s839 = sphi 0, %s839
      %s841 = sphi 0, %s839
      %s842 = sphi 0, %s841
      %s856 = sphi 0, %s842
      %s860 = sphi 0, %s860
      %s862 = sphi 0, %s860
      %s863 = sphi 0, %s862
      %s877 = sphi 0, %s863
      %s881 = sphi 0, %s881
      %s883 = sphi 0, %s881
      %s884 = sphi 0, %s883
      %s898 = sphi 0, %s884
    $region4: #{tpu_custom_call.1} parent=1 // loop_header_branch
      %81 = sbr.rel (%p79) target = $region8
    $region5: #{tpu_custom_call.1} parent=1 // loop_body
      %s83 = ssub.s32 %s78, 1
      %s84 = ssub.s32 %s78, 2
      %s85 = sadd.s32 %s78, 1
      %s87 = sadd.s32 %s86, 1
      %p90 = scmp.eq.s32.totalorder %s78, 1
      %p91 = scmp.ne.s32.totalorder %s86, %s88
      %p92 = scmp.eq.s32.totalorder %s78, 0
      %p93 = por %p91, %p92
      %p94 = scmp.ne.s32.totalorder %s86, %s88
      %p95 = scmp.eq.s32.totalorder %s83, 1
      %p96 = por %p94, %p95
      %p97 = scmp.ne.s32.totalorder %s88, %s89
      %p98 = scmp.eq.s32.totalorder %s83, 0
      %p99 = por %p97, %p98
      %p100 = scmp.ne.s32.totalorder %s88, %s89
      %p101 = scmp.eq.s32.totalorder %s84, 1
      %p102 = por %p100, %p101
      %p104 = scmp.ne.s32.totalorder %s89, %s103
      %p105 = scmp.eq.s32.totalorder %s84, 0
      %p106 = por %p104, %p105
      %s108 = sadd.s32 %s107, 1
      %p111 = scmp.eq.s32.totalorder %s78, 1
      %p112 = scmp.ne.s32.totalorder %s107, %s109
      %p113 = scmp.eq.s32.totalorder %s78, 0
      %p114 = por %p112, %p113
      %p115 = scmp.ne.s32.totalorder %s107, %s109
      %p116 = scmp.eq.s32.totalorder %s83, 1
      %p117 = por %p115, %p116
      %p118 = scmp.ne.s32.totalorder %s109, %s110
      %p119 = scmp.eq.s32.totalorder %s83, 0
      %p120 = por %p118, %p119
      %p121 = scmp.ne.s32.totalorder %s109, %s110
      %p122 = scmp.eq.s32.totalorder %s84, 1
      %p123 = por %p121, %p122
      %p125 = scmp.ne.s32.totalorder %s110, %s124
      %p126 = scmp.eq.s32.totalorder %s84, 0
      %p127 = por %p125, %p126
      %s129 = sadd.s32 %s128, 1
      %p132 = scmp.eq.s32.totalorder %s78, 1
      %p133 = scmp.ne.s32.totalorder %s128, %s130
      %p134 = scmp.eq.s32.totalorder %s78, 0
      %p135 = por %p133, %p134
      %p136 = scmp.ne.s32.totalorder %s128, %s130
      %p137 = scmp.eq.s32.totalorder %s83, 1
      %p138 = por %p136, %p137
      %p139 = scmp.ne.s32.totalorder %s130, %s131
      %p140 = scmp.eq.s32.totalorder %s83, 0
      %p141 = por %p139, %p140
      %p142 = scmp.ne.s32.totalorder %s130, %s131
      %p143 = scmp.eq.s32.totalorder %s84, 1
      %p144 = por %p142, %p143
      %p146 = scmp.ne.s32.totalorder %s131, %s145
      %p147 = scmp.eq.s32.totalorder %s84, 0
      %p148 = por %p146, %p147
      %s150 = sadd.s32 %s149, 1
      %p153 = scmp.eq.s32.totalorder %s78, 1
      %p154 = scmp.ne.s32.totalorder %s149, %s151
      %p155 = scmp.eq.s32.totalorder %s78, 0
      %p156 = por %p154, %p155
      %p157 = scmp.ne.s32.totalorder %s149, %s151
      %p158 = scmp.eq.s32.totalorder %s83, 1
      %p159 = por %p157, %p158
      %p160 = scmp.ne.s32.totalorder %s151, %s152
      %p161 = scmp.eq.s32.totalorder %s83, 0
      %p162 = por %p160, %p161
      %p163 = scmp.ne.s32.totalorder %s151, %s152
      %p164 = scmp.eq.s32.totalorder %s84, 1
      %p165 = por %p163, %p164
      %p167 = scmp.ne.s32.totalorder %s152, %s166
      %p168 = scmp.eq.s32.totalorder %s84, 0
      %p169 = por %p167, %p168
      %s171 = sadd.s32 %s170, 1
      %p174 = scmp.eq.s32.totalorder %s78, 1
      %p175 = scmp.ne.s32.totalorder %s170, %s172
      %p176 = scmp.eq.s32.totalorder %s78, 0
      %p177 = por %p175, %p176
      %p178 = scmp.ne.s32.totalorder %s170, %s172
      %p179 = scmp.eq.s32.totalorder %s83, 1
      %p180 = por %p178, %p179
      %p181 = scmp.ne.s32.totalorder %s172, %s173
      %p182 = scmp.eq.s32.totalorder %s83, 0
      %p183 = por %p181, %p182
      %p184 = scmp.ne.s32.totalorder %s172, %s173
      %p185 = scmp.eq.s32.totalorder %s84, 1
      %p186 = por %p184, %p185
      %p188 = scmp.ne.s32.totalorder %s173, %s187
      %p189 = scmp.eq.s32.totalorder %s84, 0
      %p190 = por %p188, %p189
      %s191 = ssub.s32 %s78, %s85
      %p192 = scmp.eq.s32.totalorder %s191, 0
      %s194 = sadd.s32 %s193, 1
      %s195 = scalar_select %p192, %s193, %s194
      %p198 = pneg %p192
      %p199 = scmp.eq.s32.totalorder %s78, 1
      %p200 = por %p198, %p199
      %p201 = scmp.ne.s32.totalorder %s193, %s196
      %p202 = scmp.eq.s32.totalorder %s78, 0
      %p203 = por %p201, %p202
      %p204 = scmp.ne.s32.totalorder %s193, %s196
      %p205 = scmp.eq.s32.totalorder %s83, 1
      %p206 = por %p204, %p205
      %p207 = scmp.ne.s32.totalorder %s196, %s197
      %p208 = scmp.eq.s32.totalorder %s83, 0
      %p209 = por %p207, %p208
      %p210 = scmp.ne.s32.totalorder %s196, %s197
      %p211 = scmp.eq.s32.totalorder %s84, 1
      %p212 = por %p210, %p211
      %p214 = scmp.ne.s32.totalorder %s197, %s213
      %p215 = scmp.eq.s32.totalorder %s84, 0
      %p216 = por %p214, %p215
      %s217 = ssub.s32 %s78, %s85
      %p218 = scmp.eq.s32.totalorder %s217, 0
      %s220 = sadd.s32 %s219, 1
      %s221 = scalar_select %p218, %s219, %s220
      %p224 = pneg %p218
      %p225 = scmp.eq.s32.totalorder %s78, 1
      %p226 = por %p224, %p225
      %p227 = scmp.ne.s32.totalorder %s219, %s222
      %p228 = scmp.eq.s32.totalorder %s78, 0
      %p229 = por %p227, %p228
      %p230 = scmp.ne.s32.totalorder %s219, %s222
      %p231 = scmp.eq.s32.totalorder %s83, 1
      %p232 = por %p230, %p231
      %p233 = scmp.ne.s32.totalorder %s222, %s223
      %p234 = scmp.eq.s32.totalorder %s83, 0
      %p235 = por %p233, %p234
      %p236 = scmp.ne.s32.totalorder %s222, %s223
      %p237 = scmp.eq.s32.totalorder %s84, 1
      %p238 = por %p236, %p237
      %p240 = scmp.ne.s32.totalorder %s223, %s239
      %p241 = scmp.eq.s32.totalorder %s84, 0
      %p242 = por %p240, %p241
      %s243 = ssub.s32 %s78, %s85
      %p244 = scmp.eq.s32.totalorder %s243, 0
      %s246 = sadd.s32 %s245, 1
      %s247 = scalar_select %p244, %s245, %s246
      %p250 = pneg %p244
      %p251 = scmp.eq.s32.totalorder %s78, 1
      %p252 = por %p250, %p251
      %p253 = scmp.ne.s32.totalorder %s245, %s248
      %p254 = scmp.eq.s32.totalorder %s78, 0
      %p255 = por %p253, %p254
      %p256 = scmp.ne.s32.totalorder %s245, %s248
      %p257 = scmp.eq.s32.totalorder %s83, 1
      %p258 = por %p256, %p257
      %p259 = scmp.ne.s32.totalorder %s248, %s249
      %p260 = scmp.eq.s32.totalorder %s83, 0
      %p261 = por %p259, %p260
      %p262 = scmp.ne.s32.totalorder %s248, %s249
      %p263 = scmp.eq.s32.totalorder %s84, 1
      %p264 = por %p262, %p263
      %p266 = scmp.ne.s32.totalorder %s249, %s265
      %p267 = scmp.eq.s32.totalorder %s84, 0
      %p268 = por %p266, %p267
      %s269 = ssub.s32 %s78, %s85
      %p270 = scmp.eq.s32.totalorder %s269, 0
      %s272 = sadd.s32 %s271, 1
      %s273 = scalar_select %p270, %s271, %s272
      %p276 = pneg %p270
      %p277 = scmp.eq.s32.totalorder %s78, 1
      %p278 = por %p276, %p277
      %p279 = scmp.ne.s32.totalorder %s271, %s274
      %p280 = scmp.eq.s32.totalorder %s78, 0
      %p281 = por %p279, %p280
      %p282 = scmp.ne.s32.totalorder %s271, %s274
      %p283 = scmp.eq.s32.totalorder %s83, 1
      %p284 = por %p282, %p283
      %p285 = scmp.ne.s32.totalorder %s274, %s275
      %p286 = scmp.eq.s32.totalorder %s83, 0
      %p287 = por %p285, %p286
      %p288 = scmp.ne.s32.totalorder %s274, %s275
      %p289 = scmp.eq.s32.totalorder %s84, 1
      %p290 = por %p288, %p289
      %p292 = scmp.ne.s32.totalorder %s275, %s291
      %p293 = scmp.eq.s32.totalorder %s84, 0
      %p294 = por %p292, %p293
      %s295 = ssub.s32 %s78, %s85
      %p296 = scmp.eq.s32.totalorder %s295, 0
      %s298 = sadd.s32 %s297, 1
      %s299 = scalar_select %p296, %s297, %s298
      %p302 = pneg %p296
      %p303 = scmp.eq.s32.totalorder %s78, 1
      %p304 = por %p302, %p303
      %p305 = scmp.ne.s32.totalorder %s297, %s300
      %p306 = scmp.eq.s32.totalorder %s78, 0
      %p307 = por %p305, %p306
      %p308 = scmp.ne.s32.totalorder %s297, %s300
      %p309 = scmp.eq.s32.totalorder %s83, 1
      %p310 = por %p308, %p309
      %p311 = scmp.ne.s32.totalorder %s300, %s301
      %p312 = scmp.eq.s32.totalorder %s83, 0
      %p313 = por %p311, %p312
      %p314 = scmp.ne.s32.totalorder %s300, %s301
      %p315 = scmp.eq.s32.totalorder %s84, 1
      %p316 = por %p314, %p315
      %p318 = scmp.ne.s32.totalorder %s301, %s317
      %p319 = scmp.eq.s32.totalorder %s84, 0
      %p320 = por %p318, %p319
      %s321 = ssub.s32 %s78, %s85
      %p322 = scmp.eq.s32.totalorder %s321, 0
      %s324 = sadd.s32 %s323, 1
      %s325 = scalar_select %p322, %s323, %s324
      %p328 = pneg %p322
      %p329 = scmp.eq.s32.totalorder %s78, 1
      %p330 = por %p328, %p329
      %p331 = scmp.ne.s32.totalorder %s323, %s326
      %p332 = scmp.eq.s32.totalorder %s78, 0
      %p333 = por %p331, %p332
      %p334 = scmp.ne.s32.totalorder %s323, %s326
      %p335 = scmp.eq.s32.totalorder %s83, 1
      %p336 = por %p334, %p335
      %p337 = scmp.ne.s32.totalorder %s326, %s327
      %p338 = scmp.eq.s32.totalorder %s83, 0
      %p339 = por %p337, %p338
      %p340 = scmp.ne.s32.totalorder %s326, %s327
      %p341 = scmp.eq.s32.totalorder %s84, 1
      %p342 = por %p340, %p341
      %p344 = scmp.ne.s32.totalorder %s327, %s343
      %p345 = scmp.eq.s32.totalorder %s84, 0
      %p346 = por %p344, %p345
      %s347 = ssub.s32 %s78, %s85
      %p348 = scmp.eq.s32.totalorder %s347, 0
      %s350 = sadd.s32 %s349, 1
      %s351 = scalar_select %p348, %s349, %s350
      %p354 = pneg %p348
      %p355 = scmp.eq.s32.totalorder %s78, 1
      %p356 = por %p354, %p355
      %p357 = scmp.ne.s32.totalorder %s349, %s352
      %p358 = scmp.eq.s32.totalorder %s78, 0
      %p359 = por %p357, %p358
      %p360 = scmp.ne.s32.totalorder %s349, %s352
      %p361 = scmp.eq.s32.totalorder %s83, 1
      %p362 = por %p360, %p361
      %p363 = scmp.ne.s32.totalorder %s352, %s353
      %p364 = scmp.eq.s32.totalorder %s83, 0
      %p365 = por %p363, %p364
      %p366 = scmp.ne.s32.totalorder %s352, %s353
      %p367 = scmp.eq.s32.totalorder %s84, 1
      %p368 = por %p366, %p367
      %p370 = scmp.ne.s32.totalorder %s353, %s369
      %p371 = scmp.eq.s32.totalorder %s84, 0
      %p372 = por %p370, %p371
      %s373 = ssub.s32 %s78, %s85
      %p374 = scmp.eq.s32.totalorder %s373, 0
      %s376 = sadd.s32 %s375, 1
      %s377 = scalar_select %p374, %s375, %s376
      %p380 = pneg %p374
      %p381 = scmp.eq.s32.totalorder %s78, 1
      %p382 = por %p380, %p381
      %p383 = scmp.ne.s32.totalorder %s375, %s378
      %p384 = scmp.eq.s32.totalorder %s78, 0
      %p385 = por %p383, %p384
      %p386 = scmp.ne.s32.totalorder %s375, %s378
      %p387 = scmp.eq.s32.totalorder %s83, 1
      %p388 = por %p386, %p387
      %p389 = scmp.ne.s32.totalorder %s378, %s379
      %p390 = scmp.eq.s32.totalorder %s83, 0
      %p391 = por %p389, %p390
      %p392 = scmp.ne.s32.totalorder %s378, %s379
      %p393 = scmp.eq.s32.totalorder %s84, 1
      %p394 = por %p392, %p393
      %p396 = scmp.ne.s32.totalorder %s379, %s395
      %p397 = scmp.eq.s32.totalorder %s84, 0
      %p398 = por %p396, %p397
      %s399 = ssub.s32 %s78, %s85
      %p400 = scmp.eq.s32.totalorder %s399, 0
      %s402 = sadd.s32 %s401, 1
      %s403 = scalar_select %p400, %s401, %s402
      %p406 = pneg %p400
      %p407 = scmp.eq.s32.totalorder %s78, 1
      %p408 = por %p406, %p407
      %p409 = scmp.ne.s32.totalorder %s401, %s404
      %p410 = scmp.eq.s32.totalorder %s78, 0
      %p411 = por %p409, %p410
      %p412 = scmp.ne.s32.totalorder %s401, %s404
      %p413 = scmp.eq.s32.totalorder %s83, 1
      %p414 = por %p412, %p413
      %p415 = scmp.ne.s32.totalorder %s404, %s405
      %p416 = scmp.eq.s32.totalorder %s83, 0
      %p417 = por %p415, %p416
      %p418 = scmp.ne.s32.totalorder %s404, %s405
      %p419 = scmp.eq.s32.totalorder %s84, 1
      %p420 = por %p418, %p419
      %p422 = scmp.ne.s32.totalorder %s405, %s421
      %p423 = scmp.eq.s32.totalorder %s84, 0
      %p424 = por %p422, %p423
      %s425 = ssub.s32 %s78, %s85
      %p426 = scmp.eq.s32.totalorder %s425, 0
      %s428 = sadd.s32 %s427, 1
      %s429 = scalar_select %p426, %s427, %s428
      %p432 = pneg %p426
      %p433 = scmp.eq.s32.totalorder %s78, 1
      %p434 = por %p432, %p433
      %p435 = scmp.ne.s32.totalorder %s427, %s430
      %p436 = scmp.eq.s32.totalorder %s78, 0
      %p437 = por %p435, %p436
      %p438 = scmp.ne.s32.totalorder %s427, %s430
      %p439 = scmp.eq.s32.totalorder %s83, 1
      %p440 = por %p438, %p439
      %p441 = scmp.ne.s32.totalorder %s430, %s431
      %p442 = scmp.eq.s32.totalorder %s83, 0
      %p443 = por %p441, %p442
      %p444 = scmp.ne.s32.totalorder %s430, %s431
      %p445 = scmp.eq.s32.totalorder %s84, 1
      %p446 = por %p444, %p445
      %p448 = scmp.ne.s32.totalorder %s431, %s447
      %p449 = scmp.eq.s32.totalorder %s84, 0
      %p450 = por %p448, %p449
      %s451 = ssub.s32 %s78, %s85
      %p452 = scmp.eq.s32.totalorder %s451, 0
      %s454 = sadd.s32 %s453, 1
      %s455 = scalar_select %p452, %s453, %s454
      %p458 = pneg %p452
      %p459 = scmp.eq.s32.totalorder %s78, 1
      %p460 = por %p458, %p459
      %p461 = scmp.ne.s32.totalorder %s453, %s456
      %p462 = scmp.eq.s32.totalorder %s78, 0
      %p463 = por %p461, %p462
      %p464 = scmp.ne.s32.totalorder %s453, %s456
      %p465 = scmp.eq.s32.totalorder %s83, 1
      %p466 = por %p464, %p465
      %p467 = scmp.ne.s32.totalorder %s456, %s457
      %p468 = scmp.eq.s32.totalorder %s83, 0
      %p469 = por %p467, %p468
      %p470 = scmp.ne.s32.totalorder %s456, %s457
      %p471 = scmp.eq.s32.totalorder %s84, 1
      %p472 = por %p470, %p471
      %p474 = scmp.ne.s32.totalorder %s457, %s473
      %p475 = scmp.eq.s32.totalorder %s84, 0
      %p476 = por %p474, %p475
      %s477 = ssub.s32 %s78, %s85
      %p478 = scmp.eq.s32.totalorder %s477, 0
      %s480 = sadd.s32 %s479, 1
      %s481 = scalar_select %p478, %s479, %s480
      %p484 = pneg %p478
      %p485 = scmp.eq.s32.totalorder %s78, 1
      %p486 = por %p484, %p485
      %p487 = scmp.ne.s32.totalorder %s479, %s482
      %p488 = scmp.eq.s32.totalorder %s78, 0
      %p489 = por %p487, %p488
      %p490 = scmp.ne.s32.totalorder %s479, %s482
      %p491 = scmp.eq.s32.totalorder %s83, 1
      %p492 = por %p490, %p491
      %p493 = scmp.ne.s32.totalorder %s482, %s483
      %p494 = scmp.eq.s32.totalorder %s83, 0
      %p495 = por %p493, %p494
      %p496 = scmp.ne.s32.totalorder %s482, %s483
      %p497 = scmp.eq.s32.totalorder %s84, 1
      %p498 = por %p496, %p497
      %p500 = scmp.ne.s32.totalorder %s483, %s499
      %p501 = scmp.eq.s32.totalorder %s84, 0
      %p502 = por %p500, %p501
      %s504 = sadd.s32 %s503, 1
      %p507 = scmp.eq.s32.totalorder %s78, 1
      %p508 = scmp.ne.s32.totalorder %s503, %s505
      %p509 = scmp.eq.s32.totalorder %s78, 0
      %p510 = por %p508, %p509
      %p511 = scmp.ne.s32.totalorder %s503, %s505
      %p512 = scmp.eq.s32.totalorder %s83, 1
      %p513 = por %p511, %p512
      %p514 = scmp.ne.s32.totalorder %s505, %s506
      %p515 = scmp.eq.s32.totalorder %s83, 0
      %p516 = por %p514, %p515
      %p517 = scmp.ne.s32.totalorder %s505, %s506
      %p518 = scmp.eq.s32.totalorder %s84, 1
      %p519 = por %p517, %p518
      %p521 = scmp.ne.s32.totalorder %s506, %s520
      %p522 = scmp.eq.s32.totalorder %s84, 0
      %p523 = por %p521, %p522
      %s525 = sadd.s32 %s524, 1
      %p528 = scmp.eq.s32.totalorder %s78, 1
      %p529 = scmp.ne.s32.totalorder %s524, %s526
      %p530 = scmp.eq.s32.totalorder %s78, 0
      %p531 = por %p529, %p530
      %p532 = scmp.ne.s32.totalorder %s524, %s526
      %p533 = scmp.eq.s32.totalorder %s83, 1
      %p534 = por %p532, %p533
      %p535 = scmp.ne.s32.totalorder %s526, %s527
      %p536 = scmp.eq.s32.totalorder %s83, 0
      %p537 = por %p535, %p536
      %p538 = scmp.ne.s32.totalorder %s526, %s527
      %p539 = scmp.eq.s32.totalorder %s84, 1
      %p540 = por %p538, %p539
      %p542 = scmp.ne.s32.totalorder %s527, %s541
      %p543 = scmp.eq.s32.totalorder %s84, 0
      %p544 = por %p542, %p543
      %s546 = sadd.s32 %s545, 1
      %p549 = scmp.eq.s32.totalorder %s78, 1
      %p550 = scmp.ne.s32.totalorder %s545, %s547
      %p551 = scmp.eq.s32.totalorder %s78, 0
      %p552 = por %p550, %p551
      %p553 = scmp.ne.s32.totalorder %s545, %s547
      %p554 = scmp.eq.s32.totalorder %s83, 1
      %p555 = por %p553, %p554
      %p556 = scmp.ne.s32.totalorder %s547, %s548
      %p557 = scmp.eq.s32.totalorder %s83, 0
      %p558 = por %p556, %p557
      %p559 = scmp.ne.s32.totalorder %s547, %s548
      %p560 = scmp.eq.s32.totalorder %s84, 1
      %p561 = por %p559, %p560
      %p563 = scmp.ne.s32.totalorder %s548, %s562
      %p564 = scmp.eq.s32.totalorder %s84, 0
      %p565 = por %p563, %p564
      %s567 = sadd.s32 %s566, 1
      %p570 = scmp.eq.s32.totalorder %s78, 1
      %p571 = scmp.ne.s32.totalorder %s566, %s568
      %p572 = scmp.eq.s32.totalorder %s78, 0
      %p573 = por %p571, %p572
      %p574 = scmp.ne.s32.totalorder %s566, %s568
      %p575 = scmp.eq.s32.totalorder %s83, 1
      %p576 = por %p574, %p575
      %p577 = scmp.ne.s32.totalorder %s568, %s569
      %p578 = scmp.eq.s32.totalorder %s83, 0
      %p579 = por %p577, %p578
      %p580 = scmp.ne.s32.totalorder %s568, %s569
      %p581 = scmp.eq.s32.totalorder %s84, 1
      %p582 = por %p580, %p581
      %p584 = scmp.ne.s32.totalorder %s569, %s583
      %p585 = scmp.eq.s32.totalorder %s84, 0
      %p586 = por %p584, %p585
      %s588 = sadd.s32 %s587, 1
      %p591 = scmp.eq.s32.totalorder %s78, 1
      %p592 = scmp.ne.s32.totalorder %s587, %s589
      %p593 = scmp.eq.s32.totalorder %s78, 0
      %p594 = por %p592, %p593
      %p595 = scmp.ne.s32.totalorder %s587, %s589
      %p596 = scmp.eq.s32.totalorder %s83, 1
      %p597 = por %p595, %p596
      %p598 = scmp.ne.s32.totalorder %s589, %s590
      %p599 = scmp.eq.s32.totalorder %s83, 0
      %p600 = por %p598, %p599
      %p601 = scmp.ne.s32.totalorder %s589, %s590
      %p602 = scmp.eq.s32.totalorder %s84, 1
      %p603 = por %p601, %p602
      %p605 = scmp.ne.s32.totalorder %s590, %s604
      %p606 = scmp.eq.s32.totalorder %s84, 0
      %p607 = por %p605, %p606
      %s609 = sadd.s32 %s608, 1
      %p612 = scmp.eq.s32.totalorder %s78, 1
      %p613 = scmp.ne.s32.totalorder %s608, %s610
      %p614 = scmp.eq.s32.totalorder %s78, 0
      %p615 = por %p613, %p614
      %p616 = scmp.ne.s32.totalorder %s608, %s610
      %p617 = scmp.eq.s32.totalorder %s83, 1
      %p618 = por %p616, %p617
      %p619 = scmp.ne.s32.totalorder %s610, %s611
      %p620 = scmp.eq.s32.totalorder %s83, 0
      %p621 = por %p619, %p620
      %p622 = scmp.ne.s32.totalorder %s610, %s611
      %p623 = scmp.eq.s32.totalorder %s84, 1
      %p624 = por %p622, %p623
      %p626 = scmp.ne.s32.totalorder %s611, %s625
      %p627 = scmp.eq.s32.totalorder %s84, 0
      %p628 = por %p626, %p627
      %s630 = sadd.s32 %s629, 1
      %p633 = scmp.eq.s32.totalorder %s78, 1
      %p634 = scmp.ne.s32.totalorder %s629, %s631
      %p635 = scmp.eq.s32.totalorder %s78, 0
      %p636 = por %p634, %p635
      %p637 = scmp.ne.s32.totalorder %s629, %s631
      %p638 = scmp.eq.s32.totalorder %s83, 1
      %p639 = por %p637, %p638
      %p640 = scmp.ne.s32.totalorder %s631, %s632
      %p641 = scmp.eq.s32.totalorder %s83, 0
      %p642 = por %p640, %p641
      %p643 = scmp.ne.s32.totalorder %s631, %s632
      %p644 = scmp.eq.s32.totalorder %s84, 1
      %p645 = por %p643, %p644
      %p647 = scmp.ne.s32.totalorder %s632, %s646
      %p648 = scmp.eq.s32.totalorder %s84, 0
      %p649 = por %p647, %p648
      %s651 = sadd.s32 %s650, 1
      %p654 = scmp.eq.s32.totalorder %s78, 1
      %p655 = scmp.ne.s32.totalorder %s650, %s652
      %p656 = scmp.eq.s32.totalorder %s78, 0
      %p657 = por %p655, %p656
      %p658 = scmp.ne.s32.totalorder %s650, %s652
      %p659 = scmp.eq.s32.totalorder %s83, 1
      %p660 = por %p658, %p659
      %p661 = scmp.ne.s32.totalorder %s652, %s653
      %p662 = scmp.eq.s32.totalorder %s83, 0
      %p663 = por %p661, %p662
      %p664 = scmp.ne.s32.totalorder %s652, %s653
      %p665 = scmp.eq.s32.totalorder %s84, 1
      %p666 = por %p664, %p665
      %p668 = scmp.ne.s32.totalorder %s653, %s667
      %p669 = scmp.eq.s32.totalorder %s84, 0
      %p670 = por %p668, %p669
      %s672 = sadd.s32 %s671, 1
      %p675 = scmp.eq.s32.totalorder %s78, 1
      %p676 = scmp.ne.s32.totalorder %s671, %s673
      %p677 = scmp.eq.s32.totalorder %s78, 0
      %p678 = por %p676, %p677
      %p679 = scmp.ne.s32.totalorder %s671, %s673
      %p680 = scmp.eq.s32.totalorder %s83, 1
      %p681 = por %p679, %p680
      %p682 = scmp.ne.s32.totalorder %s673, %s674
      %p683 = scmp.eq.s32.totalorder %s83, 0
      %p684 = por %p682, %p683
      %p685 = scmp.ne.s32.totalorder %s673, %s674
      %p686 = scmp.eq.s32.totalorder %s84, 1
      %p687 = por %p685, %p686
      %p689 = scmp.ne.s32.totalorder %s674, %s688
      %p690 = scmp.eq.s32.totalorder %s84, 0
      %p691 = por %p689, %p690
      %s693 = sadd.s32 %s692, 1
      %p696 = scmp.eq.s32.totalorder %s78, 1
      %p697 = scmp.ne.s32.totalorder %s692, %s694
      %p698 = scmp.eq.s32.totalorder %s78, 0
      %p699 = por %p697, %p698
      %p700 = scmp.ne.s32.totalorder %s692, %s694
      %p701 = scmp.eq.s32.totalorder %s83, 1
      %p702 = por %p700, %p701
      %p703 = scmp.ne.s32.totalorder %s694, %s695
      %p704 = scmp.eq.s32.totalorder %s83, 0
      %p705 = por %p703, %p704
      %p706 = scmp.ne.s32.totalorder %s694, %s695
      %p707 = scmp.eq.s32.totalorder %s84, 1
      %p708 = por %p706, %p707
      %p710 = scmp.ne.s32.totalorder %s695, %s709
      %p711 = scmp.eq.s32.totalorder %s84, 0
      %p712 = por %p710, %p711
      %s714 = sadd.s32 %s713, 1
      %p717 = scmp.eq.s32.totalorder %s78, 1
      %p718 = scmp.ne.s32.totalorder %s713, %s715
      %p719 = scmp.eq.s32.totalorder %s78, 0
      %p720 = por %p718, %p719
      %p721 = scmp.ne.s32.totalorder %s713, %s715
      %p722 = scmp.eq.s32.totalorder %s83, 1
      %p723 = por %p721, %p722
      %p724 = scmp.ne.s32.totalorder %s715, %s716
      %p725 = scmp.eq.s32.totalorder %s83, 0
      %p726 = por %p724, %p725
      %p727 = scmp.ne.s32.totalorder %s715, %s716
      %p728 = scmp.eq.s32.totalorder %s84, 1
      %p729 = por %p727, %p728
      %p731 = scmp.ne.s32.totalorder %s716, %s730
      %p732 = scmp.eq.s32.totalorder %s84, 0
      %p733 = por %p731, %p732
      %s735 = sadd.s32 %s734, 1
      %p738 = scmp.eq.s32.totalorder %s78, 1
      %p739 = scmp.ne.s32.totalorder %s734, %s736
      %p740 = scmp.eq.s32.totalorder %s78, 0
      %p741 = por %p739, %p740
      %p742 = scmp.ne.s32.totalorder %s734, %s736
      %p743 = scmp.eq.s32.totalorder %s83, 1
      %p744 = por %p742, %p743
      %p745 = scmp.ne.s32.totalorder %s736, %s737
      %p746 = scmp.eq.s32.totalorder %s83, 0
      %p747 = por %p745, %p746
      %p748 = scmp.ne.s32.totalorder %s736, %s737
      %p749 = scmp.eq.s32.totalorder %s84, 1
      %p750 = por %p748, %p749
      %p752 = scmp.ne.s32.totalorder %s737, %s751
      %p753 = scmp.eq.s32.totalorder %s84, 0
      %p754 = por %p752, %p753
      %s756 = sadd.s32 %s755, 1
      %p759 = scmp.eq.s32.totalorder %s78, 1
      %p760 = scmp.ne.s32.totalorder %s755, %s757
      %p761 = scmp.eq.s32.totalorder %s78, 0
      %p762 = por %p760, %p761
      %p763 = scmp.ne.s32.totalorder %s755, %s757
      %p764 = scmp.eq.s32.totalorder %s83, 1
      %p765 = por %p763, %p764
      %p766 = scmp.ne.s32.totalorder %s757, %s758
      %p767 = scmp.eq.s32.totalorder %s83, 0
      %p768 = por %p766, %p767
      %p769 = scmp.ne.s32.totalorder %s757, %s758
      %p770 = scmp.eq.s32.totalorder %s84, 1
      %p771 = por %p769, %p770
      %p773 = scmp.ne.s32.totalorder %s758, %s772
      %p774 = scmp.eq.s32.totalorder %s84, 0
      %p775 = por %p773, %p774
      %s777 = sadd.s32 %s776, 1
      %p780 = scmp.eq.s32.totalorder %s78, 1
      %p781 = scmp.ne.s32.totalorder %s776, %s778
      %p782 = scmp.eq.s32.totalorder %s78, 0
      %p783 = por %p781, %p782
      %p784 = scmp.ne.s32.totalorder %s776, %s778
      %p785 = scmp.eq.s32.totalorder %s83, 1
      %p786 = por %p784, %p785
      %p787 = scmp.ne.s32.totalorder %s778, %s779
      %p788 = scmp.eq.s32.totalorder %s83, 0
      %p789 = por %p787, %p788
      %p790 = scmp.ne.s32.totalorder %s778, %s779
      %p791 = scmp.eq.s32.totalorder %s84, 1
      %p792 = por %p790, %p791
      %p794 = scmp.ne.s32.totalorder %s779, %s793
      %p795 = scmp.eq.s32.totalorder %s84, 0
      %p796 = por %p794, %p795
      %s798 = sadd.s32 %s797, 1
      %p801 = scmp.eq.s32.totalorder %s78, 1
      %p802 = scmp.ne.s32.totalorder %s797, %s799
      %p803 = scmp.eq.s32.totalorder %s78, 0
      %p804 = por %p802, %p803
      %p805 = scmp.ne.s32.totalorder %s797, %s799
      %p806 = scmp.eq.s32.totalorder %s83, 1
      %p807 = por %p805, %p806
      %p808 = scmp.ne.s32.totalorder %s799, %s800
      %p809 = scmp.eq.s32.totalorder %s83, 0
      %p810 = por %p808, %p809
      %p811 = scmp.ne.s32.totalorder %s799, %s800
      %p812 = scmp.eq.s32.totalorder %s84, 1
      %p813 = por %p811, %p812
      %p815 = scmp.ne.s32.totalorder %s800, %s814
      %p816 = scmp.eq.s32.totalorder %s84, 0
      %p817 = por %p815, %p816
      %s819 = sadd.s32 %s818, 1
      %p822 = scmp.eq.s32.totalorder %s78, 1
      %p823 = scmp.ne.s32.totalorder %s818, %s820
      %p824 = scmp.eq.s32.totalorder %s78, 0
      %p825 = por %p823, %p824
      %p826 = scmp.ne.s32.totalorder %s818, %s820
      %p827 = scmp.eq.s32.totalorder %s83, 1
      %p828 = por %p826, %p827
      %p829 = scmp.ne.s32.totalorder %s820, %s821
      %p830 = scmp.eq.s32.totalorder %s83, 0
      %p831 = por %p829, %p830
      %p832 = scmp.ne.s32.totalorder %s820, %s821
      %p833 = scmp.eq.s32.totalorder %s84, 1
      %p834 = por %p832, %p833
      %p836 = scmp.ne.s32.totalorder %s821, %s835
      %p837 = scmp.eq.s32.totalorder %s84, 0
      %p838 = por %p836, %p837
      %s840 = sadd.s32 %s839, 1
      %p843 = scmp.eq.s32.totalorder %s78, 1
      %p844 = scmp.ne.s32.totalorder %s839, %s841
      %p845 = scmp.eq.s32.totalorder %s78, 0
      %p846 = por %p844, %p845
      %p847 = scmp.ne.s32.totalorder %s839, %s841
      %p848 = scmp.eq.s32.totalorder %s83, 1
      %p849 = por %p847, %p848
      %p850 = scmp.ne.s32.totalorder %s841, %s842
      %p851 = scmp.eq.s32.totalorder %s83, 0
      %p852 = por %p850, %p851
      %p853 = scmp.ne.s32.totalorder %s841, %s842
      %p854 = scmp.eq.s32.totalorder %s84, 1
      %p855 = por %p853, %p854
      %p857 = scmp.ne.s32.totalorder %s842, %s856
      %p858 = scmp.eq.s32.totalorder %s84, 0
      %p859 = por %p857, %p858
      %s861 = sadd.s32 %s860, 1
      %p864 = scmp.eq.s32.totalorder %s78, 1
      %p865 = scmp.ne.s32.totalorder %s860, %s862
      %p866 = scmp.eq.s32.totalorder %s78, 0
      %p867 = por %p865, %p866
      %p868 = scmp.ne.s32.totalorder %s860, %s862
      %p869 = scmp.eq.s32.totalorder %s83, 1
      %p870 = por %p868, %p869
      %p871 = scmp.ne.s32.totalorder %s862, %s863
      %p872 = scmp.eq.s32.totalorder %s83, 0
      %p873 = por %p871, %p872
      %p874 = scmp.ne.s32.totalorder %s862, %s863
      %p875 = scmp.eq.s32.totalorder %s84, 1
      %p876 = por %p874, %p875
      %p878 = scmp.ne.s32.totalorder %s863, %s877
      %p879 = scmp.eq.s32.totalorder %s84, 0
      %p880 = por %p878, %p879
      %s882 = sadd.s32 %s881, 1
      %p885 = scmp.eq.s32.totalorder %s78, 1
      %p886 = scmp.ne.s32.totalorder %s881, %s883
      %p887 = scmp.eq.s32.totalorder %s78, 0
      %p888 = por %p886, %p887
      %p889 = scmp.ne.s32.totalorder %s881, %s883
      %p890 = scmp.eq.s32.totalorder %s83, 1
      %p891 = por %p889, %p890
      %p892 = scmp.ne.s32.totalorder %s883, %s884
      %p893 = scmp.eq.s32.totalorder %s83, 0
      %p894 = por %p892, %p893
      %p895 = scmp.ne.s32.totalorder %s883, %s884
      %p896 = scmp.eq.s32.totalorder %s84, 1
      %p897 = por %p895, %p896
      %p899 = scmp.ne.s32.totalorder %s884, %s898
      %p900 = scmp.eq.s32.totalorder %s84, 0
      %p901 = por %p899, %p900
      %p902 = scmp.le.s32.totalorder 1, %s78
      %p903 = scmp.lt.s32.totalorder %s78, 3
      %p904 = pnand %p902, %p903
      %p905 = pneg %p904
      // Predicated region
      $region9: #{tpu_custom_call.1} parent=5 // pred_check
        _
      $region10: #{tpu_custom_call.1} parent=5 // pred_check_branch
        %907 = sbr.rel (%p904) target = $region12
      $region11: #{tpu_custom_call.1} parent=5 // pred_region
        %s908 = ssub.s32 %s78, 1
        // Predicated region
        $region13: #{tpu_custom_call.1} parent=11 // pred_check
          %p909 = pneg %p99
        $region14: #{tpu_custom_call.1} parent=11 // pred_check_branch
          %911 = sbr.rel (%p909) target = $region16
        $region15: #{tpu_custom_call.1} parent=11 // pred_region
          _
        $region16: #{tpu_custom_call.1} parent=11 // pred_fallthru
          _
        // Predicated region
        $region17: #{tpu_custom_call.1} parent=11 // pred_check
          %p912 = pneg %p120
        $region18: #{tpu_custom_call.1} parent=11 // pred_check_branch
          %914 = sbr.rel (%p912) target = $region20
        $region19: #{tpu_custom_call.1} parent=11 // pred_region
          _
        $region20: #{tpu_custom_call.1} parent=11 // pred_fallthru
          _
        // Predicated region
        $region21: #{tpu_custom_call.1} parent=11 // pred_check
          %p915 = pneg %p141
        $region22: #{tpu_custom_call.1} parent=11 // pred_check_branch
          %917 = sbr.rel (%p915) target = $region24
        $region23: #{tpu_custom_call.1} parent=11 // pred_region
          _
        $region24: #{tpu_custom_call.1} parent=11 // pred_fallthru
          _
        // Predicated region
        $region25: #{tpu_custom_call.1} parent=11 // pred_check
          %p918 = pneg %p162
        $region26: #{tpu_custom_call.1} parent=11 // pred_check_branch
          %920 = sbr.rel (%p918) target = $region28
        $region27: #{tpu_custom_call.1} parent=11 // pred_region
          _
        $region28: #{tpu_custom_call.1} parent=11 // pred_fallthru
          _
        // Predicated region
        $region29: #{tpu_custom_call.1} parent=11 // pred_check
          %p921 = pneg %p183
        $region30: #{tpu_custom_call.1} parent=11 // pred_check_branch
          %923 = sbr.rel (%p921) target = $region32
        $region31: #{tpu_custom_call.1} parent=11 // pred_region
          _
        $region32: #{tpu_custom_call.1} parent=11 // pred_fallthru
          _
        // Predicated region
        $region33: #{tpu_custom_call.1} parent=11 // pred_check
          %p924 = pneg %p516
        $region34: #{tpu_custom_call.1} parent=11 // pred_check_branch
          %926 = sbr.rel (%p924) target = $region36
        $region35: #{tpu_custom_call.1} parent=11 // pred_region
          _
        $region36: #{tpu_custom_call.1} parent=11 // pred_fallthru
          _
        // Predicated region
        $region37: #{tpu_custom_call.1} parent=11 // pred_check
          %p927 = pneg %p537
        $region38: #{tpu_custom_call.1} parent=11 // pred_check_branch
          %929 = sbr.rel (%p927) target = $region40
        $region39: #{tpu_custom_call.1} parent=11 // pred_region
          _
        $region40: #{tpu_custom_call.1} parent=11 // pred_fallthru
          _
        // Predicated region
        $region41: #{tpu_custom_call.1} parent=11 // pred_check
          %p930 = pneg %p558
        $region42: #{tpu_custom_call.1} parent=11 // pred_check_branch
          %932 = sbr.rel (%p930) target = $region44
        $region43: #{tpu_custom_call.1} parent=11 // pred_region
          _
        $region44: #{tpu_custom_call.1} parent=11 // pred_fallthru
          _
        // Predicated region
        $region45: #{tpu_custom_call.1} parent=11 // pred_check
          %p933 = pneg %p579
        $region46: #{tpu_custom_call.1} parent=11 // pred_check_branch
          %935 = sbr.rel (%p933) target = $region48
        $region47: #{tpu_custom_call.1} parent=11 // pred_region
          _
        $region48: #{tpu_custom_call.1} parent=11 // pred_fallthru
          _
        // Predicated region
        $region49: #{tpu_custom_call.1} parent=11 // pred_check
          %p936 = pneg %p600
        $region50: #{tpu_custom_call.1} parent=11 // pred_check_branch
          %938 = sbr.rel (%p936) target = $region52
        $region51: #{tpu_custom_call.1} parent=11 // pred_region
          _
        $region52: #{tpu_custom_call.1} parent=11 // pred_fallthru
          _
        // Predicated region
        $region53: #{tpu_custom_call.1} parent=11 // pred_check
          %p939 = pneg %p621
        $region54: #{tpu_custom_call.1} parent=11 // pred_check_branch
          %941 = sbr.rel (%p939) target = $region56
        $region55: #{tpu_custom_call.1} parent=11 // pred_region
          _
        $region56: #{tpu_custom_call.1} parent=11 // pred_fallthru
          _
        // Predicated region
        $region57: #{tpu_custom_call.1} parent=11 // pred_check
          %p942 = pneg %p642
        $region58: #{tpu_custom_call.1} parent=11 // pred_check_branch
          %944 = sbr.rel (%p942) target = $region60
        $region59: #{tpu_custom_call.1} parent=11 // pred_region
          _
        $region60: #{tpu_custom_call.1} parent=11 // pred_fallthru
          _
        // Predicated region
        $region61: #{tpu_custom_call.1} parent=11 // pred_check
          %p945 = pneg %p663
        $region62: #{tpu_custom_call.1} parent=11 // pred_check_branch
          %947 = sbr.rel (%p945) target = $region64
        $region63: #{tpu_custom_call.1} parent=11 // pred_region
          _
        $region64: #{tpu_custom_call.1} parent=11 // pred_fallthru
          _
        // Predicated region
        $region65: #{tpu_custom_call.1} parent=11 // pred_check
          %p948 = pneg %p684
        $region66: #{tpu_custom_call.1} parent=11 // pred_check_branch
          %950 = sbr.rel (%p948) target = $region68
        $region67: #{tpu_custom_call.1} parent=11 // pred_region
          _
        $region68: #{tpu_custom_call.1} parent=11 // pred_fallthru
          _
        // Predicated region
        $region69: #{tpu_custom_call.1} parent=11 // pred_check
          %p951 = pneg %p705
        $region70: #{tpu_custom_call.1} parent=11 // pred_check_branch
          %953 = sbr.rel (%p951) target = $region72
        $region71: #{tpu_custom_call.1} parent=11 // pred_region
          _
        $region72: #{tpu_custom_call.1} parent=11 // pred_fallthru
          _
        // Predicated region
        $region73: #{tpu_custom_call.1} parent=11 // pred_check
          %p954 = pneg %p726
        $region74: #{tpu_custom_call.1} parent=11 // pred_check_branch
          %956 = sbr.rel (%p954) target = $region76
        $region75: #{tpu_custom_call.1} parent=11 // pred_region
          _
        $region76: #{tpu_custom_call.1} parent=11 // pred_fallthru
          _
        // Predicated region
        $region77: #{tpu_custom_call.1} parent=11 // pred_check
          %p957 = pneg %p747
        $region78: #{tpu_custom_call.1} parent=11 // pred_check_branch
          %959 = sbr.rel (%p957) target = $region80
        $region79: #{tpu_custom_call.1} parent=11 // pred_region
          _
        $region80: #{tpu_custom_call.1} parent=11 // pred_fallthru
          _
        // Predicated region
        $region81: #{tpu_custom_call.1} parent=11 // pred_check
          %p960 = pneg %p768
        $region82: #{tpu_custom_call.1} parent=11 // pred_check_branch
          %962 = sbr.rel (%p960) target = $region84
        $region83: #{tpu_custom_call.1} parent=11 // pred_region
          _
        $region84: #{tpu_custom_call.1} parent=11 // pred_fallthru
          _
        // Predicated region
        $region85: #{tpu_custom_call.1} parent=11 // pred_check
          %p963 = pneg %p789
        $region86: #{tpu_custom_call.1} parent=11 // pred_check_branch
          %965 = sbr.rel (%p963) target = $region88
        $region87: #{tpu_custom_call.1} parent=11 // pred_region
          _
        $region88: #{tpu_custom_call.1} parent=11 // pred_fallthru
          _
        // Predicated region
        $region89: #{tpu_custom_call.1} parent=11 // pred_check
          %p966 = pneg %p810
        $region90: #{tpu_custom_call.1} parent=11 // pred_check_branch
          %968 = sbr.rel (%p966) target = $region92
        $region91: #{tpu_custom_call.1} parent=11 // pred_region
          _
        $region92: #{tpu_custom_call.1} parent=11 // pred_fallthru
          _
        // Predicated region
        $region93: #{tpu_custom_call.1} parent=11 // pred_check
          %p969 = pneg %p831
        $region94: #{tpu_custom_call.1} parent=11 // pred_check_branch
          %971 = sbr.rel (%p969) target = $region96
        $region95: #{tpu_custom_call.1} parent=11 // pred_region
          _
        $region96: #{tpu_custom_call.1} parent=11 // pred_fallthru
          _
        // Predicated region
        $region97: #{tpu_custom_call.1} parent=11 // pred_check
          %p972 = pneg %p852
        $region98: #{tpu_custom_call.1} parent=11 // pred_check_branch
          %974 = sbr.rel (%p972) target = $region100
        $region99: #{tpu_custom_call.1} parent=11 // pred_region
          _
        $region100: #{tpu_custom_call.1} parent=11 // pred_fallthru
          _
        // Predicated region
        $region101: #{tpu_custom_call.1} parent=11 // pred_check
          %p975 = pneg %p873
        $region102: #{tpu_custom_call.1} parent=11 // pred_check_branch
          %977 = sbr.rel (%p975) target = $region104
        $region103: #{tpu_custom_call.1} parent=11 // pred_region
          _
        $region104: #{tpu_custom_call.1} parent=11 // pred_fallthru
          _
      $region12: #{tpu_custom_call.1} parent=5 // pred_fallthru
        _
      %p978 = scmp.lt.s32.totalorder %s78, 2
      // Predicated region
      $region105: #{tpu_custom_call.1} parent=5 // pred_check
        %p979 = pneg %p978
      $region106: #{tpu_custom_call.1} parent=5 // pred_check_branch
        %981 = sbr.rel (%p979) target = $region108
      $region107: #{tpu_custom_call.1} parent=5 // pred_region
        // Predicated region
        $region109: #{tpu_custom_call.1} parent=107 // pred_check
          %p982 = pneg %p203
        $region110: #{tpu_custom_call.1} parent=107 // pred_check_branch
          %984 = sbr.rel (%p982) target = $region112
        $region111: #{tpu_custom_call.1} parent=107 // pred_region
          %p985 = scmp.lt.s32.totalorder %s78, 1
          %s986 = scalar_select %p985, %s78, 1
          %s987 = smul.addr %s986, 48
          %s988 = smul.addr %s987, 4
          %s989 = scalar_lea.vmem %s11, %s988
        $region112: #{tpu_custom_call.1} parent=107 // pred_fallthru
          _
        // Predicated region
        $region113: #{tpu_custom_call.1} parent=107 // pred_check
          %p990 = pneg %p229
        $region114: #{tpu_custom_call.1} parent=107 // pred_check_branch
          %992 = sbr.rel (%p990) target = $region116
        $region115: #{tpu_custom_call.1} parent=107 // pred_region
          %p993 = scmp.lt.s32.totalorder %s78, 1
          %s994 = scalar_select %p993, %s78, 1
          %s995 = smul.addr %s994, 3
          %s996 = scalar_lea.vmem %s13, %s995
        $region116: #{tpu_custom_call.1} parent=107 // pred_fallthru
          _
        // Predicated region
        $region117: #{tpu_custom_call.1} parent=107 // pred_check
          %p997 = pneg %p255
        $region118: #{tpu_custom_call.1} parent=107 // pred_check_branch
          %999 = sbr.rel (%p997) target = $region120
        $region119: #{tpu_custom_call.1} parent=107 // pred_region
          %p1000 = scmp.lt.s32.totalorder %s78, 1
          %s1001 = scalar_select %p1000, %s78, 1
          %s1002 = smul.addr %s1001, 8
          %s1003 = smul.addr %s1002, 4
          %s1004 = scalar_lea.vmem %s15, %s1003
        $region120: #{tpu_custom_call.1} parent=107 // pred_fallthru
          _
        // Predicated region
        $region121: #{tpu_custom_call.1} parent=107 // pred_check
          %p1005 = pneg %p281
        $region122: #{tpu_custom_call.1} parent=107 // pred_check_branch
          %1007 = sbr.rel (%p1005) target = $region124
        $region123: #{tpu_custom_call.1} parent=107 // pred_region
          %p1008 = scmp.lt.s32.totalorder %s78, 1
          %s1009 = scalar_select %p1008, %s78, 1
          %s1010 = scalar_lea.vmem %s17, %s1009
        $region124: #{tpu_custom_call.1} parent=107 // pred_fallthru
          _
        // Predicated region
        $region125: #{tpu_custom_call.1} parent=107 // pred_check
          %p1011 = pneg %p307
        $region126: #{tpu_custom_call.1} parent=107 // pred_check_branch
          %1013 = sbr.rel (%p1011) target = $region128
        $region127: #{tpu_custom_call.1} parent=107 // pred_region
          %p1014 = scmp.lt.s32.totalorder %s78, 1
          %s1015 = scalar_select %p1014, %s78, 1
          %s1016 = scalar_lea.vmem %s19, %s1015
        $region128: #{tpu_custom_call.1} parent=107 // pred_fallthru
          _
        // Predicated region
        $region129: #{tpu_custom_call.1} parent=107 // pred_check
          %p1017 = pneg %p333
        $region130: #{tpu_custom_call.1} parent=107 // pred_check_branch
          %1019 = sbr.rel (%p1017) target = $region132
        $region131: #{tpu_custom_call.1} parent=107 // pred_region
          %p1020 = scmp.lt.s32.totalorder %s78, 1
          %s1021 = scalar_select %p1020, %s78, 1
          %s1022 = scalar_lea.vmem %s21, %s1021
        $region132: #{tpu_custom_call.1} parent=107 // pred_fallthru
          _
        // Predicated region
        $region133: #{tpu_custom_call.1} parent=107 // pred_check
          %p1023 = pneg %p359
        $region134: #{tpu_custom_call.1} parent=107 // pred_check_branch
          %1025 = sbr.rel (%p1023) target = $region136
        $region135: #{tpu_custom_call.1} parent=107 // pred_region
          %p1026 = scmp.lt.s32.totalorder %s78, 1
          %s1027 = scalar_select %p1026, %s78, 1
          %s1028 = smul.addr %s1027, 32
          %s1029 = smul.addr %s1028, 4
          %s1030 = scalar_lea.vmem %s23, %s1029
        $region136: #{tpu_custom_call.1} parent=107 // pred_fallthru
          _
        // Predicated region
        $region137: #{tpu_custom_call.1} parent=107 // pred_check
          %p1031 = pneg %p385
        $region138: #{tpu_custom_call.1} parent=107 // pred_check_branch
          %1033 = sbr.rel (%p1031) target = $region140
        $region139: #{tpu_custom_call.1} parent=107 // pred_region
          %p1034 = scmp.lt.s32.totalorder %s78, 1
          %s1035 = scalar_select %p1034, %s78, 1
          %s1036 = smul.addr %s1035, 2
          %s1037 = scalar_lea.vmem %s25, %s1036
        $region140: #{tpu_custom_call.1} parent=107 // pred_fallthru
          _
        // Predicated region
        $region141: #{tpu_custom_call.1} parent=107 // pred_check
          %p1038 = pneg %p411
        $region142: #{tpu_custom_call.1} parent=107 // pred_check_branch
          %1040 = sbr.rel (%p1038) target = $region144
        $region143: #{tpu_custom_call.1} parent=107 // pred_region
          %p1041 = scmp.lt.s32.totalorder %s78, 1
          %s1042 = scalar_select %p1041, %s78, 1
          %s1043 = smul.addr %s1042, 16
          %s1044 = smul.addr %s1043, 4
          %s1045 = scalar_lea.vmem %s27, %s1044
        $region144: #{tpu_custom_call.1} parent=107 // pred_fallthru
          _
        // Predicated region
        $region145: #{tpu_custom_call.1} parent=107 // pred_check
          %p1046 = pneg %p437
        $region146: #{tpu_custom_call.1} parent=107 // pred_check_branch
          %1048 = sbr.rel (%p1046) target = $region148
        $region147: #{tpu_custom_call.1} parent=107 // pred_region
          %p1049 = scmp.lt.s32.totalorder %s78, 1
          %s1050 = scalar_select %p1049, %s78, 1
          %s1051 = scalar_lea.vmem %s29, %s1050
        $region148: #{tpu_custom_call.1} parent=107 // pred_fallthru
          _
        // Predicated region
        $region149: #{tpu_custom_call.1} parent=107 // pred_check
          %p1052 = pneg %p463
        $region150: #{tpu_custom_call.1} parent=107 // pred_check_branch
          %1054 = sbr.rel (%p1052) target = $region152
        $region151: #{tpu_custom_call.1} parent=107 // pred_region
          %p1055 = scmp.lt.s32.totalorder %s78, 1
          %s1056 = scalar_select %p1055, %s78, 1
          %s1057 = scalar_lea.vmem %s31, %s1056
        $region152: #{tpu_custom_call.1} parent=107 // pred_fallthru
          _
        // Predicated region
        $region153: #{tpu_custom_call.1} parent=107 // pred_check
          %p1058 = pneg %p489
        $region154: #{tpu_custom_call.1} parent=107 // pred_check_branch
          %1060 = sbr.rel (%p1058) target = $region156
        $region155: #{tpu_custom_call.1} parent=107 // pred_region
          %p1061 = scmp.lt.s32.totalorder %s78, 1
          %s1062 = scalar_select %p1061, %s78, 1
          %s1063 = scalar_lea.vmem %s33, %s1062
        $region156: #{tpu_custom_call.1} parent=107 // pred_fallthru
          _
      $region108: #{tpu_custom_call.1} parent=5 // pred_fallthru
        _
      %p1064 = scmp.le.s32.totalorder 1, %s78
      %p1065 = scmp.lt.s32.totalorder %s78, 3
      %p1066 = pnand %p1064, %p1065
      %p1067 = pneg %p1066
      // Predicated region
      $region157: #{tpu_custom_call.1} parent=5 // pred_check
        _
      $region158: #{tpu_custom_call.1} parent=5 // pred_check_branch
        %1069 = sbr.rel (%p1066) target = $region160
      $region159: #{tpu_custom_call.1} parent=5 // pred_region
        %s1070 = ssub.s32 %s78, 1
        %p1071 = pneg %p99
        %p1072 = pneg %p96
        %p1073 = pneg %p120
        %p1074 = pneg %p117
        %p1075 = pneg %p141
        %p1076 = pneg %p138
        %p1077 = pneg %p162
        %p1078 = pneg %p159
        %p1079 = pneg %p183
        %p1080 = pneg %p180
        %p1081 = scmp.lt.s32.totalorder %s83, 1
        %s1082 = scalar_select %p1081, %s83, 1
        %s1083 = smul.addr %s1082, 48
        %s1084 = smul.addr %s1083, 4
        %s1085 = scalar_lea.vmem %s11, %s1084
        %p1086 = pneg %p209
        %p1087 = pneg %p206
        %p1088 = scmp.lt.s32.totalorder %s83, 1
        %s1089 = scalar_select %p1088, %s83, 1
        %s1090 = smul.addr %s1089, 3
        %s1091 = scalar_lea.vmem %s13, %s1090
        %p1092 = pneg %p235
        %p1093 = pneg %p232
        %p1094 = scmp.lt.s32.totalorder %s83, 1
        %s1095 = scalar_select %p1094, %s83, 1
        %s1096 = smul.addr %s1095, 8
        %s1097 = smul.addr %s1096, 4
        %s1098 = scalar_lea.vmem %s15, %s1097
        %p1099 = pneg %p261
        %p1100 = pneg %p258
        %p1101 = scmp.lt.s32.totalorder %s83, 1
        %s1102 = scalar_select %p1101, %s83, 1
        %s1103 = scalar_lea.vmem %s17, %s1102
        %p1104 = pneg %p287
        %p1105 = pneg %p284
        %p1106 = scmp.lt.s32.totalorder %s83, 1
        %s1107 = scalar_select %p1106, %s83, 1
        %s1108 = scalar_lea.vmem %s19, %s1107
        %p1109 = pneg %p313
        %p1110 = pneg %p310
        %p1111 = scmp.lt.s32.totalorder %s83, 1
        %s1112 = scalar_select %p1111, %s83, 1
        %s1113 = scalar_lea.vmem %s21, %s1112
        %p1114 = pneg %p339
        %p1115 = pneg %p336
        %p1116 = scmp.lt.s32.totalorder %s83, 1
        %s1117 = scalar_select %p1116, %s83, 1
        %s1118 = smul.addr %s1117, 32
        %s1119 = smul.addr %s1118, 4
        %s1120 = scalar_lea.vmem %s23, %s1119
        %p1121 = pneg %p365
        %p1122 = pneg %p362
        %p1123 = scmp.lt.s32.totalorder %s83, 1
        %s1124 = scalar_select %p1123, %s83, 1
        %s1125 = smul.addr %s1124, 2
        %s1126 = scalar_lea.vmem %s25, %s1125
        %p1127 = pneg %p391
        %p1128 = pneg %p388
        %p1129 = scmp.lt.s32.totalorder %s83, 1
        %s1130 = scalar_select %p1129, %s83, 1
        %s1131 = smul.addr %s1130, 16
        %s1132 = smul.addr %s1131, 4
        %s1133 = scalar_lea.vmem %s27, %s1132
        %p1134 = pneg %p417
        %p1135 = pneg %p414
        %p1136 = scmp.lt.s32.totalorder %s83, 1
        %s1137 = scalar_select %p1136, %s83, 1
        %s1138 = scalar_lea.vmem %s29, %s1137
        %p1139 = pneg %p443
        %p1140 = pneg %p440
        %p1141 = scmp.lt.s32.totalorder %s83, 1
        %s1142 = scalar_select %p1141, %s83, 1
        %s1143 = scalar_lea.vmem %s31, %s1142
        %p1144 = pneg %p469
        %p1145 = pneg %p466
        %p1146 = scmp.lt.s32.totalorder %s83, 1
        %s1147 = scalar_select %p1146, %s83, 1
        %s1148 = scalar_lea.vmem %s33, %s1147
        %p1149 = pneg %p495
        %p1150 = pneg %p492
        %p1151 = pneg %p516
        %p1152 = pneg %p513
        %p1153 = pneg %p537
        %p1154 = pneg %p534
        %p1155 = pneg %p558
        %p1156 = pneg %p555
        %p1157 = pneg %p579
        %p1158 = pneg %p576
        %p1159 = pneg %p600
        %p1160 = pneg %p597
        %p1161 = pneg %p621
        %p1162 = pneg %p618
        %p1163 = pneg %p642
        %p1164 = pneg %p639
        %p1165 = pneg %p663
        %p1166 = pneg %p660
        %p1167 = pneg %p684
        %p1168 = pneg %p681
        %p1169 = pneg %p705
        %p1170 = pneg %p702
        %p1171 = pneg %p726
        %p1172 = pneg %p723
        %p1173 = pneg %p747
        %p1174 = pneg %p744
        %p1175 = pneg %p768
        %p1176 = pneg %p765
        %p1177 = pneg %p789
        %p1178 = pneg %p786
        %p1179 = pneg %p810
        %p1180 = pneg %p807
        %p1181 = pneg %p831
        %p1182 = pneg %p828
        %p1183 = pneg %p852
        %p1184 = pneg %p849
        %p1185 = pneg %p873
        %p1186 = pneg %p870
        %p1187 = pneg %p894
        %p1188 = pneg %p891
        %p1189 = scmp.lt.s32.totalorder %s83, 1
        %s1190 = scalar_select %p1189, %s83, 1
        %s1191 = smul.addr %s1190, 48
        %s1192 = smul.addr %s1191, 4
        %s1193 = scalar_lea.vmem %s11, %s1192
        %p1194 = scmp.lt.s32.totalorder %s83, 1
        %s1195 = scalar_select %p1194, %s83, 1
        %s1196 = smul.addr %s1195, 3
        %s1197 = scalar_lea.vmem %s13, %s1196
        %p1198 = scmp.lt.s32.totalorder %s83, 1
        %s1199 = scalar_select %p1198, %s83, 1
        %s1200 = smul.addr %s1199, 8
        %s1201 = smul.addr %s1200, 4
        %s1202 = scalar_lea.vmem %s15, %s1201
        %p1203 = scmp.lt.s32.totalorder %s83, 1
        %s1204 = scalar_select %p1203, %s83, 1
        %s1205 = scalar_lea.vmem %s17, %s1204
        %p1206 = scmp.lt.s32.totalorder %s83, 1
        %s1207 = scalar_select %p1206, %s83, 1
        %s1208 = scalar_lea.vmem %s19, %s1207
        %p1209 = scmp.lt.s32.totalorder %s83, 1
        %s1210 = scalar_select %p1209, %s83, 1
        %s1211 = scalar_lea.vmem %s21, %s1210
        %p1212 = scmp.lt.s32.totalorder %s83, 1
        %s1213 = scalar_select %p1212, %s83, 1
        %s1214 = smul.addr %s1213, 32
        %s1215 = smul.addr %s1214, 4
        %s1216 = scalar_lea.vmem %s23, %s1215
        %p1217 = scmp.lt.s32.totalorder %s83, 1
        %s1218 = scalar_select %p1217, %s83, 1
        %s1219 = smul.addr %s1218, 2
        %s1220 = scalar_lea.vmem %s25, %s1219
        %p1221 = scmp.lt.s32.totalorder %s83, 1
        %s1222 = scalar_select %p1221, %s83, 1
        %s1223 = smul.addr %s1222, 16
        %s1224 = smul.addr %s1223, 4
        %s1225 = scalar_lea.vmem %s27, %s1224
        %p1226 = scmp.lt.s32.totalorder %s83, 1
        %s1227 = scalar_select %p1226, %s83, 1
        %s1228 = scalar_lea.vmem %s29, %s1227
        %p1229 = scmp.lt.s32.totalorder %s83, 1
        %s1230 = scalar_select %p1229, %s83, 1
        %s1231 = scalar_lea.vmem %s31, %s1230
        %p1232 = scmp.lt.s32.totalorder %s83, 1
        %s1233 = scalar_select %p1232, %s83, 1
        %s1234 = scalar_lea.vmem %s33, %s1233
        %p1236 = scmp.eq.s32.totalorder %s83, 0
        // Predicated region
        $region161: #{tpu_custom_call.1} parent=159 // pred_check
          %p1237 = pneg %p1236
        $region162: #{tpu_custom_call.1} parent=159 // pred_check_branch
          %1239 = sbr.rel (%p1237) target = $region164
        $region163: #{tpu_custom_call.1} parent=159 // pred_region
          %v1240 = vld [vmem:[%s1] sm:$0xff]
          %v1241 = vld [vmem:[%s1 + $0x8] sm:$0xff]
          %v1242 = vld [vmem:[%s5] sm:$0xf]
          %v1243 = vld [vmem:[%s5 + $0x4] sm:$0xf]
          %v1244 = vld [vmem:[%s5 + $0x8] sm:$0xf]
          %v1245 = vld [vmem:[%s5 + $0xc] sm:$0xf]
          %v1246 = vld [vmem:[%s5 + $0x10] sm:$0xf]
          %v1247 = vld [vmem:[%s5 + $0x14] sm:$0xf]
          %v1248 = vld [vmem:[%s5 + $0x18] sm:$0xf]
          %v1249 = vld [vmem:[%s5 + $0x1c] sm:$0xf]
          %v1250 = vpack.c.bf16 %v1241, %v1240
          %v1251 = vld [vmem:[%s7] sm:$0x1]
          %v1253 = vlaneseq
          %v1254 = vshrl.u32 %v1253, 7
          %v1255 = vsub.s32 0, %v1254
          %v1256 = vrot.slane %v1251, %v1255
          %v1266 = vunpack.c.l.b16 %v1242
          %v1267 = vunpack.c.l.b16 %v1243
          %v1268 = vunpack.c.l.b16 %v1244
          %v1269 = vunpack.c.l.b16 %v1245
          %v1270 = vunpack.c.l.b16 %v1246
          %v1271 = vunpack.c.l.b16 %v1247
          %v1272 = vunpack.c.l.b16 %v1248
          %v1273 = vunpack.c.l.b16 %v1249
          %v1274 = vpack.c.b16 %v1267, %v1266
          %v1275 = vpack.c.b16 %v1269, %v1268
          %v1276 = vpack.c.b16 %v1271, %v1270
          %v1277 = vpack.c.b16 %v1273, %v1272
          %vm1278 = vcmask 523264
          %v1280 = vsel %vm1278, %v1250, 0
          %v1283 = vsel %vm1278, %v1274, 0
          %v1286 = vsel %vm1278, %v1275, 0
          %v1289 = vsel %vm1278, %v1276, 0
          %v1292 = vsel %vm1278, %v1277, 0
          %1294 = vmatprep.subr.bf16.mxu0 0
          %1295 = vmatpush1.bf16.xpose.msra.mxu0 0
          %1296 = vmatprep.subr.bf16.mxu0 0
          %1297 = vmatpush1.bf16.xpose.msra.mxu0 0
          %1298 = vmatprep.subr.bf16.mxu0 0
          %1299 = vmatpush1.bf16.xpose.msra.mxu0 0
          %1300 = vmatprep.subr.bf16.mxu0 0
          %1301 = vmatpush1.bf16.xpose.msra.mxu0 0
          %1302 = vmatprep.subr.bf16.mxu0 0
          %1303 = vmatpush1.bf16.xpose.msra.mxu0 %v1292
          %1304 = vmatprep.subr.bf16.mxu0 0
          %1305 = vmatpush1.bf16.xpose.msra.mxu0 %v1289
          %1306 = vmatprep.subr.bf16.mxu0 0
          %1307 = vmatpush1.bf16.xpose.msra.mxu0 %v1286
          %1308 = vmatprep.subr.bf16.mxu0 0
          %1309 = vmatpush1.bf16.xpose.msra.mxu0 %v1283
          %1310 = vmatprep.subr.bf16.mxu0 0
          %1311 = vmatpush2.bf16.xpose.msra.mxu0 0
          %1312 = vmatprep.subr.bf16.mxu0 0
          %1313 = vmatpush2.bf16.xpose.msra.mxu0 0
          %1314 = vmatprep.subr.bf16.mxu0 0
          %1315 = vmatpush2.bf16.xpose.msra.mxu0 0
          %1316 = vmatprep.subr.bf16.mxu0 0
          %1317 = vmatpush2.bf16.xpose.msra.mxu0 0
          %1318 = vmatprep.subr.bf16.mxu0 0
          %1319 = vmatpush2.bf16.xpose.msra.mxu0 0
          %1320 = vmatprep.subr.bf16.mxu0 0
          %1321 = vmatpush2.bf16.xpose.msra.mxu0 0
          %1322 = vmatprep.subr.bf16.mxu0 0
          %1323 = vmatpush2.bf16.xpose.msra.mxu0 0
          %1324 = vmatprep.subr.bf16.mxu0 0
          %1325 = vmatpush2.bf16.xpose.msra.mxu0 0
          %1326 = vmatprep.mubr.bf16.mxu0 0
          %1327 = vmatmul.mubr.bf16.gmra.mxu0 %v1280
          %v1328 = vpop.f32.mrf.mxu0
          %v1329 = vadd.f32 %v1256, %v1328
          %v1330 = vpop.f32.mrf.mxu0
          %v1331 = vpop.f32.mrf.mxu0
          %v1332 = vadd.f32 %v1256, %v1331
          %v1333 = vpop.f32.mrf.mxu0
          %1334 = vdwg.mxu0
          %v1335 = vld [vmem:[%s3] sm:$0xff]
          %v1336 = vld [vmem:[%s3 + $0x8] sm:$0xff]
          %v1337 = vadd.f32 %v1329, %v1335
          %v1338 = vadd.f32 %v1332, %v1336
          %1339 = vst.msk [vmem:[#allocation2] sm:$0xff] %vm1278, %v1337
          %1340 = vst.msk [vmem:[#allocation2 + $0x8] sm:$0xff] %vm1278, %v1338
        $region164: #{tpu_custom_call.1} parent=159 // pred_fallthru
          _
        %v1341 = vld [vmem:[#allocation2] sm:$0xff]
        %v1342 = vld [vmem:[#allocation2 + $0x8] sm:$0xff]
        %v1343 = vld [vmem:[%s1193] sm:$0xf]
        %v1344 = vld [vmem:[%s1193 + $0x4] sm:$0xf]
        %v1345 = vld [vmem:[%s1193 + $0x8] sm:$0xf]
        %v1346 = vld [vmem:[%s1193 + $0xc] sm:$0xf]
        %v1347 = vld [vmem:[%s1193 + $0x10] sm:$0xf]
        %v1348 = vld [vmem:[%s1193 + $0x14] sm:$0xf]
        %v1349 = vld [vmem:[%s1193 + $0x18] sm:$0xf]
        %v1350 = vld [vmem:[%s1193 + $0x1c] sm:$0xf]
        %v1351 = vld [vmem:[%s1193 + $0x20] sm:$0xf]
        %v1352 = vld [vmem:[%s1193 + $0x24] sm:$0xf]
        %v1353 = vld [vmem:[%s1193 + $0x28] sm:$0xf]
        %v1354 = vld [vmem:[%s1193 + $0x2c] sm:$0xf]
        %v1355 = vld [vmem:[%s1193 + $0x30] sm:$0xf]
        %v1356 = vld [vmem:[%s1193 + $0x34] sm:$0xf]
        %v1357 = vld [vmem:[%s1193 + $0x38] sm:$0xf]
        %v1358 = vld [vmem:[%s1193 + $0x3c] sm:$0xf]
        %v1359 = vld [vmem:[%s1193 + $0x40] sm:$0xf]
        %v1360 = vld [vmem:[%s1193 + $0x44] sm:$0xf]
        %v1361 = vld [vmem:[%s1193 + $0x48] sm:$0xf]
        %v1362 = vld [vmem:[%s1193 + $0x4c] sm:$0xf]
        %v1363 = vld [vmem:[%s1193 + $0x50] sm:$0xf]
        %v1364 = vld [vmem:[%s1193 + $0x54] sm:$0xf]
        %v1365 = vld [vmem:[%s1193 + $0x58] sm:$0xf]
        %v1366 = vld [vmem:[%s1193 + $0x5c] sm:$0xf]
        %v1367 = vld [vmem:[%s1193 + $0x60] sm:$0xf]
        %v1368 = vld [vmem:[%s1193 + $0x64] sm:$0xf]
        %v1369 = vld [vmem:[%s1193 + $0x68] sm:$0xf]
        %v1370 = vld [vmem:[%s1193 + $0x6c] sm:$0xf]
        %v1371 = vld [vmem:[%s1193 + $0x70] sm:$0xf]
        %v1372 = vld [vmem:[%s1193 + $0x74] sm:$0xf]
        %v1373 = vld [vmem:[%s1193 + $0x78] sm:$0xf]
        %v1374 = vld [vmem:[%s1193 + $0x7c] sm:$0xf]
        %v1375 = vld [vmem:[%s1193 + $0x80] sm:$0xf]
        %v1376 = vld [vmem:[%s1193 + $0x84] sm:$0xf]
        %v1377 = vld [vmem:[%s1193 + $0x88] sm:$0xf]
        %v1378 = vld [vmem:[%s1193 + $0x8c] sm:$0xf]
        %v1379 = vld [vmem:[%s1193 + $0x90] sm:$0xf]
        %v1380 = vld [vmem:[%s1193 + $0x94] sm:$0xf]
        %v1381 = vld [vmem:[%s1193 + $0x98] sm:$0xf]
        %v1382 = vld [vmem:[%s1193 + $0x9c] sm:$0xf]
        %v1383 = vld [vmem:[%s1193 + $0xa0] sm:$0xf]
        %v1384 = vld [vmem:[%s1193 + $0xa4] sm:$0xf]
        %v1385 = vld [vmem:[%s1193 + $0xa8] sm:$0xf]
        %v1386 = vld [vmem:[%s1193 + $0xac] sm:$0xf]
        %v1387 = vld [vmem:[%s1193 + $0xb0] sm:$0xf]
        %v1388 = vld [vmem:[%s1193 + $0xb4] sm:$0xf]
        %v1389 = vld [vmem:[%s1193 + $0xb8] sm:$0xf]
        %v1390 = vld [vmem:[%s1193 + $0xbc] sm:$0xf]
        %v1391 = vpack.c.bf16 %v1342, %v1341
        %v1392 = vld [vmem:[%s1197] sm:$0x7]
        %v1394 = vlaneseq
        %v1395 = vshrl.u32 %v1394, 7
        %v1396 = vsub.s32 0, %v1395
        %v1397 = vrot.slane %v1392, %v1396
        %v1398 = vlaneseq
        %v1399 = vshrl.u32 %v1398, 7
        %v1400 = vsub.s32 1, %v1399
        %v1401 = vrot.slane %v1392, %v1400
        %v1402 = vlaneseq
        %v1403 = vshrl.u32 %v1402, 7
        %v1404 = vsub.s32 2, %v1403
        %v1405 = vrot.slane %v1392, %v1404
        %v1457 = vunpack.c.l.b16 %v1343
        %v1458 = vunpack.c.l.b16 %v1344
        %v1459 = vunpack.c.l.b16 %v1345
        %v1460 = vunpack.c.l.b16 %v1346
        %v1461 = vunpack.c.l.b16 %v1347
        %v1462 = vunpack.c.l.b16 %v1348
        %v1463 = vunpack.c.l.b16 %v1349
        %v1464 = vunpack.c.l.b16 %v1350
        %v1465 = vunpack.c.l.b16 %v1351
        %v1466 = vunpack.c.l.b16 %v1352
        %v1467 = vunpack.c.l.b16 %v1353
        %v1468 = vunpack.c.l.b16 %v1354
        %v1469 = vunpack.c.l.b16 %v1355
        %v1470 = vunpack.c.l.b16 %v1356
        %v1471 = vunpack.c.l.b16 %v1357
        %v1472 = vunpack.c.l.b16 %v1358
        %v1473 = vunpack.c.l.b16 %v1359
        %v1474 = vunpack.c.l.b16 %v1360
        %v1475 = vunpack.c.l.b16 %v1361
        %v1476 = vunpack.c.l.b16 %v1362
        %v1477 = vunpack.c.l.b16 %v1363
        %v1478 = vunpack.c.l.b16 %v1364
        %v1479 = vunpack.c.l.b16 %v1365
        %v1480 = vunpack.c.l.b16 %v1366
        %v1481 = vunpack.c.l.b16 %v1367
        %v1482 = vunpack.c.l.b16 %v1368
        %v1483 = vunpack.c.l.b16 %v1369
        %v1484 = vunpack.c.l.b16 %v1370
        %v1485 = vunpack.c.l.b16 %v1371
        %v1486 = vunpack.c.l.b16 %v1372
        %v1487 = vunpack.c.l.b16 %v1373
        %v1488 = vunpack.c.l.b16 %v1374
        %v1489 = vunpack.c.l.b16 %v1375
        %v1490 = vunpack.c.l.b16 %v1376
        %v1491 = vunpack.c.l.b16 %v1377
        %v1492 = vunpack.c.l.b16 %v1378
        %v1493 = vunpack.c.l.b16 %v1379
        %v1494 = vunpack.c.l.b16 %v1380
        %v1495 = vunpack.c.l.b16 %v1381
        %v1496 = vunpack.c.l.b16 %v1382
        %v1497 = vunpack.c.l.b16 %v1383
        %v1498 = vunpack.c.l.b16 %v1384
        %v1499 = vunpack.c.l.b16 %v1385
        %v1500 = vunpack.c.l.b16 %v1386
        %v1501 = vunpack.c.l.b16 %v1387
        %v1502 = vunpack.c.l.b16 %v1388
        %v1503 = vunpack.c.l.b16 %v1389
        %v1504 = vunpack.c.l.b16 %v1390
        %v1505 = vpack.c.b16 %v1458, %v1457
        %v1506 = vpack.c.b16 %v1460, %v1459
        %v1507 = vpack.c.b16 %v1462, %v1461
        %v1508 = vpack.c.b16 %v1464, %v1463
        %v1509 = vpack.c.b16 %v1466, %v1465
        %v1510 = vpack.c.b16 %v1468, %v1467
        %v1511 = vpack.c.b16 %v1470, %v1469
        %v1512 = vpack.c.b16 %v1472, %v1471
        %v1513 = vpack.c.b16 %v1474, %v1473
        %v1514 = vpack.c.b16 %v1476, %v1475
        %v1515 = vpack.c.b16 %v1478, %v1477
        %v1516 = vpack.c.b16 %v1480, %v1479
        %v1517 = vpack.c.b16 %v1482, %v1481
        %v1518 = vpack.c.b16 %v1484, %v1483
        %v1519 = vpack.c.b16 %v1486, %v1485
        %v1520 = vpack.c.b16 %v1488, %v1487
        %v1521 = vpack.c.b16 %v1490, %v1489
        %v1522 = vpack.c.b16 %v1492, %v1491
        %v1523 = vpack.c.b16 %v1494, %v1493
        %v1524 = vpack.c.b16 %v1496, %v1495
        %v1525 = vpack.c.b16 %v1498, %v1497
        %v1526 = vpack.c.b16 %v1500, %v1499
        %v1527 = vpack.c.b16 %v1502, %v1501
        %v1528 = vpack.c.b16 %v1504, %v1503
        %vm1529 = vcmask 523264
        %v1531 = vsel %vm1529, %v1391, 0
        %v1534 = vsel %vm1529, %v1505, 0
        %v1537 = vsel %vm1529, %v1506, 0
        %v1540 = vsel %vm1529, %v1507, 0
        %v1543 = vsel %vm1529, %v1508, 0
        %v1546 = vsel %vm1529, %v1509, 0
        %v1549 = vsel %vm1529, %v1510, 0
        %v1552 = vsel %vm1529, %v1511, 0
        %v1555 = vsel %vm1529, %v1512, 0
        %v1558 = vsel %vm1529, %v1513, 0
        %v1561 = vsel %vm1529, %v1514, 0
        %v1564 = vsel %vm1529, %v1515, 0
        %v1567 = vsel %vm1529, %v1516, 0
        %v1570 = vsel %vm1529, %v1517, 0
        %v1573 = vsel %vm1529, %v1518, 0
        %v1576 = vsel %vm1529, %v1519, 0
        %v1579 = vsel %vm1529, %v1520, 0
        %v1582 = vsel %vm1529, %v1521, 0
        %v1585 = vsel %vm1529, %v1522, 0
        %v1588 = vsel %vm1529, %v1523, 0
        %v1591 = vsel %vm1529, %v1524, 0
        %v1594 = vsel %vm1529, %v1525, 0
        %v1597 = vsel %vm1529, %v1526, 0
        %v1600 = vsel %vm1529, %v1527, 0
        %v1603 = vsel %vm1529, %v1528, 0
        %1605 = vmatprep.subr.bf16.mxu0 0
        %1606 = vmatpush1.bf16.xpose.msra.mxu0 %v1555
        %1607 = vmatprep.subr.bf16.mxu0 0
        %1608 = vmatpush1.bf16.xpose.msra.mxu0 %v1552
        %1609 = vmatprep.subr.bf16.mxu0 0
        %1610 = vmatpush1.bf16.xpose.msra.mxu0 %v1549
        %1611 = vmatprep.subr.bf16.mxu0 0
        %1612 = vmatpush1.bf16.xpose.msra.mxu0 %v1546
        %1613 = vmatprep.subr.bf16.mxu0 0
        %1614 = vmatpush1.bf16.xpose.msra.mxu0 %v1543
        %1615 = vmatprep.subr.bf16.mxu0 0
        %1616 = vmatpush1.bf16.xpose.msra.mxu0 %v1540
        %1617 = vmatprep.subr.bf16.mxu0 0
        %1618 = vmatpush1.bf16.xpose.msra.mxu0 %v1537
        %1619 = vmatprep.subr.bf16.mxu0 0
        %1620 = vmatpush1.bf16.xpose.msra.mxu0 %v1534
        %1621 = vmatprep.subr.bf16.mxu0 0
        %1622 = vmatpush2.bf16.xpose.msra.mxu0 %v1579
        %1623 = vmatprep.subr.bf16.mxu0 0
        %1624 = vmatpush2.bf16.xpose.msra.mxu0 %v1576
        %1625 = vmatprep.subr.bf16.mxu0 0
        %1626 = vmatpush2.bf16.xpose.msra.mxu0 %v1573
        %1627 = vmatprep.subr.bf16.mxu0 0
        %1628 = vmatpush2.bf16.xpose.msra.mxu0 %v1570
        %1629 = vmatprep.subr.bf16.mxu0 0
        %1630 = vmatpush2.bf16.xpose.msra.mxu0 %v1567
        %1631 = vmatprep.subr.bf16.mxu0 0
        %1632 = vmatpush2.bf16.xpose.msra.mxu0 %v1564
        %1633 = vmatprep.subr.bf16.mxu0 0
        %1634 = vmatpush2.bf16.xpose.msra.mxu0 %v1561
        %1635 = vmatprep.subr.bf16.mxu0 0
        %1636 = vmatpush2.bf16.xpose.msra.mxu0 %v1558
        %1637 = vmatprep.mubr.bf16.mxu0 0
        %1638 = vmatmul.mubr.bf16.gmra.mxu0 %v1531
        %v1639 = vpop.f32.mrf.mxu0
        %v1640 = vadd.f32 %v1397, %v1639
        %v1641 = vpop.f32.mrf.mxu0
        %v1642 = vadd.f32 %v1401, %v1641
        %v1643 = vpop.f32.mrf.mxu0
        %v1644 = vadd.f32 %v1397, %v1643
        %v1645 = vpop.f32.mrf.mxu0
        %v1646 = vadd.f32 %v1401, %v1645
        %1647 = vdwg.mxu0
        %1648 = vmatprep.subr.bf16.mxu0 0
        %1649 = vmatpush1.bf16.xpose.msra.mxu0 %v1603
        %1650 = vmatprep.subr.bf16.mxu0 0
        %1651 = vmatpush1.bf16.xpose.msra.mxu0 %v1600
        %1652 = vmatprep.subr.bf16.mxu0 0
        %1653 = vmatpush1.bf16.xpose.msra.mxu0 %v1597
        %1654 = vmatprep.subr.bf16.mxu0 0
        %1655 = vmatpush1.bf16.xpose.msra.mxu0 %v1594
        %1656 = vmatprep.subr.bf16.mxu0 0
        %1657 = vmatpush1.bf16.xpose.msra.mxu0 %v1591
        %1658 = vmatprep.subr.bf16.mxu0 0
        %1659 = vmatpush1.bf16.xpose.msra.mxu0 %v1588
        %1660 = vmatprep.subr.bf16.mxu0 0
        %1661 = vmatpush1.bf16.xpose.msra.mxu0 %v1585
        %1662 = vmatprep.subr.bf16.mxu0 0
        %1663 = vmatpush1.bf16.xpose.msra.mxu0 %v1582
        %1664 = vmatprep.subr.bf16.mxu0 0
        %1665 = vmatpush2.bf16.xpose.msra.mxu0 0
        %1666 = vmatprep.subr.bf16.mxu0 0
        %1667 = vmatpush2.bf16.xpose.msra.mxu0 0
        %1668 = vmatprep.subr.bf16.mxu0 0
        %1669 = vmatpush2.bf16.xpose.msra.mxu0 0
        %1670 = vmatprep.subr.bf16.mxu0 0
        %1671 = vmatpush2.bf16.xpose.msra.mxu0 0
        %1672 = vmatprep.subr.bf16.mxu0 0
        %1673 = vmatpush2.bf16.xpose.msra.mxu0 0
        %1674 = vmatprep.subr.bf16.mxu0 0
        %1675 = vmatpush2.bf16.xpose.msra.mxu0 0
        %1676 = vmatprep.subr.bf16.mxu0 0
        %1677 = vmatpush2.bf16.xpose.msra.mxu0 0
        %1678 = vmatprep.subr.bf16.mxu0 0
        %1679 = vmatpush2.bf16.xpose.msra.mxu0 0
        %1680 = vmatprep.mubr.bf16.mxu0 0
        %1681 = vmatmul.mubr.bf16.gmra.mxu0 %v1531
        %v1682 = vpop.f32.mrf.mxu0
        %v1683 = vadd.f32 %v1405, %v1682
        %v1684 = vpop.f32.mrf.mxu0
        %v1685 = vpop.f32.mrf.mxu0
        %v1686 = vadd.f32 %v1405, %v1685
        %v1687 = vpop.f32.mrf.mxu0
        %1688 = vdwg.mxu0
        %v1689 = vpack.c.bf16 %v1644, %v1640
        %v1690 = vpack.c.bf16 %v1646, %v1642
        %v1691 = vpack.c.bf16 %v1686, %v1683
        %v1692 = vld [vmem:[%s9] sm:$0x1]
        %v1693 = vld [vmem:[%s9 + $0x1] sm:$0x1]
        %v1694 = vld [vmem:[%s9 + $0x2] sm:$0x1]
        %v1695 = vld [vmem:[%s9 + $0x3] sm:$0x1]
        %v1696 = vpack.c.bf16 %v1692, %v1692
        %v1697 = vpack.c.bf16 %v1693, %v1693
        %v1698 = vpack.c.bf16 %v1694, %v1694
        %v1699 = vpack.c.bf16 %v1695, %v1695
        %v1701 = vpack.i.b16 %v1696, %v1696
        %v1703 = vlaneseq
        %v1704 = vshrl.u32 %v1703, 7
        %v1705 = vsub.s32 0, %v1704
        %v1706 = vrot.slane %v1701, %v1705
        %v1708 = vpack.i.b16 %v1697, %v1697
        %v1710 = vlaneseq
        %v1711 = vshrl.u32 %v1710, 7
        %v1712 = vsub.s32 0, %v1711
        %v1713 = vrot.slane %v1708, %v1712
        %v1715 = vpack.i.b16 %v1698, %v1698
        %v1717 = vlaneseq
        %v1718 = vshrl.u32 %v1717, 7
        %v1719 = vsub.s32 0, %v1718
        %v1720 = vrot.slane %v1715, %v1719
        %v1722 = vpack.i.b16 %v1699, %v1699
        %v1724 = vlaneseq
        %v1725 = vshrl.u32 %v1724, 7
        %v1726 = vsub.s32 0, %v1725
        %v1727 = vrot.slane %v1722, %v1726
        %v1728 = vmul.bf16 %v1689, %v1706
        %v1729 = vmul.bf16 %v1689, %v1713
        %v1730 = vmul.bf16 %v1689, %v1720
        %v1731 = vmul.bf16 %v1689, %v1727
        %v1736 = vunpack.c.l.b16 %v1728
        %v1737 = vunpack.c.h.b16 %v1728
        %v1738 = vunpack.c.l.b16 %v1729
        %v1739 = vunpack.c.h.b16 %v1729
        %v1740 = vunpack.c.l.b16 %v1730
        %v1741 = vunpack.c.h.b16 %v1730
        %v1742 = vunpack.c.l.b16 %v1731
        %v1743 = vunpack.c.h.b16 %v1731
        %v1744 = vpack.c.b16 %v1736, %v1736
        %v1745 = vpack.c.b16 %v1737, %v1737
        %v1746 = vpack.c.b16 %v1738, %v1738
        %v1747 = vpack.c.b16 %v1739, %v1739
        %v1748 = vpack.c.b16 %v1740, %v1740
        %v1749 = vpack.c.b16 %v1741, %v1741
        %v1750 = vpack.c.b16 %v1742, %v1742
        %v1751 = vpack.c.b16 %v1743, %v1743
        %v1761 = vunpack.c.l.b16 %v1690
        %v1762 = vunpack.c.h.b16 %v1690
        %v1763 = vpack.c.b16 %v1761, %v1761
        %v1764 = vpack.c.b16 %v1762, %v1762
        %v1767 = vmul.bf16 %v1691, %v1706
        %v1768 = vmul.bf16 %v1691, %v1713
        %v1769 = vmul.bf16 %v1691, %v1720
        %v1770 = vmul.bf16 %v1691, %v1727
        %v1775 = vunpack.c.l.b16 %v1767
        %v1776 = vunpack.c.h.b16 %v1767
        %v1777 = vunpack.c.l.b16 %v1768
        %v1778 = vunpack.c.h.b16 %v1768
        %v1779 = vunpack.c.l.b16 %v1769
        %v1780 = vunpack.c.h.b16 %v1769
        %v1781 = vunpack.c.l.b16 %v1770
        %v1782 = vunpack.c.h.b16 %v1770
        %v1783 = vpack.c.b16 %v1775, %v1775
        %v1784 = vpack.c.b16 %v1776, %v1776
        %v1785 = vpack.c.b16 %v1777, %v1777
        %v1786 = vpack.c.b16 %v1778, %v1778
        %v1787 = vpack.c.b16 %v1779, %v1779
        %v1788 = vpack.c.b16 %v1780, %v1780
        %v1789 = vpack.c.b16 %v1781, %v1781
        %v1790 = vpack.c.b16 %v1782, %v1782
        %1791 = vmatprep.subr.bf16.mxu0 0
        %1792 = vmatpush1.bf16.xpose.msra.mxu0 0
        %1793 = vmatprep.subr.bf16.mxu0 0
        %1794 = vmatpush1.bf16.xpose.msra.mxu0 0
        %1795 = vmatprep.subr.bf16.mxu0 0
        %1796 = vmatpush1.bf16.xpose.msra.mxu0 0
        %1797 = vmatprep.subr.bf16.mxu0 0
        %1798 = vmatpush1.bf16.xpose.msra.mxu0 0
        %1799 = vmatprep.subr.bf16.mxu0 0
        %1800 = vmatpush1.bf16.xpose.msra.mxu0 0
        %1801 = vmatprep.subr.bf16.mxu0 0
        %1802 = vmatpush1.bf16.xpose.msra.mxu0 0
        %1803 = vmatprep.subr.bf16.mxu0 0
        %1804 = vmatpush1.bf16.xpose.msra.mxu0 0
        %1805 = vmatprep.subr.bf16.mxu0 0
        %1806 = vmatpush1.bf16.xpose.msra.mxu0 %v1763
        %1807 = vmatprep.subr.bf16.mxu0 0
        %1808 = vmatpush2.bf16.xpose.msra.mxu0 0
        %1809 = vmatprep.subr.bf16.mxu0 0
        %1810 = vmatpush2.bf16.xpose.msra.mxu0 0
        %1811 = vmatprep.subr.bf16.mxu0 0
        %1812 = vmatpush2.bf16.xpose.msra.mxu0 0
        %1813 = vmatprep.subr.bf16.mxu0 0
        %1814 = vmatpush2.bf16.xpose.msra.mxu0 0
        %1815 = vmatprep.subr.bf16.mxu0 0
        %1816 = vmatpush2.bf16.xpose.msra.mxu0 0
        %1817 = vmatprep.subr.bf16.mxu0 0
        %1818 = vmatpush2.bf16.xpose.msra.mxu0 0
        %1819 = vmatprep.subr.bf16.mxu0 0
        %1820 = vmatpush2.bf16.xpose.msra.mxu0 0
        %1821 = vmatprep.subr.bf16.mxu0 0
        %1822 = vmatpush2.bf16.xpose.msra.mxu0 0
        %1823 = vmatprep.mubr.bf16.mxu0 0
        %1824 = vmatmul.mubr.bf16.gmra.mxu0 %v1744
        %v1825 = vpop.f32.mrf.mxu0
        %v1826 = vadd.f32 0.0, %v1825
        %v1827 = vpop.f32.mrf.mxu0
        %v1828 = vpop.f32.mrf.mxu0
        %v1829 = vpop.f32.mrf.mxu0
        %1830 = vdwg.mxu0
        %1831 = vmatprep.subr.bf16.mxu0 0
        %1832 = vmatpush1.bf16.xpose.msra.mxu0 0
        %1833 = vmatprep.subr.bf16.mxu0 0
        %1834 = vmatpush1.bf16.xpose.msra.mxu0 0
        %1835 = vmatprep.subr.bf16.mxu0 0
        %1836 = vmatpush1.bf16.xpose.msra.mxu0 0
        %1837 = vmatprep.subr.bf16.mxu0 0
        %1838 = vmatpush1.bf16.xpose.msra.mxu0 0
        %1839 = vmatprep.subr.bf16.mxu0 0
        %1840 = vmatpush1.bf16.xpose.msra.mxu0 0
        %1841 = vmatprep.subr.bf16.mxu0 0
        %1842 = vmatpush1.bf16.xpose.msra.mxu0 0
        %1843 = vmatprep.subr.bf16.mxu0 0
        %1844 = vmatpush1.bf16.xpose.msra.mxu0 0
        %1845 = vmatprep.subr.bf16.mxu0 0
        %1846 = vmatpush1.bf16.xpose.msra.mxu0 %v1764
        %1847 = vmatprep.subr.bf16.mxu0 0
        %1848 = vmatpush2.bf16.xpose.msra.mxu0 0
        %1849 = vmatprep.subr.bf16.mxu0 0
        %1850 = vmatpush2.bf16.xpose.msra.mxu0 0
        %1851 = vmatprep.subr.bf16.mxu0 0
        %1852 = vmatpush2.bf16.xpose.msra.mxu0 0
        %1853 = vmatprep.subr.bf16.mxu0 0
        %1854 = vmatpush2.bf16.xpose.msra.mxu0 0
        %1855 = vmatprep.subr.bf16.mxu0 0
        %1856 = vmatpush2.bf16.xpose.msra.mxu0 0
        %1857 = vmatprep.subr.bf16.mxu0 0
        %1858 = vmatpush2.bf16.xpose.msra.mxu0 0
        %1859 = vmatprep.subr.bf16.mxu0 0
        %1860 = vmatpush2.bf16.xpose.msra.mxu0 0
        %1861 = vmatprep.subr.bf16.mxu0 0
        %1862 = vmatpush2.bf16.xpose.msra.mxu0 0
        %1863 = vmatprep.mubr.bf16.mxu0 0
        %1864 = vmatmul.mubr.bf16.gmra.mxu0 %v1745
        %v1865 = vpop.f32.mrf.mxu0
        %v1866 = vadd.f32 0.0, %v1865
        %v1867 = vpop.f32.mrf.mxu0
        %v1868 = vpop.f32.mrf.mxu0
        %v1869 = vpop.f32.mrf.mxu0
        %1870 = vdwg.mxu0
        %1871 = vmatprep.subr.bf16.mxu0 0
        %1872 = vmatpush1.bf16.xpose.msra.mxu0 0
        %1873 = vmatprep.subr.bf16.mxu0 0
        %1874 = vmatpush1.bf16.xpose.msra.mxu0 0
        %1875 = vmatprep.subr.bf16.mxu0 0
        %1876 = vmatpush1.bf16.xpose.msra.mxu0 0
        %1877 = vmatprep.subr.bf16.mxu0 0
        %1878 = vmatpush1.bf16.xpose.msra.mxu0 0
        %1879 = vmatprep.subr.bf16.mxu0 0
        %1880 = vmatpush1.bf16.xpose.msra.mxu0 0
        %1881 = vmatprep.subr.bf16.mxu0 0
        %1882 = vmatpush1.bf16.xpose.msra.mxu0 0
        %1883 = vmatprep.subr.bf16.mxu0 0
        %1884 = vmatpush1.bf16.xpose.msra.mxu0 0
        %1885 = vmatprep.subr.bf16.mxu0 0
        %1886 = vmatpush1.bf16.xpose.msra.mxu0 %v1763
        %1887 = vmatprep.subr.bf16.mxu0 0
        %1888 = vmatpush2.bf16.xpose.msra.mxu0 0
        %1889 = vmatprep.subr.bf16.mxu0 0
        %1890 = vmatpush2.bf16.xpose.msra.mxu0 0
        %1891 = vmatprep.subr.bf16.mxu0 0
        %1892 = vmatpush2.bf16.xpose.msra.mxu0 0
        %1893 = vmatprep.subr.bf16.mxu0 0
        %1894 = vmatpush2.bf16.xpose.msra.mxu0 0
        %1895 = vmatprep.subr.bf16.mxu0 0
        %1896 = vmatpush2.bf16.xpose.msra.mxu0 0
        %1897 = vmatprep.subr.bf16.mxu0 0
        %1898 = vmatpush2.bf16.xpose.msra.mxu0 0
        %1899 = vmatprep.subr.bf16.mxu0 0
        %1900 = vmatpush2.bf16.xpose.msra.mxu0 0
        %1901 = vmatprep.subr.bf16.mxu0 0
        %1902 = vmatpush2.bf16.xpose.msra.mxu0 0
        %1903 = vmatprep.mubr.bf16.mxu0 0
        %1904 = vmatmul.mubr.bf16.gmra.mxu0 %v1746
        %v1905 = vpop.f32.mrf.mxu0
        %v1906 = vadd.f32 0.0, %v1905
        %v1907 = vpop.f32.mrf.mxu0
        %v1908 = vpop.f32.mrf.mxu0
        %v1909 = vpop.f32.mrf.mxu0
        %1910 = vdwg.mxu0
        %1911 = vmatprep.subr.bf16.mxu0 0
        %1912 = vmatpush1.bf16.xpose.msra.mxu0 0
        %1913 = vmatprep.subr.bf16.mxu0 0
        %1914 = vmatpush1.bf16.xpose.msra.mxu0 0
        %1915 = vmatprep.subr.bf16.mxu0 0
        %1916 = vmatpush1.bf16.xpose.msra.mxu0 0
        %1917 = vmatprep.subr.bf16.mxu0 0
        %1918 = vmatpush1.bf16.xpose.msra.mxu0 0
        %1919 = vmatprep.subr.bf16.mxu0 0
        %1920 = vmatpush1.bf16.xpose.msra.mxu0 0
        %1921 = vmatprep.subr.bf16.mxu0 0
        %1922 = vmatpush1.bf16.xpose.msra.mxu0 0
        %1923 = vmatprep.subr.bf16.mxu0 0
        %1924 = vmatpush1.bf16.xpose.msra.mxu0 0
        %1925 = vmatprep.subr.bf16.mxu0 0
        %1926 = vmatpush1.bf16.xpose.msra.mxu0 %v1764
        %1927 = vmatprep.subr.bf16.mxu0 0
        %1928 = vmatpush2.bf16.xpose.msra.mxu0 0
        %1929 = vmatprep.subr.bf16.mxu0 0
        %1930 = vmatpush2.bf16.xpose.msra.mxu0 0
        %1931 = vmatprep.subr.bf16.mxu0 0
        %1932 = vmatpush2.bf16.xpose.msra.mxu0 0
        %1933 = vmatprep.subr.bf16.mxu0 0
        %1934 = vmatpush2.bf16.xpose.msra.mxu0 0
        %1935 = vmatprep.subr.bf16.mxu0 0
        %1936 = vmatpush2.bf16.xpose.msra.mxu0 0
        %1937 = vmatprep.subr.bf16.mxu0 0
        %1938 = vmatpush2.bf16.xpose.msra.mxu0 0
        %1939 = vmatprep.subr.bf16.mxu0 0
        %1940 = vmatpush2.bf16.xpose.msra.mxu0 0
        %1941 = vmatprep.subr.bf16.mxu0 0
        %1942 = vmatpush2.bf16.xpose.msra.mxu0 0
        %1943 = vmatprep.mubr.bf16.mxu0 0
        %1944 = vmatmul.mubr.bf16.gmra.mxu0 %v1747
        %v1945 = vpop.f32.mrf.mxu0
        %v1946 = vadd.f32 0.0, %v1945
        %v1947 = vpop.f32.mrf.mxu0
        %v1948 = vpop.f32.mrf.mxu0
        %v1949 = vpop.f32.mrf.mxu0
        %1950 = vdwg.mxu0
        %1951 = vmatprep.subr.bf16.mxu0 0
        %1952 = vmatpush1.bf16.xpose.msra.mxu0 0
        %1953 = vmatprep.subr.bf16.mxu0 0
        %1954 = vmatpush1.bf16.xpose.msra.mxu0 0
        %1955 = vmatprep.subr.bf16.mxu0 0
        %1956 = vmatpush1.bf16.xpose.msra.mxu0 0
        %1957 = vmatprep.subr.bf16.mxu0 0
        %1958 = vmatpush1.bf16.xpose.msra.mxu0 0
        %1959 = vmatprep.subr.bf16.mxu0 0
        %1960 = vmatpush1.bf16.xpose.msra.mxu0 0
        %1961 = vmatprep.subr.bf16.mxu0 0
        %1962 = vmatpush1.bf16.xpose.msra.mxu0 0
        %1963 = vmatprep.subr.bf16.mxu0 0
        %1964 = vmatpush1.bf16.xpose.msra.mxu0 0
        %1965 = vmatprep.subr.bf16.mxu0 0
        %1966 = vmatpush1.bf16.xpose.msra.mxu0 %v1763
        %1967 = vmatprep.subr.bf16.mxu0 0
        %1968 = vmatpush2.bf16.xpose.msra.mxu0 0
        %1969 = vmatprep.subr.bf16.mxu0 0
        %1970 = vmatpush2.bf16.xpose.msra.mxu0 0
        %1971 = vmatprep.subr.bf16.mxu0 0
        %1972 = vmatpush2.bf16.xpose.msra.mxu0 0
        %1973 = vmatprep.subr.bf16.mxu0 0
        %1974 = vmatpush2.bf16.xpose.msra.mxu0 0
        %1975 = vmatprep.subr.bf16.mxu0 0
        %1976 = vmatpush2.bf16.xpose.msra.mxu0 0
        %1977 = vmatprep.subr.bf16.mxu0 0
        %1978 = vmatpush2.bf16.xpose.msra.mxu0 0
        %1979 = vmatprep.subr.bf16.mxu0 0
        %1980 = vmatpush2.bf16.xpose.msra.mxu0 0
        %1981 = vmatprep.subr.bf16.mxu0 0
        %1982 = vmatpush2.bf16.xpose.msra.mxu0 0
        %1983 = vmatprep.mubr.bf16.mxu0 0
        %1984 = vmatmul.mubr.bf16.gmra.mxu0 %v1748
        %v1985 = vpop.f32.mrf.mxu0
        %v1986 = vadd.f32 0.0, %v1985
        %v1987 = vpop.f32.mrf.mxu0
        %v1988 = vpop.f32.mrf.mxu0
        %v1989 = vpop.f32.mrf.mxu0
        %1990 = vdwg.mxu0
        %1991 = vmatprep.subr.bf16.mxu0 0
        %1992 = vmatpush1.bf16.xpose.msra.mxu0 0
        %1993 = vmatprep.subr.bf16.mxu0 0
        %1994 = vmatpush1.bf16.xpose.msra.mxu0 0
        %1995 = vmatprep.subr.bf16.mxu0 0
        %1996 = vmatpush1.bf16.xpose.msra.mxu0 0
        %1997 = vmatprep.subr.bf16.mxu0 0
        %1998 = vmatpush1.bf16.xpose.msra.mxu0 0
        %1999 = vmatprep.subr.bf16.mxu0 0
        %2000 = vmatpush1.bf16.xpose.msra.mxu0 0
        %2001 = vmatprep.subr.bf16.mxu0 0
        %2002 = vmatpush1.bf16.xpose.msra.mxu0 0
        %2003 = vmatprep.subr.bf16.mxu0 0
        %2004 = vmatpush1.bf16.xpose.msra.mxu0 0
        %2005 = vmatprep.subr.bf16.mxu0 0
        %2006 = vmatpush1.bf16.xpose.msra.mxu0 %v1764
        %2007 = vmatprep.subr.bf16.mxu0 0
        %2008 = vmatpush2.bf16.xpose.msra.mxu0 0
        %2009 = vmatprep.subr.bf16.mxu0 0
        %2010 = vmatpush2.bf16.xpose.msra.mxu0 0
        %2011 = vmatprep.subr.bf16.mxu0 0
        %2012 = vmatpush2.bf16.xpose.msra.mxu0 0
        %2013 = vmatprep.subr.bf16.mxu0 0
        %2014 = vmatpush2.bf16.xpose.msra.mxu0 0
        %2015 = vmatprep.subr.bf16.mxu0 0
        %2016 = vmatpush2.bf16.xpose.msra.mxu0 0
        %2017 = vmatprep.subr.bf16.mxu0 0
        %2018 = vmatpush2.bf16.xpose.msra.mxu0 0
        %2019 = vmatprep.subr.bf16.mxu0 0
        %2020 = vmatpush2.bf16.xpose.msra.mxu0 0
        %2021 = vmatprep.subr.bf16.mxu0 0
        %2022 = vmatpush2.bf16.xpose.msra.mxu0 0
        %2023 = vmatprep.mubr.bf16.mxu0 0
        %2024 = vmatmul.mubr.bf16.gmra.mxu0 %v1749
        %v2025 = vpop.f32.mrf.mxu0
        %v2026 = vadd.f32 0.0, %v2025
        %v2027 = vpop.f32.mrf.mxu0
        %v2028 = vpop.f32.mrf.mxu0
        %v2029 = vpop.f32.mrf.mxu0
        %2030 = vdwg.mxu0
        %2031 = vmatprep.subr.bf16.mxu0 0
        %2032 = vmatpush1.bf16.xpose.msra.mxu0 0
        %2033 = vmatprep.subr.bf16.mxu0 0
        %2034 = vmatpush1.bf16.xpose.msra.mxu0 0
        %2035 = vmatprep.subr.bf16.mxu0 0
        %2036 = vmatpush1.bf16.xpose.msra.mxu0 0
        %2037 = vmatprep.subr.bf16.mxu0 0
        %2038 = vmatpush1.bf16.xpose.msra.mxu0 0
        %2039 = vmatprep.subr.bf16.mxu0 0
        %2040 = vmatpush1.bf16.xpose.msra.mxu0 0
        %2041 = vmatprep.subr.bf16.mxu0 0
        %2042 = vmatpush1.bf16.xpose.msra.mxu0 0
        %2043 = vmatprep.subr.bf16.mxu0 0
        %2044 = vmatpush1.bf16.xpose.msra.mxu0 0
        %2045 = vmatprep.subr.bf16.mxu0 0
        %2046 = vmatpush1.bf16.xpose.msra.mxu0 %v1763
        %2047 = vmatprep.subr.bf16.mxu0 0
        %2048 = vmatpush2.bf16.xpose.msra.mxu0 0
        %2049 = vmatprep.subr.bf16.mxu0 0
        %2050 = vmatpush2.bf16.xpose.msra.mxu0 0
        %2051 = vmatprep.subr.bf16.mxu0 0
        %2052 = vmatpush2.bf16.xpose.msra.mxu0 0
        %2053 = vmatprep.subr.bf16.mxu0 0
        %2054 = vmatpush2.bf16.xpose.msra.mxu0 0
        %2055 = vmatprep.subr.bf16.mxu0 0
        %2056 = vmatpush2.bf16.xpose.msra.mxu0 0
        %2057 = vmatprep.subr.bf16.mxu0 0
        %2058 = vmatpush2.bf16.xpose.msra.mxu0 0
        %2059 = vmatprep.subr.bf16.mxu0 0
        %2060 = vmatpush2.bf16.xpose.msra.mxu0 0
        %2061 = vmatprep.subr.bf16.mxu0 0
        %2062 = vmatpush2.bf16.xpose.msra.mxu0 0
        %2063 = vmatprep.mubr.bf16.mxu0 0
        %2064 = vmatmul.mubr.bf16.gmra.mxu0 %v1750
        %v2065 = vpop.f32.mrf.mxu0
        %v2066 = vadd.f32 0.0, %v2065
        %v2067 = vpop.f32.mrf.mxu0
        %v2068 = vpop.f32.mrf.mxu0
        %v2069 = vpop.f32.mrf.mxu0
        %2070 = vdwg.mxu0
        %2071 = vmatprep.subr.bf16.mxu0 0
        %2072 = vmatpush1.bf16.xpose.msra.mxu0 0
        %2073 = vmatprep.subr.bf16.mxu0 0
        %2074 = vmatpush1.bf16.xpose.msra.mxu0 0
        %2075 = vmatprep.subr.bf16.mxu0 0
        %2076 = vmatpush1.bf16.xpose.msra.mxu0 0
        %2077 = vmatprep.subr.bf16.mxu0 0
        %2078 = vmatpush1.bf16.xpose.msra.mxu0 0
        %2079 = vmatprep.subr.bf16.mxu0 0
        %2080 = vmatpush1.bf16.xpose.msra.mxu0 0
        %2081 = vmatprep.subr.bf16.mxu0 0
        %2082 = vmatpush1.bf16.xpose.msra.mxu0 0
        %2083 = vmatprep.subr.bf16.mxu0 0
        %2084 = vmatpush1.bf16.xpose.msra.mxu0 0
        %2085 = vmatprep.subr.bf16.mxu0 0
        %2086 = vmatpush1.bf16.xpose.msra.mxu0 %v1764
        %2087 = vmatprep.subr.bf16.mxu0 0
        %2088 = vmatpush2.bf16.xpose.msra.mxu0 0
        %2089 = vmatprep.subr.bf16.mxu0 0
        %2090 = vmatpush2.bf16.xpose.msra.mxu0 0
        %2091 = vmatprep.subr.bf16.mxu0 0
        %2092 = vmatpush2.bf16.xpose.msra.mxu0 0
        %2093 = vmatprep.subr.bf16.mxu0 0
        %2094 = vmatpush2.bf16.xpose.msra.mxu0 0
        %2095 = vmatprep.subr.bf16.mxu0 0
        %2096 = vmatpush2.bf16.xpose.msra.mxu0 0
        %2097 = vmatprep.subr.bf16.mxu0 0
        %2098 = vmatpush2.bf16.xpose.msra.mxu0 0
        %2099 = vmatprep.subr.bf16.mxu0 0
        %2100 = vmatpush2.bf16.xpose.msra.mxu0 0
        %2101 = vmatprep.subr.bf16.mxu0 0
        %2102 = vmatpush2.bf16.xpose.msra.mxu0 0
        %2103 = vmatprep.mubr.bf16.mxu0 0
        %2104 = vmatmul.mubr.bf16.gmra.mxu0 %v1751
        %v2105 = vpop.f32.mrf.mxu0
        %v2106 = vadd.f32 0.0, %v2105
        %v2107 = vpop.f32.mrf.mxu0
        %v2108 = vpop.f32.mrf.mxu0
        %v2109 = vpop.f32.mrf.mxu0
        %2110 = vdwg.mxu0
        %v2111 = vmul.f32 %v1826, 0.25
        %v2112 = vmul.f32 %v1866, 0.25
        %v2113 = vmul.f32 %v1906, 0.25
        %v2114 = vmul.f32 %v1946, 0.25
        %v2115 = vmul.f32 %v1986, 0.25
        %v2116 = vmul.f32 %v2026, 0.25
        %v2117 = vmul.f32 %v2066, 0.25
        %v2118 = vmul.f32 %v2106, 0.25
        %vm2119 = vcmask 64512
        %v2120 = vsel %vm2119, %v2111, -inf
        %2121 = vmax.xlane.f32.xlu0 %v2120
        %v2122 = vpop.xlane.xlu0 %2121
        %v2123 = vsel %vm2119, %v2112, -inf
        %2124 = vmax.xlane.f32.xlu0 %v2123
        %v2125 = vpop.xlane.xlu0 %2124
        %v2126 = vsel %vm2119, %v2113, -inf
        %2127 = vmax.xlane.f32.xlu0 %v2126
        %v2128 = vpop.xlane.xlu0 %2127
        %v2129 = vsel %vm2119, %v2114, -inf
        %2130 = vmax.xlane.f32.xlu0 %v2129
        %v2131 = vpop.xlane.xlu0 %2130
        %v2132 = vsel %vm2119, %v2115, -inf
        %2133 = vmax.xlane.f32.xlu0 %v2132
        %v2134 = vpop.xlane.xlu0 %2133
        %v2135 = vsel %vm2119, %v2116, -inf
        %2136 = vmax.xlane.f32.xlu0 %v2135
        %v2137 = vpop.xlane.xlu0 %2136
        %v2138 = vsel %vm2119, %v2117, -inf
        %2139 = vmax.xlane.f32.xlu0 %v2138
        %v2140 = vpop.xlane.xlu0 %2139
        %v2141 = vsel %vm2119, %v2118, -inf
        %2142 = vmax.xlane.f32.xlu0 %v2141
        %v2143 = vpop.xlane.xlu0 %2142
        %v2144 = vsub.f32 %v2111, %v2122
        %v2145 = vsub.f32 %v2112, %v2125
        %v2146 = vsub.f32 %v2113, %v2128
        %v2147 = vsub.f32 %v2114, %v2131
        %v2148 = vsub.f32 %v2115, %v2134
        %v2149 = vsub.f32 %v2116, %v2137
        %v2150 = vsub.f32 %v2117, %v2140
        %v2151 = vsub.f32 %v2118, %v2143
        %v2152 = vmul.f32 %v2144, 1.442695
        %v2153 = vpow.pop %v2152
        %v2154 = vmul.f32 %v2145, 1.442695
        %v2155 = vpow.pop %v2154
        %v2156 = vmul.f32 %v2146, 1.442695
        %v2157 = vpow.pop %v2156
        %v2158 = vmul.f32 %v2147, 1.442695
        %v2159 = vpow.pop %v2158
        %v2160 = vmul.f32 %v2148, 1.442695
        %v2161 = vpow.pop %v2160
        %v2162 = vmul.f32 %v2149, 1.442695
        %v2163 = vpow.pop %v2162
        %v2164 = vmul.f32 %v2150, 1.442695
        %v2165 = vpow.pop %v2164
        %v2166 = vmul.f32 %v2151, 1.442695
        %v2167 = vpow.pop %v2166
        %v2168 = vsel %vm2119, %v2153, 0.0
        %2169 = vadd.xlane.f32.xlu0 %v2168
        %v2170 = vpop.xlane.xlu0 %2169
        %v2171 = vsel %vm2119, %v2155, 0.0
        %2172 = vadd.xlane.f32.xlu0 %v2171
        %v2173 = vpop.xlane.xlu0 %2172
        %v2174 = vsel %vm2119, %v2157, 0.0
        %2175 = vadd.xlane.f32.xlu0 %v2174
        %v2176 = vpop.xlane.xlu0 %2175
        %v2177 = vsel %vm2119, %v2159, 0.0
        %2178 = vadd.xlane.f32.xlu0 %v2177
        %v2179 = vpop.xlane.xlu0 %2178
        %v2180 = vsel %vm2119, %v2161, 0.0
        %2181 = vadd.xlane.f32.xlu0 %v2180
        %v2182 = vpop.xlane.xlu0 %2181
        %v2183 = vsel %vm2119, %v2163, 0.0
        %2184 = vadd.xlane.f32.xlu0 %v2183
        %v2185 = vpop.xlane.xlu0 %2184
        %v2186 = vsel %vm2119, %v2165, 0.0
        %2187 = vadd.xlane.f32.xlu0 %v2186
        %v2188 = vpop.xlane.xlu0 %2187
        %v2189 = vsel %vm2119, %v2167, 0.0
        %2190 = vadd.xlane.f32.xlu0 %v2189
        %v2191 = vpop.xlane.xlu0 %2190
        %v2192 = vrcp.pop %v2170
        %v2193 = vrcp.pop %v2173
        %v2194 = vrcp.pop %v2176
        %v2195 = vrcp.pop %v2179
        %v2196 = vrcp.pop %v2182
        %v2197 = vrcp.pop %v2185
        %v2198 = vrcp.pop %v2188
        %v2199 = vrcp.pop %v2191
        %v2200 = vmul.f32 %v2153, %v2192
        %v2201 = vmul.f32 %v2155, %v2193
        %v2202 = vmul.f32 %v2157, %v2194
        %v2203 = vmul.f32 %v2159, %v2195
        %v2204 = vmul.f32 %v2161, %v2196
        %v2205 = vmul.f32 %v2163, %v2197
        %v2206 = vmul.f32 %v2165, %v2198
        %v2207 = vmul.f32 %v2167, %v2199
        %v2208 = vpack.c.bf16 %v2200, %v2200
        %v2209 = vpack.c.bf16 %v2201, %v2201
        %v2210 = vpack.c.bf16 %v2202, %v2202
        %v2211 = vpack.c.bf16 %v2203, %v2203
        %v2212 = vpack.c.bf16 %v2204, %v2204
        %v2213 = vpack.c.bf16 %v2205, %v2205
        %v2214 = vpack.c.bf16 %v2206, %v2206
        %v2215 = vpack.c.bf16 %v2207, %v2207
        %v2217 = vsel %vm2119, %v2208, 0
        %vm2219 = vcmask 1043456
        %v2221 = vsel %vm2219, %v1783, 0
        %2223 = vmatprep.subr.bf16.mxu0 0
        %2224 = vmatpush1.bf16.msra.mxu0 0
        %2225 = vmatprep.subr.bf16.mxu0 0
        %2226 = vmatpush1.bf16.msra.mxu0 0
        %2227 = vmatprep.subr.bf16.mxu0 0
        %2228 = vmatpush1.bf16.msra.mxu0 0
        %2229 = vmatprep.subr.bf16.mxu0 0
        %2230 = vmatpush1.bf16.msra.mxu0 0
        %2231 = vmatprep.subr.bf16.mxu0 0
        %2232 = vmatpush1.bf16.msra.mxu0 0
        %2233 = vmatprep.subr.bf16.mxu0 0
        %2234 = vmatpush1.bf16.msra.mxu0 0
        %2235 = vmatprep.subr.bf16.mxu0 0
        %2236 = vmatpush1.bf16.msra.mxu0 0
        %2237 = vmatprep.subr.bf16.mxu0 0
        %2238 = vmatpush1.bf16.msra.mxu0 %v2221
        %2239 = vmatprep.subr.bf16.mxu0 0
        %2240 = vmatpush2.bf16.msra.mxu0 0
        %2241 = vmatprep.subr.bf16.mxu0 0
        %2242 = vmatpush2.bf16.msra.mxu0 0
        %2243 = vmatprep.subr.bf16.mxu0 0
        %2244 = vmatpush2.bf16.msra.mxu0 0
        %2245 = vmatprep.subr.bf16.mxu0 0
        %2246 = vmatpush2.bf16.msra.mxu0 0
        %2247 = vmatprep.subr.bf16.mxu0 0
        %2248 = vmatpush2.bf16.msra.mxu0 0
        %2249 = vmatprep.subr.bf16.mxu0 0
        %2250 = vmatpush2.bf16.msra.mxu0 0
        %2251 = vmatprep.subr.bf16.mxu0 0
        %2252 = vmatpush2.bf16.msra.mxu0 0
        %2253 = vmatprep.subr.bf16.mxu0 0
        %2254 = vmatpush2.bf16.msra.mxu0 0
        %2255 = vmatprep.mubr.bf16.mxu0 0
        %2256 = vmatmul.mubr.bf16.gmra.mxu0 %v2217
        %v2257 = vpop.f32.mrf.mxu0
        %v2258 = vadd.f32 0.0, %v2257
        %v2259 = vpop.f32.mrf.mxu0
        %v2260 = vpop.f32.mrf.mxu0
        %v2261 = vpop.f32.mrf.mxu0
        %2262 = vdwg.mxu0
        %v2264 = vsel %vm2119, %v2209, 0
        %v2267 = vsel %vm2219, %v1784, 0
        %2269 = vmatprep.subr.bf16.mxu0 0
        %2270 = vmatpush1.bf16.msra.mxu0 0
        %2271 = vmatprep.subr.bf16.mxu0 0
        %2272 = vmatpush1.bf16.msra.mxu0 0
        %2273 = vmatprep.subr.bf16.mxu0 0
        %2274 = vmatpush1.bf16.msra.mxu0 0
        %2275 = vmatprep.subr.bf16.mxu0 0
        %2276 = vmatpush1.bf16.msra.mxu0 0
        %2277 = vmatprep.subr.bf16.mxu0 0
        %2278 = vmatpush1.bf16.msra.mxu0 0
        %2279 = vmatprep.subr.bf16.mxu0 0
        %2280 = vmatpush1.bf16.msra.mxu0 0
        %2281 = vmatprep.subr.bf16.mxu0 0
        %2282 = vmatpush1.bf16.msra.mxu0 0
        %2283 = vmatprep.subr.bf16.mxu0 0
        %2284 = vmatpush1.bf16.msra.mxu0 %v2267
        %2285 = vmatprep.subr.bf16.mxu0 0
        %2286 = vmatpush2.bf16.msra.mxu0 0
        %2287 = vmatprep.subr.bf16.mxu0 0
        %2288 = vmatpush2.bf16.msra.mxu0 0
        %2289 = vmatprep.subr.bf16.mxu0 0
        %2290 = vmatpush2.bf16.msra.mxu0 0
        %2291 = vmatprep.subr.bf16.mxu0 0
        %2292 = vmatpush2.bf16.msra.mxu0 0
        %2293 = vmatprep.subr.bf16.mxu0 0
        %2294 = vmatpush2.bf16.msra.mxu0 0
        %2295 = vmatprep.subr.bf16.mxu0 0
        %2296 = vmatpush2.bf16.msra.mxu0 0
        %2297 = vmatprep.subr.bf16.mxu0 0
        %2298 = vmatpush2.bf16.msra.mxu0 0
        %2299 = vmatprep.subr.bf16.mxu0 0
        %2300 = vmatpush2.bf16.msra.mxu0 0
        %2301 = vmatprep.mubr.bf16.mxu0 0
        %2302 = vmatmul.mubr.bf16.gmra.mxu0 %v2264
        %v2303 = vpop.f32.mrf.mxu0
        %v2304 = vadd.f32 0.0, %v2303
        %v2305 = vpop.f32.mrf.mxu0
        %v2306 = vpop.f32.mrf.mxu0
        %v2307 = vpop.f32.mrf.mxu0
        %2308 = vdwg.mxu0
        %v2310 = vsel %vm2119, %v2210, 0
        %v2313 = vsel %vm2219, %v1785, 0
        %2315 = vmatprep.subr.bf16.mxu0 0
        %2316 = vmatpush1.bf16.msra.mxu0 0
        %2317 = vmatprep.subr.bf16.mxu0 0
        %2318 = vmatpush1.bf16.msra.mxu0 0
        %2319 = vmatprep.subr.bf16.mxu0 0
        %2320 = vmatpush1.bf16.msra.mxu0 0
        %2321 = vmatprep.subr.bf16.mxu0 0
        %2322 = vmatpush1.bf16.msra.mxu0 0
        %2323 = vmatprep.subr.bf16.mxu0 0
        %2324 = vmatpush1.bf16.msra.mxu0 0
        %2325 = vmatprep.subr.bf16.mxu0 0
        %2326 = vmatpush1.bf16.msra.mxu0 0
        %2327 = vmatprep.subr.bf16.mxu0 0
        %2328 = vmatpush1.bf16.msra.mxu0 0
        %2329 = vmatprep.subr.bf16.mxu0 0
        %2330 = vmatpush1.bf16.msra.mxu0 %v2313
        %2331 = vmatprep.subr.bf16.mxu0 0
        %2332 = vmatpush2.bf16.msra.mxu0 0
        %2333 = vmatprep.subr.bf16.mxu0 0
        %2334 = vmatpush2.bf16.msra.mxu0 0
        %2335 = vmatprep.subr.bf16.mxu0 0
        %2336 = vmatpush2.bf16.msra.mxu0 0
        %2337 = vmatprep.subr.bf16.mxu0 0
        %2338 = vmatpush2.bf16.msra.mxu0 0
        %2339 = vmatprep.subr.bf16.mxu0 0
        %2340 = vmatpush2.bf16.msra.mxu0 0
        %2341 = vmatprep.subr.bf16.mxu0 0
        %2342 = vmatpush2.bf16.msra.mxu0 0
        %2343 = vmatprep.subr.bf16.mxu0 0
        %2344 = vmatpush2.bf16.msra.mxu0 0
        %2345 = vmatprep.subr.bf16.mxu0 0
        %2346 = vmatpush2.bf16.msra.mxu0 0
        %2347 = vmatprep.mubr.bf16.mxu0 0
        %2348 = vmatmul.mubr.bf16.gmra.mxu0 %v2310
        %v2349 = vpop.f32.mrf.mxu0
        %v2350 = vadd.f32 0.0, %v2349
        %v2351 = vpop.f32.mrf.mxu0
        %v2352 = vpop.f32.mrf.mxu0
        %v2353 = vpop.f32.mrf.mxu0
        %2354 = vdwg.mxu0
        %v2356 = vsel %vm2119, %v2211, 0
        %v2359 = vsel %vm2219, %v1786, 0
        %2361 = vmatprep.subr.bf16.mxu0 0
        %2362 = vmatpush1.bf16.msra.mxu0 0
        %2363 = vmatprep.subr.bf16.mxu0 0
        %2364 = vmatpush1.bf16.msra.mxu0 0
        %2365 = vmatprep.subr.bf16.mxu0 0
        %2366 = vmatpush1.bf16.msra.mxu0 0
        %2367 = vmatprep.subr.bf16.mxu0 0
        %2368 = vmatpush1.bf16.msra.mxu0 0
        %2369 = vmatprep.subr.bf16.mxu0 0
        %2370 = vmatpush1.bf16.msra.mxu0 0
        %2371 = vmatprep.subr.bf16.mxu0 0
        %2372 = vmatpush1.bf16.msra.mxu0 0
        %2373 = vmatprep.subr.bf16.mxu0 0
        %2374 = vmatpush1.bf16.msra.mxu0 0
        %2375 = vmatprep.subr.bf16.mxu0 0
        %2376 = vmatpush1.bf16.msra.mxu0 %v2359
        %2377 = vmatprep.subr.bf16.mxu0 0
        %2378 = vmatpush2.bf16.msra.mxu0 0
        %2379 = vmatprep.subr.bf16.mxu0 0
        %2380 = vmatpush2.bf16.msra.mxu0 0
        %2381 = vmatprep.subr.bf16.mxu0 0
        %2382 = vmatpush2.bf16.msra.mxu0 0
        %2383 = vmatprep.subr.bf16.mxu0 0
        %2384 = vmatpush2.bf16.msra.mxu0 0
        %2385 = vmatprep.subr.bf16.mxu0 0
        %2386 = vmatpush2.bf16.msra.mxu0 0
        %2387 = vmatprep.subr.bf16.mxu0 0
        %2388 = vmatpush2.bf16.msra.mxu0 0
        %2389 = vmatprep.subr.bf16.mxu0 0
        %2390 = vmatpush2.bf16.msra.mxu0 0
        %2391 = vmatprep.subr.bf16.mxu0 0
        %2392 = vmatpush2.bf16.msra.mxu0 0
        %2393 = vmatprep.mubr.bf16.mxu0 0
        %2394 = vmatmul.mubr.bf16.gmra.mxu0 %v2356
        %v2395 = vpop.f32.mrf.mxu0
        %v2396 = vadd.f32 0.0, %v2395
        %v2397 = vpop.f32.mrf.mxu0
        %v2398 = vpop.f32.mrf.mxu0
        %v2399 = vpop.f32.mrf.mxu0
        %2400 = vdwg.mxu0
        %v2402 = vsel %vm2119, %v2212, 0
        %v2405 = vsel %vm2219, %v1787, 0
        %2407 = vmatprep.subr.bf16.mxu0 0
        %2408 = vmatpush1.bf16.msra.mxu0 0
        %2409 = vmatprep.subr.bf16.mxu0 0
        %2410 = vmatpush1.bf16.msra.mxu0 0
        %2411 = vmatprep.subr.bf16.mxu0 0
        %2412 = vmatpush1.bf16.msra.mxu0 0
        %2413 = vmatprep.subr.bf16.mxu0 0
        %2414 = vmatpush1.bf16.msra.mxu0 0
        %2415 = vmatprep.subr.bf16.mxu0 0
        %2416 = vmatpush1.bf16.msra.mxu0 0
        %2417 = vmatprep.subr.bf16.mxu0 0
        %2418 = vmatpush1.bf16.msra.mxu0 0
        %2419 = vmatprep.subr.bf16.mxu0 0
        %2420 = vmatpush1.bf16.msra.mxu0 0
        %2421 = vmatprep.subr.bf16.mxu0 0
        %2422 = vmatpush1.bf16.msra.mxu0 %v2405
        %2423 = vmatprep.subr.bf16.mxu0 0
        %2424 = vmatpush2.bf16.msra.mxu0 0
        %2425 = vmatprep.subr.bf16.mxu0 0
        %2426 = vmatpush2.bf16.msra.mxu0 0
        %2427 = vmatprep.subr.bf16.mxu0 0
        %2428 = vmatpush2.bf16.msra.mxu0 0
        %2429 = vmatprep.subr.bf16.mxu0 0
        %2430 = vmatpush2.bf16.msra.mxu0 0
        %2431 = vmatprep.subr.bf16.mxu0 0
        %2432 = vmatpush2.bf16.msra.mxu0 0
        %2433 = vmatprep.subr.bf16.mxu0 0
        %2434 = vmatpush2.bf16.msra.mxu0 0
        %2435 = vmatprep.subr.bf16.mxu0 0
        %2436 = vmatpush2.bf16.msra.mxu0 0
        %2437 = vmatprep.subr.bf16.mxu0 0
        %2438 = vmatpush2.bf16.msra.mxu0 0
        %2439 = vmatprep.mubr.bf16.mxu0 0
        %2440 = vmatmul.mubr.bf16.gmra.mxu0 %v2402
        %v2441 = vpop.f32.mrf.mxu0
        %v2442 = vadd.f32 0.0, %v2441
        %v2443 = vpop.f32.mrf.mxu0
        %v2444 = vpop.f32.mrf.mxu0
        %v2445 = vpop.f32.mrf.mxu0
        %2446 = vdwg.mxu0
        %v2448 = vsel %vm2119, %v2213, 0
        %v2451 = vsel %vm2219, %v1788, 0
        %2453 = vmatprep.subr.bf16.mxu0 0
        %2454 = vmatpush1.bf16.msra.mxu0 0
        %2455 = vmatprep.subr.bf16.mxu0 0
        %2456 = vmatpush1.bf16.msra.mxu0 0
        %2457 = vmatprep.subr.bf16.mxu0 0
        %2458 = vmatpush1.bf16.msra.mxu0 0
        %2459 = vmatprep.subr.bf16.mxu0 0
        %2460 = vmatpush1.bf16.msra.mxu0 0
        %2461 = vmatprep.subr.bf16.mxu0 0
        %2462 = vmatpush1.bf16.msra.mxu0 0
        %2463 = vmatprep.subr.bf16.mxu0 0
        %2464 = vmatpush1.bf16.msra.mxu0 0
        %2465 = vmatprep.subr.bf16.mxu0 0
        %2466 = vmatpush1.bf16.msra.mxu0 0
        %2467 = vmatprep.subr.bf16.mxu0 0
        %2468 = vmatpush1.bf16.msra.mxu0 %v2451
        %2469 = vmatprep.subr.bf16.mxu0 0
        %2470 = vmatpush2.bf16.msra.mxu0 0
        %2471 = vmatprep.subr.bf16.mxu0 0
        %2472 = vmatpush2.bf16.msra.mxu0 0
        %2473 = vmatprep.subr.bf16.mxu0 0
        %2474 = vmatpush2.bf16.msra.mxu0 0
        %2475 = vmatprep.subr.bf16.mxu0 0
        %2476 = vmatpush2.bf16.msra.mxu0 0
        %2477 = vmatprep.subr.bf16.mxu0 0
        %2478 = vmatpush2.bf16.msra.mxu0 0
        %2479 = vmatprep.subr.bf16.mxu0 0
        %2480 = vmatpush2.bf16.msra.mxu0 0
        %2481 = vmatprep.subr.bf16.mxu0 0
        %2482 = vmatpush2.bf16.msra.mxu0 0
        %2483 = vmatprep.subr.bf16.mxu0 0
        %2484 = vmatpush2.bf16.msra.mxu0 0
        %2485 = vmatprep.mubr.bf16.mxu0 0
        %2486 = vmatmul.mubr.bf16.gmra.mxu0 %v2448
        %v2487 = vpop.f32.mrf.mxu0
        %v2488 = vadd.f32 0.0, %v2487
        %v2489 = vpop.f32.mrf.mxu0
        %v2490 = vpop.f32.mrf.mxu0
        %v2491 = vpop.f32.mrf.mxu0
        %2492 = vdwg.mxu0
        %v2494 = vsel %vm2119, %v2214, 0
        %v2497 = vsel %vm2219, %v1789, 0
        %2499 = vmatprep.subr.bf16.mxu0 0
        %2500 = vmatpush1.bf16.msra.mxu0 0
        %2501 = vmatprep.subr.bf16.mxu0 0
        %2502 = vmatpush1.bf16.msra.mxu0 0
        %2503 = vmatprep.subr.bf16.mxu0 0
        %2504 = vmatpush1.bf16.msra.mxu0 0
        %2505 = vmatprep.subr.bf16.mxu0 0
        %2506 = vmatpush1.bf16.msra.mxu0 0
        %2507 = vmatprep.subr.bf16.mxu0 0
        %2508 = vmatpush1.bf16.msra.mxu0 0
        %2509 = vmatprep.subr.bf16.mxu0 0
        %2510 = vmatpush1.bf16.msra.mxu0 0
        %2511 = vmatprep.subr.bf16.mxu0 0
        %2512 = vmatpush1.bf16.msra.mxu0 0
        %2513 = vmatprep.subr.bf16.mxu0 0
        %2514 = vmatpush1.bf16.msra.mxu0 %v2497
        %2515 = vmatprep.subr.bf16.mxu0 0
        %2516 = vmatpush2.bf16.msra.mxu0 0
        %2517 = vmatprep.subr.bf16.mxu0 0
        %2518 = vmatpush2.bf16.msra.mxu0 0
        %2519 = vmatprep.subr.bf16.mxu0 0
        %2520 = vmatpush2.bf16.msra.mxu0 0
        %2521 = vmatprep.subr.bf16.mxu0 0
        %2522 = vmatpush2.bf16.msra.mxu0 0
        %2523 = vmatprep.subr.bf16.mxu0 0
        %2524 = vmatpush2.bf16.msra.mxu0 0
        %2525 = vmatprep.subr.bf16.mxu0 0
        %2526 = vmatpush2.bf16.msra.mxu0 0
        %2527 = vmatprep.subr.bf16.mxu0 0
        %2528 = vmatpush2.bf16.msra.mxu0 0
        %2529 = vmatprep.subr.bf16.mxu0 0
        %2530 = vmatpush2.bf16.msra.mxu0 0
        %2531 = vmatprep.mubr.bf16.mxu0 0
        %2532 = vmatmul.mubr.bf16.gmra.mxu0 %v2494
        %v2533 = vpop.f32.mrf.mxu0
        %v2534 = vadd.f32 0.0, %v2533
        %v2535 = vpop.f32.mrf.mxu0
        %v2536 = vpop.f32.mrf.mxu0
        %v2537 = vpop.f32.mrf.mxu0
        %2538 = vdwg.mxu0
        %v2540 = vsel %vm2119, %v2215, 0
        %v2543 = vsel %vm2219, %v1790, 0
        %2545 = vmatprep.subr.bf16.mxu0 0
        %2546 = vmatpush1.bf16.msra.mxu0 0
        %2547 = vmatprep.subr.bf16.mxu0 0
        %2548 = vmatpush1.bf16.msra.mxu0 0
        %2549 = vmatprep.subr.bf16.mxu0 0
        %2550 = vmatpush1.bf16.msra.mxu0 0
        %2551 = vmatprep.subr.bf16.mxu0 0
        %2552 = vmatpush1.bf16.msra.mxu0 0
        %2553 = vmatprep.subr.bf16.mxu0 0
        %2554 = vmatpush1.bf16.msra.mxu0 0
        %2555 = vmatprep.subr.bf16.mxu0 0
        %2556 = vmatpush1.bf16.msra.mxu0 0
        %2557 = vmatprep.subr.bf16.mxu0 0
        %2558 = vmatpush1.bf16.msra.mxu0 0
        %2559 = vmatprep.subr.bf16.mxu0 0
        %2560 = vmatpush1.bf16.msra.mxu0 %v2543
        %2561 = vmatprep.subr.bf16.mxu0 0
        %2562 = vmatpush2.bf16.msra.mxu0 0
        %2563 = vmatprep.subr.bf16.mxu0 0
        %2564 = vmatpush2.bf16.msra.mxu0 0
        %2565 = vmatprep.subr.bf16.mxu0 0
        %2566 = vmatpush2.bf16.msra.mxu0 0
        %2567 = vmatprep.subr.bf16.mxu0 0
        %2568 = vmatpush2.bf16.msra.mxu0 0
        %2569 = vmatprep.subr.bf16.mxu0 0
        %2570 = vmatpush2.bf16.msra.mxu0 0
        %2571 = vmatprep.subr.bf16.mxu0 0
        %2572 = vmatpush2.bf16.msra.mxu0 0
        %2573 = vmatprep.subr.bf16.mxu0 0
        %2574 = vmatpush2.bf16.msra.mxu0 0
        %2575 = vmatprep.subr.bf16.mxu0 0
        %2576 = vmatpush2.bf16.msra.mxu0 0
        %2577 = vmatprep.mubr.bf16.mxu0 0
        %2578 = vmatmul.mubr.bf16.gmra.mxu0 %v2540
        %v2579 = vpop.f32.mrf.mxu0
        %v2580 = vadd.f32 0.0, %v2579
        %v2581 = vpop.f32.mrf.mxu0
        %v2582 = vpop.f32.mrf.mxu0
        %v2583 = vpop.f32.mrf.mxu0
        %2584 = vdwg.mxu0
        %v2585 = vadd.f32 %v2258, %v2350
        %v2586 = vadd.f32 %v2304, %v2396
        %v2587 = vadd.f32 %v2585, %v2442
        %v2588 = vadd.f32 %v2586, %v2488
        %v2589 = vadd.f32 %v2587, %v2534
        %v2590 = vadd.f32 %v2588, %v2580
        %v2591 = vld [vmem:[%s1202] sm:$0xf]
        %v2592 = vld [vmem:[%s1202 + $0x4] sm:$0xf]
        %v2593 = vld [vmem:[%s1202 + $0x8] sm:$0xf]
        %v2594 = vld [vmem:[%s1202 + $0xc] sm:$0xf]
        %v2595 = vld [vmem:[%s1202 + $0x10] sm:$0xf]
        %v2596 = vld [vmem:[%s1202 + $0x14] sm:$0xf]
        %v2597 = vld [vmem:[%s1202 + $0x18] sm:$0xf]
        %v2598 = vld [vmem:[%s1202 + $0x1c] sm:$0xf]
        %v2599 = vpack.c.bf16 %v2590, %v2589
        %v2600 = vld [vmem:[%s1205] sm:$0x1]
        %v2602 = vlaneseq
        %v2603 = vshrl.u32 %v2602, 7
        %v2604 = vsub.s32 0, %v2603
        %v2605 = vrot.slane %v2600, %v2604
        %v2615 = vunpack.c.l.b16 %v2591
        %v2616 = vunpack.c.l.b16 %v2592
        %v2617 = vunpack.c.l.b16 %v2593
        %v2618 = vunpack.c.l.b16 %v2594
        %v2619 = vunpack.c.l.b16 %v2595
        %v2620 = vunpack.c.l.b16 %v2596
        %v2621 = vunpack.c.l.b16 %v2597
        %v2622 = vunpack.c.l.b16 %v2598
        %v2623 = vpack.c.b16 %v2616, %v2615
        %v2624 = vpack.c.b16 %v2618, %v2617
        %v2625 = vpack.c.b16 %v2620, %v2619
        %v2626 = vpack.c.b16 %v2622, %v2621
        %2631 = vmatprep.subr.bf16.mxu0 0
        %2632 = vmatpush1.bf16.xpose.msra.mxu0 0
        %2633 = vmatprep.subr.bf16.mxu0 0
        %2634 = vmatpush1.bf16.xpose.msra.mxu0 0
        %2635 = vmatprep.subr.bf16.mxu0 0
        %2636 = vmatpush1.bf16.xpose.msra.mxu0 0
        %2637 = vmatprep.subr.bf16.mxu0 0
        %2638 = vmatpush1.bf16.xpose.msra.mxu0 0
        %2639 = vmatprep.subr.bf16.mxu0 0
        %2640 = vmatpush1.bf16.xpose.msra.mxu0 %v2626
        %2641 = vmatprep.subr.bf16.mxu0 0
        %2642 = vmatpush1.bf16.xpose.msra.mxu0 %v2625
        %2643 = vmatprep.subr.bf16.mxu0 0
        %2644 = vmatpush1.bf16.xpose.msra.mxu0 %v2624
        %2645 = vmatprep.subr.bf16.mxu0 0
        %2646 = vmatpush1.bf16.xpose.msra.mxu0 %v2623
        %2647 = vmatprep.subr.bf16.mxu0 0
        %2648 = vmatpush2.bf16.xpose.msra.mxu0 0
        %2649 = vmatprep.subr.bf16.mxu0 0
        %2650 = vmatpush2.bf16.xpose.msra.mxu0 0
        %2651 = vmatprep.subr.bf16.mxu0 0
        %2652 = vmatpush2.bf16.xpose.msra.mxu0 0
        %2653 = vmatprep.subr.bf16.mxu0 0
        %2654 = vmatpush2.bf16.xpose.msra.mxu0 0
        %2655 = vmatprep.subr.bf16.mxu0 0
        %2656 = vmatpush2.bf16.xpose.msra.mxu0 0
        %2657 = vmatprep.subr.bf16.mxu0 0
        %2658 = vmatpush2.bf16.xpose.msra.mxu0 0
        %2659 = vmatprep.subr.bf16.mxu0 0
        %2660 = vmatpush2.bf16.xpose.msra.mxu0 0
        %2661 = vmatprep.subr.bf16.mxu0 0
        %2662 = vmatpush2.bf16.xpose.msra.mxu0 0
        %2663 = vmatprep.mubr.bf16.mxu0 0
        %2664 = vmatmul.mubr.bf16.gmra.mxu0 %v2599
        %v2665 = vpop.f32.mrf.mxu0
        %v2666 = vadd.f32 %v2605, %v2665
        %v2667 = vpop.f32.mrf.mxu0
        %v2668 = vpop.f32.mrf.mxu0
        %v2669 = vadd.f32 %v2605, %v2668
        %v2670 = vpop.f32.mrf.mxu0
        %2671 = vdwg.mxu0
        %v2672 = vadd.f32 %v1341, %v2666
        %v2673 = vadd.f32 %v1342, %v2669
        %v2674 = vld [vmem:[%s1208] sm:$0x1]
        %v2675 = vld [vmem:[%s1211] sm:$0x1]
        %v2676 = vsel %vm1529, %v2672, 0.0
        %2677 = vadd.xlane.f32.xlu0 %v2676
        %v2678 = vpop.xlane.xlu0 %2677
        %v2679 = vsel %vm1529, %v2673, 0.0
        %2680 = vadd.xlane.f32.xlu0 %v2679
        %v2681 = vpop.xlane.xlu0 %2680
        %v2682 = vrcp.pop 64.0
        %v2683 = vmul.f32 %v2678, %v2682
        %v2684 = vmul.f32 %v2681, %v2682
        %v2685 = vmul.f32 %v2672, %v2672
        %v2686 = vmul.f32 %v2673, %v2673
        %v2687 = vsel %vm1529, %v2685, 0.0
        %2688 = vadd.xlane.f32.xlu0 %v2687
        %v2689 = vpop.xlane.xlu0 %2688
        %v2690 = vsel %vm1529, %v2686, 0.0
        %2691 = vadd.xlane.f32.xlu0 %v2690
        %v2692 = vpop.xlane.xlu0 %2691
        %v2693 = vmul.f32 %v2689, %v2682
        %v2694 = vmul.f32 %v2692, %v2682
        %v2695 = vmul.f32 %v2683, %v2683
        %v2696 = vmul.f32 %v2684, %v2684
        %v2697 = vsub.f32 %v2693, %v2695
        %v2698 = vsub.f32 %v2694, %v2696
        %v2699 = vmax.f32 %v2697, 0.0
        %v2700 = vmax.f32 %v2698, 0.0
        %v2701 = vsub.f32 %v2672, %v2683
        %v2702 = vsub.f32 %v2673, %v2684
        %v2703 = vadd.f32 %v2699, 1e-05
        %v2704 = vadd.f32 %v2700, 1e-05
        %v2705 = vrsqrt.pop %v2703
        %v2706 = vrsqrt.pop %v2704
        %v2707 = vmul.f32 %v2701, %v2705
        %v2708 = vmul.f32 %v2702, %v2706
        %v2710 = vlaneseq
        %v2711 = vshrl.u32 %v2710, 7
        %v2712 = vsub.s32 0, %v2711
        %v2713 = vrot.slane %v2674, %v2712
        %v2715 = vmul.f32 %v2707, %v2713
        %v2716 = vmul.f32 %v2708, %v2713
        %v2718 = vlaneseq
        %v2719 = vshrl.u32 %v2718, 7
        %v2720 = vsub.s32 0, %v2719
        %v2721 = vrot.slane %v2675, %v2720
        %v2723 = vadd.f32 %v2715, %v2721
        %v2724 = vadd.f32 %v2716, %v2721
        %v2725 = vld [vmem:[%s1216] sm:$0xf]
        %v2726 = vld [vmem:[%s1216 + $0x4] sm:$0xf]
        %v2727 = vld [vmem:[%s1216 + $0x8] sm:$0xf]
        %v2728 = vld [vmem:[%s1216 + $0xc] sm:$0xf]
        %v2729 = vld [vmem:[%s1216 + $0x10] sm:$0xf]
        %v2730 = vld [vmem:[%s1216 + $0x14] sm:$0xf]
        %v2731 = vld [vmem:[%s1216 + $0x18] sm:$0xf]
        %v2732 = vld [vmem:[%s1216 + $0x1c] sm:$0xf]
        %v2733 = vld [vmem:[%s1216 + $0x20] sm:$0xf]
        %v2734 = vld [vmem:[%s1216 + $0x24] sm:$0xf]
        %v2735 = vld [vmem:[%s1216 + $0x28] sm:$0xf]
        %v2736 = vld [vmem:[%s1216 + $0x2c] sm:$0xf]
        %v2737 = vld [vmem:[%s1216 + $0x30] sm:$0xf]
        %v2738 = vld [vmem:[%s1216 + $0x34] sm:$0xf]
        %v2739 = vld [vmem:[%s1216 + $0x38] sm:$0xf]
        %v2740 = vld [vmem:[%s1216 + $0x3c] sm:$0xf]
        %v2741 = vld [vmem:[%s1216 + $0x40] sm:$0xf]
        %v2742 = vld [vmem:[%s1216 + $0x44] sm:$0xf]
        %v2743 = vld [vmem:[%s1216 + $0x48] sm:$0xf]
        %v2744 = vld [vmem:[%s1216 + $0x4c] sm:$0xf]
        %v2745 = vld [vmem:[%s1216 + $0x50] sm:$0xf]
        %v2746 = vld [vmem:[%s1216 + $0x54] sm:$0xf]
        %v2747 = vld [vmem:[%s1216 + $0x58] sm:$0xf]
        %v2748 = vld [vmem:[%s1216 + $0x5c] sm:$0xf]
        %v2749 = vld [vmem:[%s1216 + $0x60] sm:$0xf]
        %v2750 = vld [vmem:[%s1216 + $0x64] sm:$0xf]
        %v2751 = vld [vmem:[%s1216 + $0x68] sm:$0xf]
        %v2752 = vld [vmem:[%s1216 + $0x6c] sm:$0xf]
        %v2753 = vld [vmem:[%s1216 + $0x70] sm:$0xf]
        %v2754 = vld [vmem:[%s1216 + $0x74] sm:$0xf]
        %v2755 = vld [vmem:[%s1216 + $0x78] sm:$0xf]
        %v2756 = vld [vmem:[%s1216 + $0x7c] sm:$0xf]
        %v2757 = vpack.c.bf16 %v2724, %v2723
        %v2758 = vld [vmem:[%s1220] sm:$0x3]
        %v2760 = vlaneseq
        %v2761 = vshrl.u32 %v2760, 7
        %v2762 = vsub.s32 0, %v2761
        %v2763 = vrot.slane %v2758, %v2762
        %v2764 = vlaneseq
        %v2765 = vshrl.u32 %v2764, 7
        %v2766 = vsub.s32 1, %v2765
        %v2767 = vrot.slane %v2758, %v2766
        %v2802 = vunpack.c.l.b16 %v2725
        %v2803 = vunpack.c.l.b16 %v2726
        %v2804 = vunpack.c.l.b16 %v2727
        %v2805 = vunpack.c.l.b16 %v2728
        %v2806 = vunpack.c.l.b16 %v2729
        %v2807 = vunpack.c.l.b16 %v2730
        %v2808 = vunpack.c.l.b16 %v2731
        %v2809 = vunpack.c.l.b16 %v2732
        %v2810 = vunpack.c.l.b16 %v2733
        %v2811 = vunpack.c.l.b16 %v2734
        %v2812 = vunpack.c.l.b16 %v2735
        %v2813 = vunpack.c.l.b16 %v2736
        %v2814 = vunpack.c.l.b16 %v2737
        %v2815 = vunpack.c.l.b16 %v2738
        %v2816 = vunpack.c.l.b16 %v2739
        %v2817 = vunpack.c.l.b16 %v2740
        %v2818 = vunpack.c.l.b16 %v2741
        %v2819 = vunpack.c.l.b16 %v2742
        %v2820 = vunpack.c.l.b16 %v2743
        %v2821 = vunpack.c.l.b16 %v2744
        %v2822 = vunpack.c.l.b16 %v2745
        %v2823 = vunpack.c.l.b16 %v2746
        %v2824 = vunpack.c.l.b16 %v2747
        %v2825 = vunpack.c.l.b16 %v2748
        %v2826 = vunpack.c.l.b16 %v2749
        %v2827 = vunpack.c.l.b16 %v2750
        %v2828 = vunpack.c.l.b16 %v2751
        %v2829 = vunpack.c.l.b16 %v2752
        %v2830 = vunpack.c.l.b16 %v2753
        %v2831 = vunpack.c.l.b16 %v2754
        %v2832 = vunpack.c.l.b16 %v2755
        %v2833 = vunpack.c.l.b16 %v2756
        %v2834 = vpack.c.b16 %v2803, %v2802
        %v2835 = vpack.c.b16 %v2805, %v2804
        %v2836 = vpack.c.b16 %v2807, %v2806
        %v2837 = vpack.c.b16 %v2809, %v2808
        %v2838 = vpack.c.b16 %v2811, %v2810
        %v2839 = vpack.c.b16 %v2813, %v2812
        %v2840 = vpack.c.b16 %v2815, %v2814
        %v2841 = vpack.c.b16 %v2817, %v2816
        %v2842 = vpack.c.b16 %v2819, %v2818
        %v2843 = vpack.c.b16 %v2821, %v2820
        %v2844 = vpack.c.b16 %v2823, %v2822
        %v2845 = vpack.c.b16 %v2825, %v2824
        %v2846 = vpack.c.b16 %v2827, %v2826
        %v2847 = vpack.c.b16 %v2829, %v2828
        %v2848 = vpack.c.b16 %v2831, %v2830
        %v2849 = vpack.c.b16 %v2833, %v2832
        %v2851 = vsel %vm1529, %v2757, 0
        %v2854 = vsel %vm1529, %v2834, 0
        %v2857 = vsel %vm1529, %v2835, 0
        %v2860 = vsel %vm1529, %v2836, 0
        %v2863 = vsel %vm1529, %v2837, 0
        %v2866 = vsel %vm1529, %v2838, 0
        %v2869 = vsel %vm1529, %v2839, 0
        %v2872 = vsel %vm1529, %v2840, 0
        %v2875 = vsel %vm1529, %v2841, 0
        %v2878 = vsel %vm1529, %v2842, 0
        %v2881 = vsel %vm1529, %v2843, 0
        %v2884 = vsel %vm1529, %v2844, 0
        %v2887 = vsel %vm1529, %v2845, 0
        %v2890 = vsel %vm1529, %v2846, 0
        %v2893 = vsel %vm1529, %v2847, 0
        %v2896 = vsel %vm1529, %v2848, 0
        %v2899 = vsel %vm1529, %v2849, 0
        %2901 = vmatprep.subr.bf16.mxu0 0
        %2902 = vmatpush1.bf16.xpose.msra.mxu0 %v2875
        %2903 = vmatprep.subr.bf16.mxu0 0
        %2904 = vmatpush1.bf16.xpose.msra.mxu0 %v2872
        %2905 = vmatprep.subr.bf16.mxu0 0
        %2906 = vmatpush1.bf16.xpose.msra.mxu0 %v2869
        %2907 = vmatprep.subr.bf16.mxu0 0
        %2908 = vmatpush1.bf16.xpose.msra.mxu0 %v2866
        %2909 = vmatprep.subr.bf16.mxu0 0
        %2910 = vmatpush1.bf16.xpose.msra.mxu0 %v2863
        %2911 = vmatprep.subr.bf16.mxu0 0
        %2912 = vmatpush1.bf16.xpose.msra.mxu0 %v2860
        %2913 = vmatprep.subr.bf16.mxu0 0
        %2914 = vmatpush1.bf16.xpose.msra.mxu0 %v2857
        %2915 = vmatprep.subr.bf16.mxu0 0
        %2916 = vmatpush1.bf16.xpose.msra.mxu0 %v2854
        %2917 = vmatprep.subr.bf16.mxu0 0
        %2918 = vmatpush2.bf16.xpose.msra.mxu0 %v2899
        %2919 = vmatprep.subr.bf16.mxu0 0
        %2920 = vmatpush2.bf16.xpose.msra.mxu0 %v2896
        %2921 = vmatprep.subr.bf16.mxu0 0
        %2922 = vmatpush2.bf16.xpose.msra.mxu0 %v2893
        %2923 = vmatprep.subr.bf16.mxu0 0
        %2924 = vmatpush2.bf16.xpose.msra.mxu0 %v2890
        %2925 = vmatprep.subr.bf16.mxu0 0
        %2926 = vmatpush2.bf16.xpose.msra.mxu0 %v2887
        %2927 = vmatprep.subr.bf16.mxu0 0
        %2928 = vmatpush2.bf16.xpose.msra.mxu0 %v2884
        %2929 = vmatprep.subr.bf16.mxu0 0
        %2930 = vmatpush2.bf16.xpose.msra.mxu0 %v2881
        %2931 = vmatprep.subr.bf16.mxu0 0
        %2932 = vmatpush2.bf16.xpose.msra.mxu0 %v2878
        %2933 = vmatprep.mubr.bf16.mxu0 0
        %2934 = vmatmul.mubr.bf16.gmra.mxu0 %v2851
        %v2935 = vpop.f32.mrf.mxu0
        %v2936 = vadd.f32 %v2763, %v2935
        %v2937 = vpop.f32.mrf.mxu0
        %v2938 = vadd.f32 %v2767, %v2937
        %v2939 = vpop.f32.mrf.mxu0
        %v2940 = vadd.f32 %v2763, %v2939
        %v2941 = vpop.f32.mrf.mxu0
        %v2942 = vadd.f32 %v2767, %v2941
        %2943 = vdwg.mxu0
        %v2944 = vmul.f32 %v2936, 0.5
        %v2945 = vmul.f32 %v2938, 0.5
        %v2946 = vmul.f32 %v2940, 0.5
        %v2947 = vmul.f32 %v2942, 0.5
        %v2948 = vmul.f32 %v2936, 0.044715
        %v2949 = vmul.f32 %v2938, 0.044715
        %v2950 = vmul.f32 %v2940, 0.044715
        %v2951 = vmul.f32 %v2942, 0.044715
        %v2952 = vmul.f32 %v2948, %v2936
        %v2953 = vmul.f32 %v2949, %v2938
        %v2954 = vmul.f32 %v2950, %v2940
        %v2955 = vmul.f32 %v2951, %v2942
        %v2956 = vmul.f32 %v2952, %v2936
        %v2957 = vmul.f32 %v2953, %v2938
        %v2958 = vmul.f32 %v2954, %v2940
        %v2959 = vmul.f32 %v2955, %v2942
        %v2960 = vadd.f32 %v2936, %v2956
        %v2961 = vadd.f32 %v2938, %v2957
        %v2962 = vadd.f32 %v2940, %v2958
        %v2963 = vadd.f32 %v2942, %v2959
        %v2964 = vmul.f32 %v2960, 0.7978846
        %v2965 = vmul.f32 %v2961, 0.7978846
        %v2966 = vmul.f32 %v2962, 0.7978846
        %v2967 = vmul.f32 %v2963, 0.7978846
        %v2968 = vtanh.pop %v2964
        %v2969 = vtanh.pop %v2965
        %v2970 = vtanh.pop %v2966
        %v2971 = vtanh.pop %v2967
        %v2972 = vadd.f32 %v2968, 1.0
        %v2973 = vadd.f32 %v2969, 1.0
        %v2974 = vadd.f32 %v2970, 1.0
        %v2975 = vadd.f32 %v2971, 1.0
        %v2976 = vmul.f32 %v2944, %v2972
        %v2977 = vmul.f32 %v2945, %v2973
        %v2978 = vmul.f32 %v2946, %v2974
        %v2979 = vmul.f32 %v2947, %v2975
        %v2980 = vld [vmem:[%s1225] sm:$0xff]
        %v2981 = vld [vmem:[%s1225 + $0x8] sm:$0xff]
        %v2982 = vld [vmem:[%s1225 + $0x10] sm:$0xff]
        %v2983 = vld [vmem:[%s1225 + $0x18] sm:$0xff]
        %v2984 = vld [vmem:[%s1225 + $0x20] sm:$0xff]
        %v2985 = vld [vmem:[%s1225 + $0x28] sm:$0xff]
        %v2986 = vld [vmem:[%s1225 + $0x30] sm:$0xff]
        %v2987 = vld [vmem:[%s1225 + $0x38] sm:$0xff]
        %v2988 = vpack.c.bf16 %v2978, %v2976
        %v2989 = vpack.c.bf16 %v2979, %v2977
        %v2990 = vld [vmem:[%s1228] sm:$0x1]
        %v2992 = vlaneseq
        %v2993 = vshrl.u32 %v2992, 7
        %v2994 = vsub.s32 0, %v2993
        %v2995 = vrot.slane %v2990, %v2994
        %v3005 = vunpack.c.l.b16 %v2980
        %v3006 = vunpack.c.h.b16 %v2980
        %v3007 = vunpack.c.l.b16 %v2981
        %v3008 = vunpack.c.h.b16 %v2981
        %v3009 = vunpack.c.l.b16 %v2982
        %v3010 = vunpack.c.h.b16 %v2982
        %v3011 = vunpack.c.l.b16 %v2983
        %v3012 = vunpack.c.h.b16 %v2983
        %v3013 = vunpack.c.l.b16 %v2984
        %v3014 = vunpack.c.h.b16 %v2984
        %v3015 = vunpack.c.l.b16 %v2985
        %v3016 = vunpack.c.h.b16 %v2985
        %v3017 = vunpack.c.l.b16 %v2986
        %v3018 = vunpack.c.h.b16 %v2986
        %v3019 = vunpack.c.l.b16 %v2987
        %v3020 = vunpack.c.h.b16 %v2987
        %v3021 = vpack.c.b16 %v3007, %v3005
        %v3022 = vpack.c.b16 %v3008, %v3006
        %v3023 = vpack.c.b16 %v3011, %v3009
        %v3024 = vpack.c.b16 %v3012, %v3010
        %v3025 = vpack.c.b16 %v3015, %v3013
        %v3026 = vpack.c.b16 %v3016, %v3014
        %v3027 = vpack.c.b16 %v3019, %v3017
        %v3028 = vpack.c.b16 %v3020, %v3018
        %3037 = vmatprep.subr.bf16.mxu0 0
        %3038 = vmatpush1.bf16.xpose.msra.mxu0 0
        %3039 = vmatprep.subr.bf16.mxu0 0
        %3040 = vmatpush1.bf16.xpose.msra.mxu0 0
        %3041 = vmatprep.subr.bf16.mxu0 0
        %3042 = vmatpush1.bf16.xpose.msra.mxu0 0
        %3043 = vmatprep.subr.bf16.mxu0 0
        %3044 = vmatpush1.bf16.xpose.msra.mxu0 0
        %3045 = vmatprep.subr.bf16.mxu0 %v3028
        %3046 = vmatpush1.bf16.xpose.msra.mxu0 %v3027
        %3047 = vmatprep.subr.bf16.mxu0 %v3026
        %3048 = vmatpush1.bf16.xpose.msra.mxu0 %v3025
        %3049 = vmatprep.subr.bf16.mxu0 %v3024
        %3050 = vmatpush1.bf16.xpose.msra.mxu0 %v3023
        %3051 = vmatprep.subr.bf16.mxu0 %v3022
        %3052 = vmatpush1.bf16.xpose.msra.mxu0 %v3021
        %3053 = vmatprep.subr.bf16.mxu0 0
        %3054 = vmatpush2.bf16.xpose.msra.mxu0 0
        %3055 = vmatprep.subr.bf16.mxu0 0
        %3056 = vmatpush2.bf16.xpose.msra.mxu0 0
        %3057 = vmatprep.subr.bf16.mxu0 0
        %3058 = vmatpush2.bf16.xpose.msra.mxu0 0
        %3059 = vmatprep.subr.bf16.mxu0 0
        %3060 = vmatpush2.bf16.xpose.msra.mxu0 0
        %3061 = vmatprep.subr.bf16.mxu0 0
        %3062 = vmatpush2.bf16.xpose.msra.mxu0 0
        %3063 = vmatprep.subr.bf16.mxu0 0
        %3064 = vmatpush2.bf16.xpose.msra.mxu0 0
        %3065 = vmatprep.subr.bf16.mxu0 0
        %3066 = vmatpush2.bf16.xpose.msra.mxu0 0
        %3067 = vmatprep.subr.bf16.mxu0 0
        %3068 = vmatpush2.bf16.xpose.msra.mxu0 0
        %3069 = vmatprep.mubr.bf16.mxu0 %v2989
        %3070 = vmatmul.mubr.bf16.gmra.mxu0 %v2988
        %v3071 = vpop.f32.mrf.mxu0
        %v3072 = vadd.f32 %v2995, %v3071
        %v3073 = vpop.f32.mrf.mxu0
        %v3074 = vpop.f32.mrf.mxu0
        %v3075 = vadd.f32 %v2995, %v3074
        %v3076 = vpop.f32.mrf.mxu0
        %3077 = vdwg.mxu0
        %v3078 = vadd.f32 %v2723, %v3072
        %v3079 = vadd.f32 %v2724, %v3075
        %v3080 = vld [vmem:[%s1231] sm:$0x1]
        %v3081 = vld [vmem:[%s1234] sm:$0x1]
        %v3082 = vsel %vm1529, %v3078, 0.0
        %3083 = vadd.xlane.f32.xlu0 %v3082
        %v3084 = vpop.xlane.xlu0 %3083
        %v3085 = vsel %vm1529, %v3079, 0.0
        %3086 = vadd.xlane.f32.xlu0 %v3085
        %v3087 = vpop.xlane.xlu0 %3086
        %v3088 = vmul.f32 %v3084, %v2682
        %v3089 = vmul.f32 %v3087, %v2682
        %v3090 = vmul.f32 %v3078, %v3078
        %v3091 = vmul.f32 %v3079, %v3079
        %v3092 = vsel %vm1529, %v3090, 0.0
        %3093 = vadd.xlane.f32.xlu0 %v3092
        %v3094 = vpop.xlane.xlu0 %3093
        %v3095 = vsel %vm1529, %v3091, 0.0
        %3096 = vadd.xlane.f32.xlu0 %v3095
        %v3097 = vpop.xlane.xlu0 %3096
        %v3098 = vmul.f32 %v3094, %v2682
        %v3099 = vmul.f32 %v3097, %v2682
        %v3100 = vmul.f32 %v3088, %v3088
        %v3101 = vmul.f32 %v3089, %v3089
        %v3102 = vsub.f32 %v3098, %v3100
        %v3103 = vsub.f32 %v3099, %v3101
        %v3104 = vmax.f32 %v3102, 0.0
        %v3105 = vmax.f32 %v3103, 0.0
        %v3106 = vsub.f32 %v3078, %v3088
        %v3107 = vsub.f32 %v3079, %v3089
        %v3108 = vadd.f32 %v3104, 1e-05
        %v3109 = vadd.f32 %v3105, 1e-05
        %v3110 = vrsqrt.pop %v3108
        %v3111 = vrsqrt.pop %v3109
        %v3112 = vmul.f32 %v3106, %v3110
        %v3113 = vmul.f32 %v3107, %v3111
        %v3115 = vlaneseq
        %v3116 = vshrl.u32 %v3115, 7
        %v3117 = vsub.s32 0, %v3116
        %v3118 = vrot.slane %v3080, %v3117
        %v3120 = vmul.f32 %v3112, %v3118
        %v3121 = vmul.f32 %v3113, %v3118
        %v3123 = vlaneseq
        %v3124 = vshrl.u32 %v3123, 7
        %v3125 = vsub.s32 0, %v3124
        %v3126 = vrot.slane %v3081, %v3125
        %v3128 = vadd.f32 %v3120, %v3126
        %v3129 = vadd.f32 %v3121, %v3126
        %3130 = vst.msk [vmem:[#allocation2] sm:$0xff] %vm1529, %v3128
        %3131 = vst.msk [vmem:[#allocation2 + $0x8] sm:$0xff] %vm1529, %v3129
        %p3132 = scmp.eq.s32.totalorder %s83, 1
        // Predicated region
        $region165: #{tpu_custom_call.1} parent=159 // pred_check
          %p3133 = pneg %p3132
        $region166: #{tpu_custom_call.1} parent=159 // pred_check_branch
          %3135 = sbr.rel (%p3133) target = $region168
        $region167: #{tpu_custom_call.1} parent=159 // pred_region
          %v3136 = vld [vmem:[#allocation2] sm:$0xff]
          %v3137 = vld [vmem:[#allocation2 + $0x8] sm:$0xff]
          %v3138 = vsel %vm1529, %v3136, 0.0
          %v3139 = vrot.slane %v3138, 4
          %v3140 = vadd.f32 %v3138, %v3139
          %v3141 = vrot.slane %v3140, 2
          %v3142 = vadd.f32 %v3140, %v3141
          %v3143 = vrot.slane %v3142, 1
          %v3144 = vadd.f32 %v3142, %v3143
          %v3145 = vsel %vm1529, %v3137, 0.0
          %v3146 = vrot.slane %v3145, 4
          %v3147 = vadd.f32 %v3145, %v3146
          %v3148 = vrot.slane %v3147, 2
          %v3149 = vadd.f32 %v3147, %v3148
          %v3150 = vrot.slane %v3149, 1
          %v3151 = vadd.f32 %v3149, %v3150
          %v3152 = vmul.f32 %v3144, 0.125
          %v3153 = vmul.f32 %v3151, 0.125
          %v3154 = vld [vmem:[%s35] sm:$0xf]
          %v3155 = vld [vmem:[%s35 + $0x4] sm:$0xf]
          %v3156 = vld [vmem:[%s35 + $0x8] sm:$0xf]
          %v3157 = vld [vmem:[%s35 + $0xc] sm:$0xf]
          %v3158 = vld [vmem:[%s35 + $0x10] sm:$0xf]
          %v3159 = vld [vmem:[%s35 + $0x14] sm:$0xf]
          %v3160 = vld [vmem:[%s35 + $0x18] sm:$0xf]
          %v3161 = vld [vmem:[%s35 + $0x1c] sm:$0xf]
          %v3162 = vld [vmem:[%s35 + $0x20] sm:$0xf]
          %v3163 = vld [vmem:[%s35 + $0x24] sm:$0xf]
          %v3164 = vld [vmem:[%s35 + $0x28] sm:$0xf]
          %v3165 = vld [vmem:[%s35 + $0x2c] sm:$0xf]
          %v3166 = vld [vmem:[%s35 + $0x30] sm:$0xf]
          %v3167 = vld [vmem:[%s35 + $0x34] sm:$0xf]
          %v3168 = vld [vmem:[%s35 + $0x38] sm:$0xf]
          %v3169 = vld [vmem:[%s35 + $0x3c] sm:$0xf]
          %v3170 = vld [vmem:[%s35 + $0x40] sm:$0xf]
          %v3171 = vld [vmem:[%s35 + $0x44] sm:$0xf]
          %v3172 = vld [vmem:[%s35 + $0x48] sm:$0xf]
          %v3173 = vld [vmem:[%s35 + $0x4c] sm:$0xf]
          %v3174 = vld [vmem:[%s35 + $0x50] sm:$0xf]
          %v3175 = vld [vmem:[%s35 + $0x54] sm:$0xf]
          %v3176 = vld [vmem:[%s35 + $0x58] sm:$0xf]
          %v3177 = vld [vmem:[%s35 + $0x5c] sm:$0xf]
          %v3178 = vld [vmem:[%s35 + $0x60] sm:$0xf]
          %v3179 = vld [vmem:[%s35 + $0x64] sm:$0xf]
          %v3180 = vld [vmem:[%s35 + $0x68] sm:$0xf]
          %v3181 = vld [vmem:[%s35 + $0x6c] sm:$0xf]
          %v3182 = vld [vmem:[%s35 + $0x70] sm:$0xf]
          %v3183 = vld [vmem:[%s35 + $0x74] sm:$0xf]
          %v3184 = vld [vmem:[%s35 + $0x78] sm:$0xf]
          %v3185 = vld [vmem:[%s35 + $0x7c] sm:$0xf]
          %v3186 = vld [vmem:[%s35 + $0x80] sm:$0xf]
          %v3187 = vld [vmem:[%s35 + $0x84] sm:$0xf]
          %v3188 = vld [vmem:[%s35 + $0x88] sm:$0xf]
          %v3189 = vld [vmem:[%s35 + $0x8c] sm:$0xf]
          %v3190 = vld [vmem:[%s35 + $0x90] sm:$0xf]
          %v3191 = vld [vmem:[%s35 + $0x94] sm:$0xf]
          %v3192 = vld [vmem:[%s35 + $0x98] sm:$0xf]
          %v3193 = vld [vmem:[%s35 + $0x9c] sm:$0xf]
          %v3194 = vld [vmem:[%s35 + $0xa0] sm:$0xf]
          %v3195 = vld [vmem:[%s35 + $0xa4] sm:$0xf]
          %v3196 = vld [vmem:[%s35 + $0xa8] sm:$0xf]
          %v3197 = vld [vmem:[%s35 + $0xac] sm:$0xf]
          %v3198 = vld [vmem:[%s35 + $0xb0] sm:$0xf]
          %v3199 = vld [vmem:[%s35 + $0xb4] sm:$0xf]
          %v3200 = vld [vmem:[%s35 + $0xb8] sm:$0xf]
          %v3201 = vld [vmem:[%s35 + $0xbc] sm:$0xf]
          %v3202 = vld [vmem:[%s35 + $0xc0] sm:$0xf]
          %v3203 = vld [vmem:[%s35 + $0xc4] sm:$0xf]
          %v3204 = vld [vmem:[%s35 + $0xc8] sm:$0xf]
          %v3205 = vld [vmem:[%s35 + $0xcc] sm:$0xf]
          %v3206 = vld [vmem:[%s35 + $0xd0] sm:$0xf]
          %v3207 = vld [vmem:[%s35 + $0xd4] sm:$0xf]
          %v3208 = vld [vmem:[%s35 + $0xd8] sm:$0xf]
          %v3209 = vld [vmem:[%s35 + $0xdc] sm:$0xf]
          %v3210 = vld [vmem:[%s35 + $0xe0] sm:$0xf]
          %v3211 = vld [vmem:[%s35 + $0xe4] sm:$0xf]
          %v3212 = vld [vmem:[%s35 + $0xe8] sm:$0xf]
          %v3213 = vld [vmem:[%s35 + $0xec] sm:$0xf]
          %v3214 = vld [vmem:[%s35 + $0xf0] sm:$0xf]
          %v3215 = vld [vmem:[%s35 + $0xf4] sm:$0xf]
          %v3216 = vld [vmem:[%s35 + $0xf8] sm:$0xf]
          %v3217 = vld [vmem:[%s35 + $0xfc] sm:$0xf]
          %v3218 = vld [vmem:[%s35 + $0x100] sm:$0xf]
          %v3219 = vld [vmem:[%s35 + $0x104] sm:$0xf]
          %v3220 = vld [vmem:[%s35 + $0x108] sm:$0xf]
          %v3221 = vld [vmem:[%s35 + $0x10c] sm:$0xf]
          %v3222 = vld [vmem:[%s35 + $0x110] sm:$0xf]
          %v3223 = vld [vmem:[%s35 + $0x114] sm:$0xf]
          %v3224 = vld [vmem:[%s35 + $0x118] sm:$0xf]
          %v3225 = vld [vmem:[%s35 + $0x11c] sm:$0xf]
          %v3226 = vld [vmem:[%s35 + $0x120] sm:$0xf]
          %v3227 = vld [vmem:[%s35 + $0x124] sm:$0xf]
          %v3228 = vld [vmem:[%s35 + $0x128] sm:$0xf]
          %v3229 = vld [vmem:[%s35 + $0x12c] sm:$0xf]
          %v3230 = vld [vmem:[%s35 + $0x130] sm:$0xf]
          %v3231 = vld [vmem:[%s35 + $0x134] sm:$0xf]
          %v3232 = vld [vmem:[%s35 + $0x138] sm:$0xf]
          %v3233 = vld [vmem:[%s35 + $0x13c] sm:$0xf]
          %v3234 = vld [vmem:[%s35 + $0x140] sm:$0xf]
          %v3235 = vld [vmem:[%s35 + $0x144] sm:$0xf]
          %v3236 = vld [vmem:[%s35 + $0x148] sm:$0xf]
          %v3237 = vld [vmem:[%s35 + $0x14c] sm:$0xf]
          %v3238 = vld [vmem:[%s35 + $0x150] sm:$0xf]
          %v3239 = vld [vmem:[%s35 + $0x154] sm:$0xf]
          %v3240 = vld [vmem:[%s35 + $0x158] sm:$0xf]
          %v3241 = vld [vmem:[%s35 + $0x15c] sm:$0xf]
          %v3242 = vld [vmem:[%s35 + $0x160] sm:$0xf]
          %v3243 = vld [vmem:[%s35 + $0x164] sm:$0xf]
          %v3244 = vld [vmem:[%s35 + $0x168] sm:$0xf]
          %v3245 = vld [vmem:[%s35 + $0x16c] sm:$0xf]
          %v3246 = vld [vmem:[%s35 + $0x170] sm:$0xf]
          %v3247 = vld [vmem:[%s35 + $0x174] sm:$0xf]
          %v3248 = vld [vmem:[%s35 + $0x178] sm:$0xf]
          %v3249 = vld [vmem:[%s35 + $0x17c] sm:$0xf]
          %v3250 = vpack.c.bf16 %v3152, %v3152
          %v3251 = vpack.c.bf16 %v3153, %v3153
          %v3252 = vld [vmem:[%s37] sm:$0x3f]
          %v3254 = vlaneseq
          %v3255 = vshrl.u32 %v3254, 7
          %v3256 = vsub.s32 0, %v3255
          %v3257 = vrot.slane %v3252, %v3256
          %v3258 = vlaneseq
          %v3259 = vshrl.u32 %v3258, 7
          %v3260 = vsub.s32 1, %v3259
          %v3261 = vrot.slane %v3252, %v3260
          %v3262 = vlaneseq
          %v3263 = vshrl.u32 %v3262, 7
          %v3264 = vsub.s32 2, %v3263
          %v3265 = vrot.slane %v3252, %v3264
          %v3266 = vlaneseq
          %v3267 = vshrl.u32 %v3266, 7
          %v3268 = vsub.s32 3, %v3267
          %v3269 = vrot.slane %v3252, %v3268
          %v3270 = vlaneseq
          %v3271 = vshrl.u32 %v3270, 7
          %v3272 = vsub.s32 4, %v3271
          %v3273 = vrot.slane %v3252, %v3272
          %v3274 = vlaneseq
          %v3275 = vshrl.u32 %v3274, 7
          %v3276 = vsub.s32 5, %v3275
          %v3277 = vrot.slane %v3252, %v3276
          %v3286 = vunpack.c.l.b16 %v3250
          %v3287 = vunpack.c.l.b16 %v3251
          %vm3288 = vcmask 1041409
          %v3289 = vsel %vm3288, %v3287, %v3286
          %v3290 = vpack.c.b16 %v3289, %v3289
          %v3387 = vunpack.c.l.b16 %v3154
          %v3388 = vunpack.c.l.b16 %v3155
          %v3389 = vunpack.c.l.b16 %v3156
          %v3390 = vunpack.c.l.b16 %v3157
          %v3391 = vunpack.c.l.b16 %v3158
          %v3392 = vunpack.c.l.b16 %v3159
          %v3393 = vunpack.c.l.b16 %v3160
          %v3394 = vunpack.c.l.b16 %v3161
          %v3395 = vunpack.c.l.b16 %v3162
          %v3396 = vunpack.c.l.b16 %v3163
          %v3397 = vunpack.c.l.b16 %v3164
          %v3398 = vunpack.c.l.b16 %v3165
          %v3399 = vunpack.c.l.b16 %v3166
          %v3400 = vunpack.c.l.b16 %v3167
          %v3401 = vunpack.c.l.b16 %v3168
          %v3402 = vunpack.c.l.b16 %v3169
          %v3403 = vunpack.c.l.b16 %v3170
          %v3404 = vunpack.c.l.b16 %v3171
          %v3405 = vunpack.c.l.b16 %v3172
          %v3406 = vunpack.c.l.b16 %v3173
          %v3407 = vunpack.c.l.b16 %v3174
          %v3408 = vunpack.c.l.b16 %v3175
          %v3409 = vunpack.c.l.b16 %v3176
          %v3410 = vunpack.c.l.b16 %v3177
          %v3411 = vunpack.c.l.b16 %v3178
          %v3412 = vunpack.c.l.b16 %v3179
          %v3413 = vunpack.c.l.b16 %v3180
          %v3414 = vunpack.c.l.b16 %v3181
          %v3415 = vunpack.c.l.b16 %v3182
          %v3416 = vunpack.c.l.b16 %v3183
          %v3417 = vunpack.c.l.b16 %v3184
          %v3418 = vunpack.c.l.b16 %v3185
          %v3419 = vunpack.c.l.b16 %v3186
          %v3420 = vunpack.c.l.b16 %v3187
          %v3421 = vunpack.c.l.b16 %v3188
          %v3422 = vunpack.c.l.b16 %v3189
          %v3423 = vunpack.c.l.b16 %v3190
          %v3424 = vunpack.c.l.b16 %v3191
          %v3425 = vunpack.c.l.b16 %v3192
          %v3426 = vunpack.c.l.b16 %v3193
          %v3427 = vunpack.c.l.b16 %v3194
          %v3428 = vunpack.c.l.b16 %v3195
          %v3429 = vunpack.c.l.b16 %v3196
          %v3430 = vunpack.c.l.b16 %v3197
          %v3431 = vunpack.c.l.b16 %v3198
          %v3432 = vunpack.c.l.b16 %v3199
          %v3433 = vunpack.c.l.b16 %v3200
          %v3434 = vunpack.c.l.b16 %v3201
          %v3435 = vunpack.c.l.b16 %v3202
          %v3436 = vunpack.c.l.b16 %v3203
          %v3437 = vunpack.c.l.b16 %v3204
          %v3438 = vunpack.c.l.b16 %v3205
          %v3439 = vunpack.c.l.b16 %v3206
          %v3440 = vunpack.c.l.b16 %v3207
          %v3441 = vunpack.c.l.b16 %v3208
          %v3442 = vunpack.c.l.b16 %v3209
          %v3443 = vunpack.c.l.b16 %v3210
          %v3444 = vunpack.c.l.b16 %v3211
          %v3445 = vunpack.c.l.b16 %v3212
          %v3446 = vunpack.c.l.b16 %v3213
          %v3447 = vunpack.c.l.b16 %v3214
          %v3448 = vunpack.c.l.b16 %v3215
          %v3449 = vunpack.c.l.b16 %v3216
          %v3450 = vunpack.c.l.b16 %v3217
          %v3451 = vunpack.c.l.b16 %v3218
          %v3452 = vunpack.c.l.b16 %v3219
          %v3453 = vunpack.c.l.b16 %v3220
          %v3454 = vunpack.c.l.b16 %v3221
          %v3455 = vunpack.c.l.b16 %v3222
          %v3456 = vunpack.c.l.b16 %v3223
          %v3457 = vunpack.c.l.b16 %v3224
          %v3458 = vunpack.c.l.b16 %v3225
          %v3459 = vunpack.c.l.b16 %v3226
          %v3460 = vunpack.c.l.b16 %v3227
          %v3461 = vunpack.c.l.b16 %v3228
          %v3462 = vunpack.c.l.b16 %v3229
          %v3463 = vunpack.c.l.b16 %v3230
          %v3464 = vunpack.c.l.b16 %v3231
          %v3465 = vunpack.c.l.b16 %v3232
          %v3466 = vunpack.c.l.b16 %v3233
          %v3467 = vunpack.c.l.b16 %v3234
          %v3468 = vunpack.c.l.b16 %v3235
          %v3469 = vunpack.c.l.b16 %v3236
          %v3470 = vunpack.c.l.b16 %v3237
          %v3471 = vunpack.c.l.b16 %v3238
          %v3472 = vunpack.c.l.b16 %v3239
          %v3473 = vunpack.c.l.b16 %v3240
          %v3474 = vunpack.c.l.b16 %v3241
          %v3475 = vunpack.c.l.b16 %v3242
          %v3476 = vunpack.c.l.b16 %v3243
          %v3477 = vunpack.c.l.b16 %v3244
          %v3478 = vunpack.c.l.b16 %v3245
          %v3479 = vunpack.c.l.b16 %v3246
          %v3480 = vunpack.c.l.b16 %v3247
          %v3481 = vunpack.c.l.b16 %v3248
          %v3482 = vunpack.c.l.b16 %v3249
          %v3483 = vpack.c.b16 %v3388, %v3387
          %v3484 = vpack.c.b16 %v3390, %v3389
          %v3485 = vpack.c.b16 %v3392, %v3391
          %v3486 = vpack.c.b16 %v3394, %v3393
          %v3487 = vpack.c.b16 %v3396, %v3395
          %v3488 = vpack.c.b16 %v3398, %v3397
          %v3489 = vpack.c.b16 %v3400, %v3399
          %v3490 = vpack.c.b16 %v3402, %v3401
          %v3491 = vpack.c.b16 %v3404, %v3403
          %v3492 = vpack.c.b16 %v3406, %v3405
          %v3493 = vpack.c.b16 %v3408, %v3407
          %v3494 = vpack.c.b16 %v3410, %v3409
          %v3495 = vpack.c.b16 %v3412, %v3411
          %v3496 = vpack.c.b16 %v3414, %v3413
          %v3497 = vpack.c.b16 %v3416, %v3415
          %v3498 = vpack.c.b16 %v3418, %v3417
          %v3499 = vpack.c.b16 %v3420, %v3419
          %v3500 = vpack.c.b16 %v3422, %v3421
          %v3501 = vpack.c.b16 %v3424, %v3423
          %v3502 = vpack.c.b16 %v3426, %v3425
          %v3503 = vpack.c.b16 %v3428, %v3427
          %v3504 = vpack.c.b16 %v3430, %v3429
          %v3505 = vpack.c.b16 %v3432, %v3431
          %v3506 = vpack.c.b16 %v3434, %v3433
          %v3507 = vpack.c.b16 %v3436, %v3435
          %v3508 = vpack.c.b16 %v3438, %v3437
          %v3509 = vpack.c.b16 %v3440, %v3439
          %v3510 = vpack.c.b16 %v3442, %v3441
          %v3511 = vpack.c.b16 %v3444, %v3443
          %v3512 = vpack.c.b16 %v3446, %v3445
          %v3513 = vpack.c.b16 %v3448, %v3447
          %v3514 = vpack.c.b16 %v3450, %v3449
          %v3515 = vpack.c.b16 %v3452, %v3451
          %v3516 = vpack.c.b16 %v3454, %v3453
          %v3517 = vpack.c.b16 %v3456, %v3455
          %v3518 = vpack.c.b16 %v3458, %v3457
          %v3519 = vpack.c.b16 %v3460, %v3459
          %v3520 = vpack.c.b16 %v3462, %v3461
          %v3521 = vpack.c.b16 %v3464, %v3463
          %v3522 = vpack.c.b16 %v3466, %v3465
          %v3523 = vpack.c.b16 %v3468, %v3467
          %v3524 = vpack.c.b16 %v3470, %v3469
          %v3525 = vpack.c.b16 %v3472, %v3471
          %v3526 = vpack.c.b16 %v3474, %v3473
          %v3527 = vpack.c.b16 %v3476, %v3475
          %v3528 = vpack.c.b16 %v3478, %v3477
          %v3529 = vpack.c.b16 %v3480, %v3479
          %v3530 = vpack.c.b16 %v3482, %v3481
          %v3532 = vsel %vm1529, %v3290, 0
          %v3535 = vsel %vm1529, %v3483, 0
          %v3538 = vsel %vm1529, %v3484, 0
          %v3541 = vsel %vm1529, %v3485, 0
          %v3544 = vsel %vm1529, %v3486, 0
          %v3547 = vsel %vm1529, %v3487, 0
          %v3550 = vsel %vm1529, %v3488, 0
          %v3553 = vsel %vm1529, %v3489, 0
          %v3556 = vsel %vm1529, %v3490, 0
          %v3559 = vsel %vm1529, %v3491, 0
          %v3562 = vsel %vm1529, %v3492, 0
          %v3565 = vsel %vm1529, %v3493, 0
          %v3568 = vsel %vm1529, %v3494, 0
          %v3571 = vsel %vm1529, %v3495, 0
          %v3574 = vsel %vm1529, %v3496, 0
          %v3577 = vsel %vm1529, %v3497, 0
          %v3580 = vsel %vm1529, %v3498, 0
          %v3583 = vsel %vm1529, %v3499, 0
          %v3586 = vsel %vm1529, %v3500, 0
          %v3589 = vsel %vm1529, %v3501, 0
          %v3592 = vsel %vm1529, %v3502, 0
          %v3595 = vsel %vm1529, %v3503, 0
          %v3598 = vsel %vm1529, %v3504, 0
          %v3601 = vsel %vm1529, %v3505, 0
          %v3604 = vsel %vm1529, %v3506, 0
          %v3607 = vsel %vm1529, %v3507, 0
          %v3610 = vsel %vm1529, %v3508, 0
          %v3613 = vsel %vm1529, %v3509, 0
          %v3616 = vsel %vm1529, %v3510, 0
          %v3619 = vsel %vm1529, %v3511, 0
          %v3622 = vsel %vm1529, %v3512, 0
          %v3625 = vsel %vm1529, %v3513, 0
          %v3628 = vsel %vm1529, %v3514, 0
          %v3631 = vsel %vm1529, %v3515, 0
          %v3634 = vsel %vm1529, %v3516, 0
          %v3637 = vsel %vm1529, %v3517, 0
          %v3640 = vsel %vm1529, %v3518, 0
          %v3643 = vsel %vm1529, %v3519, 0
          %v3646 = vsel %vm1529, %v3520, 0
          %v3649 = vsel %vm1529, %v3521, 0
          %v3652 = vsel %vm1529, %v3522, 0
          %v3655 = vsel %vm1529, %v3523, 0
          %v3658 = vsel %vm1529, %v3524, 0
          %v3661 = vsel %vm1529, %v3525, 0
          %v3664 = vsel %vm1529, %v3526, 0
          %v3667 = vsel %vm1529, %v3527, 0
          %v3670 = vsel %vm1529, %v3528, 0
          %v3673 = vsel %vm1529, %v3529, 0
          %v3676 = vsel %vm1529, %v3530, 0
          %3678 = vmatprep.subr.bf16.mxu0 0
          %3679 = vmatpush1.bf16.xpose.msra.mxu0 %v3556
          %3680 = vmatprep.subr.bf16.mxu0 0
          %3681 = vmatpush1.bf16.xpose.msra.mxu0 %v3553
          %3682 = vmatprep.subr.bf16.mxu0 0
          %3683 = vmatpush1.bf16.xpose.msra.mxu0 %v3550
          %3684 = vmatprep.subr.bf16.mxu0 0
          %3685 = vmatpush1.bf16.xpose.msra.mxu0 %v3547
          %3686 = vmatprep.subr.bf16.mxu0 0
          %3687 = vmatpush1.bf16.xpose.msra.mxu0 %v3544
          %3688 = vmatprep.subr.bf16.mxu0 0
          %3689 = vmatpush1.bf16.xpose.msra.mxu0 %v3541
          %3690 = vmatprep.subr.bf16.mxu0 0
          %3691 = vmatpush1.bf16.xpose.msra.mxu0 %v3538
          %3692 = vmatprep.subr.bf16.mxu0 0
          %3693 = vmatpush1.bf16.xpose.msra.mxu0 %v3535
          %3694 = vmatprep.subr.bf16.mxu0 0
          %3695 = vmatpush2.bf16.xpose.msra.mxu0 %v3580
          %3696 = vmatprep.subr.bf16.mxu0 0
          %3697 = vmatpush2.bf16.xpose.msra.mxu0 %v3577
          %3698 = vmatprep.subr.bf16.mxu0 0
          %3699 = vmatpush2.bf16.xpose.msra.mxu0 %v3574
          %3700 = vmatprep.subr.bf16.mxu0 0
          %3701 = vmatpush2.bf16.xpose.msra.mxu0 %v3571
          %3702 = vmatprep.subr.bf16.mxu0 0
          %3703 = vmatpush2.bf16.xpose.msra.mxu0 %v3568
          %3704 = vmatprep.subr.bf16.mxu0 0
          %3705 = vmatpush2.bf16.xpose.msra.mxu0 %v3565
          %3706 = vmatprep.subr.bf16.mxu0 0
          %3707 = vmatpush2.bf16.xpose.msra.mxu0 %v3562
          %3708 = vmatprep.subr.bf16.mxu0 0
          %3709 = vmatpush2.bf16.xpose.msra.mxu0 %v3559
          %3710 = vmatprep.mubr.bf16.mxu0 0
          %3711 = vmatmul.mubr.bf16.gmra.mxu0 %v3532
          %v3712 = vpop.f32.mrf.mxu0
          %v3713 = vadd.f32 %v3257, %v3712
          %v3714 = vpop.f32.mrf.mxu0
          %v3715 = vadd.f32 %v3261, %v3714
          %v3716 = vpop.f32.mrf.mxu0
          %v3717 = vpop.f32.mrf.mxu0
          %3718 = vdwg.mxu0
          %3719 = vmatprep.subr.bf16.mxu0 0
          %3720 = vmatpush1.bf16.xpose.msra.mxu0 %v3604
          %3721 = vmatprep.subr.bf16.mxu0 0
          %3722 = vmatpush1.bf16.xpose.msra.mxu0 %v3601
          %3723 = vmatprep.subr.bf16.mxu0 0
          %3724 = vmatpush1.bf16.xpose.msra.mxu0 %v3598
          %3725 = vmatprep.subr.bf16.mxu0 0
          %3726 = vmatpush1.bf16.xpose.msra.mxu0 %v3595
          %3727 = vmatprep.subr.bf16.mxu0 0
          %3728 = vmatpush1.bf16.xpose.msra.mxu0 %v3592
          %3729 = vmatprep.subr.bf16.mxu0 0
          %3730 = vmatpush1.bf16.xpose.msra.mxu0 %v3589
          %3731 = vmatprep.subr.bf16.mxu0 0
          %3732 = vmatpush1.bf16.xpose.msra.mxu0 %v3586
          %3733 = vmatprep.subr.bf16.mxu0 0
          %3734 = vmatpush1.bf16.xpose.msra.mxu0 %v3583
          %3735 = vmatprep.subr.bf16.mxu0 0
          %3736 = vmatpush2.bf16.xpose.msra.mxu0 %v3628
          %3737 = vmatprep.subr.bf16.mxu0 0
          %3738 = vmatpush2.bf16.xpose.msra.mxu0 %v3625
          %3739 = vmatprep.subr.bf16.mxu0 0
          %3740 = vmatpush2.bf16.xpose.msra.mxu0 %v3622
          %3741 = vmatprep.subr.bf16.mxu0 0
          %3742 = vmatpush2.bf16.xpose.msra.mxu0 %v3619
          %3743 = vmatprep.subr.bf16.mxu0 0
          %3744 = vmatpush2.bf16.xpose.msra.mxu0 %v3616
          %3745 = vmatprep.subr.bf16.mxu0 0
          %3746 = vmatpush2.bf16.xpose.msra.mxu0 %v3613
          %3747 = vmatprep.subr.bf16.mxu0 0
          %3748 = vmatpush2.bf16.xpose.msra.mxu0 %v3610
          %3749 = vmatprep.subr.bf16.mxu0 0
          %3750 = vmatpush2.bf16.xpose.msra.mxu0 %v3607
          %3751 = vmatprep.mubr.bf16.mxu0 0
          %3752 = vmatmul.mubr.bf16.gmra.mxu0 %v3532
          %v3753 = vpop.f32.mrf.mxu0
          %v3754 = vadd.f32 %v3265, %v3753
          %v3755 = vpop.f32.mrf.mxu0
          %v3756 = vadd.f32 %v3269, %v3755
          %v3757 = vpop.f32.mrf.mxu0
          %v3758 = vpop.f32.mrf.mxu0
          %3759 = vdwg.mxu0
          %3760 = vmatprep.subr.bf16.mxu0 0
          %3761 = vmatpush1.bf16.xpose.msra.mxu0 %v3652
          %3762 = vmatprep.subr.bf16.mxu0 0
          %3763 = vmatpush1.bf16.xpose.msra.mxu0 %v3649
          %3764 = vmatprep.subr.bf16.mxu0 0
          %3765 = vmatpush1.bf16.xpose.msra.mxu0 %v3646
          %3766 = vmatprep.subr.bf16.mxu0 0
          %3767 = vmatpush1.bf16.xpose.msra.mxu0 %v3643
          %3768 = vmatprep.subr.bf16.mxu0 0
          %3769 = vmatpush1.bf16.xpose.msra.mxu0 %v3640
          %3770 = vmatprep.subr.bf16.mxu0 0
          %3771 = vmatpush1.bf16.xpose.msra.mxu0 %v3637
          %3772 = vmatprep.subr.bf16.mxu0 0
          %3773 = vmatpush1.bf16.xpose.msra.mxu0 %v3634
          %3774 = vmatprep.subr.bf16.mxu0 0
          %3775 = vmatpush1.bf16.xpose.msra.mxu0 %v3631
          %3776 = vmatprep.subr.bf16.mxu0 0
          %3777 = vmatpush2.bf16.xpose.msra.mxu0 %v3676
          %3778 = vmatprep.subr.bf16.mxu0 0
          %3779 = vmatpush2.bf16.xpose.msra.mxu0 %v3673
          %3780 = vmatprep.subr.bf16.mxu0 0
          %3781 = vmatpush2.bf16.xpose.msra.mxu0 %v3670
          %3782 = vmatprep.subr.bf16.mxu0 0
          %3783 = vmatpush2.bf16.xpose.msra.mxu0 %v3667
          %3784 = vmatprep.subr.bf16.mxu0 0
          %3785 = vmatpush2.bf16.xpose.msra.mxu0 %v3664
          %3786 = vmatprep.subr.bf16.mxu0 0
          %3787 = vmatpush2.bf16.xpose.msra.mxu0 %v3661
          %3788 = vmatprep.subr.bf16.mxu0 0
          %3789 = vmatpush2.bf16.xpose.msra.mxu0 %v3658
          %3790 = vmatprep.subr.bf16.mxu0 0
          %3791 = vmatpush2.bf16.xpose.msra.mxu0 %v3655
          %3792 = vmatprep.mubr.bf16.mxu0 0
          %3793 = vmatmul.mubr.bf16.gmra.mxu0 %v3532
          %v3794 = vpop.f32.mrf.mxu0
          %v3795 = vadd.f32 %v3273, %v3794
          %v3796 = vpop.f32.mrf.mxu0
          %v3797 = vadd.f32 %v3277, %v3796
          %v3798 = vpop.f32.mrf.mxu0
          %v3799 = vpop.f32.mrf.mxu0
          %3800 = vdwg.mxu0
          %v3801 = vmul.f32 %v3713, 0.5
          %v3802 = vmul.f32 %v3715, 0.5
          %v3803 = vmul.f32 %v3754, 0.5
          %v3804 = vmul.f32 %v3756, 0.5
          %v3805 = vmul.f32 %v3795, 0.5
          %v3806 = vmul.f32 %v3797, 0.5
          %v3807 = vmul.f32 %v3713, 0.044715
          %v3808 = vmul.f32 %v3715, 0.044715
          %v3809 = vmul.f32 %v3754, 0.044715
          %v3810 = vmul.f32 %v3756, 0.044715
          %v3811 = vmul.f32 %v3795, 0.044715
          %v3812 = vmul.f32 %v3797, 0.044715
          %v3813 = vmul.f32 %v3807, %v3713
          %v3814 = vmul.f32 %v3808, %v3715
          %v3815 = vmul.f32 %v3809, %v3754
          %v3816 = vmul.f32 %v3810, %v3756
          %v3817 = vmul.f32 %v3811, %v3795
          %v3818 = vmul.f32 %v3812, %v3797
          %v3819 = vmul.f32 %v3813, %v3713
          %v3820 = vmul.f32 %v3814, %v3715
          %v3821 = vmul.f32 %v3815, %v3754
          %v3822 = vmul.f32 %v3816, %v3756
          %v3823 = vmul.f32 %v3817, %v3795
          %v3824 = vmul.f32 %v3818, %v3797
          %v3825 = vadd.f32 %v3713, %v3819
          %v3826 = vadd.f32 %v3715, %v3820
          %v3827 = vadd.f32 %v3754, %v3821
          %v3828 = vadd.f32 %v3756, %v3822
          %v3829 = vadd.f32 %v3795, %v3823
          %v3830 = vadd.f32 %v3797, %v3824
          %v3831 = vmul.f32 %v3825, 0.7978846
          %v3832 = vmul.f32 %v3826, 0.7978846
          %v3833 = vmul.f32 %v3827, 0.7978846
          %v3834 = vmul.f32 %v3828, 0.7978846
          %v3835 = vmul.f32 %v3829, 0.7978846
          %v3836 = vmul.f32 %v3830, 0.7978846
          %v3837 = vtanh.pop %v3831
          %v3838 = vtanh.pop %v3832
          %v3839 = vtanh.pop %v3833
          %v3840 = vtanh.pop %v3834
          %v3841 = vtanh.pop %v3835
          %v3842 = vtanh.pop %v3836
          %v3843 = vadd.f32 %v3837, 1.0
          %v3844 = vadd.f32 %v3838, 1.0
          %v3845 = vadd.f32 %v3839, 1.0
          %v3846 = vadd.f32 %v3840, 1.0
          %v3847 = vadd.f32 %v3841, 1.0
          %v3848 = vadd.f32 %v3842, 1.0
          %v3849 = vmul.f32 %v3801, %v3843
          %v3850 = vmul.f32 %v3802, %v3844
          %v3851 = vmul.f32 %v3803, %v3845
          %v3852 = vmul.f32 %v3804, %v3846
          %v3853 = vmul.f32 %v3805, %v3847
          %v3854 = vmul.f32 %v3806, %v3848
          %v3855 = vld [vmem:[%s39] sm:$0x3]
          %v3856 = vld [vmem:[%s41] sm:$0x3]
          %vm3857 = vcmask 1041408
          %v3858 = vsel %vm3857, %v3849, 0.0
          %v3859 = vsel %vm3857, %v3850, 0.0
          %v3860 = vadd.f32 %v3858, %v3859
          %3861 = vadd.xlane.f32.xlu0 %v3860
          %v3862 = vpop.xlane.xlu0 %3861
          %v3863 = vrcp.pop 256.0
          %v3864 = vmul.f32 %v3862, %v3863
          %v3865 = vmul.f32 %v3849, %v3849
          %v3866 = vmul.f32 %v3850, %v3850
          %v3867 = vsel %vm3857, %v3865, 0.0
          %v3868 = vsel %vm3857, %v3866, 0.0
          %v3869 = vadd.f32 %v3867, %v3868
          %3870 = vadd.xlane.f32.xlu0 %v3869
          %v3871 = vpop.xlane.xlu0 %3870
          %v3872 = vmul.f32 %v3871, %v3863
          %v3873 = vmul.f32 %v3864, %v3864
          %v3874 = vsub.f32 %v3872, %v3873
          %v3875 = vmax.f32 %v3874, 0.0
          %v3876 = vsub.f32 %v3849, %v3864
          %v3877 = vsub.f32 %v3850, %v3864
          %v3878 = vadd.f32 %v3875, 1e-05
          %v3879 = vrsqrt.pop %v3878
          %v3880 = vmul.f32 %v3876, %v3879
          %v3881 = vmul.f32 %v3877, %v3879
          %v3883 = vlaneseq
          %v3884 = vshrl.u32 %v3883, 7
          %v3885 = vsub.s32 0, %v3884
          %v3886 = vrot.slane %v3855, %v3885
          %v3887 = vlaneseq
          %v3888 = vshrl.u32 %v3887, 7
          %v3889 = vsub.s32 1, %v3888
          %v3890 = vrot.slane %v3855, %v3889
          %v3893 = vmul.f32 %v3880, %v3886
          %v3894 = vmul.f32 %v3881, %v3890
          %v3896 = vlaneseq
          %v3897 = vshrl.u32 %v3896, 7
          %v3898 = vsub.s32 0, %v3897
          %v3899 = vrot.slane %v3856, %v3898
          %v3900 = vlaneseq
          %v3901 = vshrl.u32 %v3900, 7
          %v3902 = vsub.s32 1, %v3901
          %v3903 = vrot.slane %v3856, %v3902
          %v3906 = vadd.f32 %v3893, %v3899
          %v3907 = vadd.f32 %v3894, %v3903
          %v3908 = vld [vmem:[%s43] sm:$0xff]
          %v3909 = vld [vmem:[%s43 + $0x8] sm:$0xff]
          %v3910 = vld [vmem:[%s43 + $0x10] sm:$0xff]
          %v3911 = vld [vmem:[%s43 + $0x18] sm:$0xff]
          %v3912 = vld [vmem:[%s43 + $0x20] sm:$0xff]
          %v3913 = vld [vmem:[%s43 + $0x28] sm:$0xff]
          %v3914 = vld [vmem:[%s43 + $0x30] sm:$0xff]
          %v3915 = vld [vmem:[%s43 + $0x38] sm:$0xff]
          %v3916 = vld [vmem:[%s43 + $0x40] sm:$0xff]
          %v3917 = vld [vmem:[%s43 + $0x48] sm:$0xff]
          %v3918 = vld [vmem:[%s43 + $0x50] sm:$0xff]
          %v3919 = vld [vmem:[%s43 + $0x58] sm:$0xff]
          %v3920 = vld [vmem:[%s43 + $0x60] sm:$0xff]
          %v3921 = vld [vmem:[%s43 + $0x68] sm:$0xff]
          %v3922 = vld [vmem:[%s43 + $0x70] sm:$0xff]
          %v3923 = vld [vmem:[%s43 + $0x78] sm:$0xff]
          %v3924 = vpack.c.bf16 %v3906, %v3906
          %v3925 = vpack.c.bf16 %v3907, %v3907
          %v3926 = vld [vmem:[%s45] sm:$0x1]
          %v3928 = vlaneseq
          %v3929 = vshrl.u32 %v3928, 7
          %v3930 = vsub.s32 0, %v3929
          %v3931 = vrot.slane %v3926, %v3930
          %v3949 = vunpack.c.l.b16 %v3908
          %v3950 = vunpack.c.h.b16 %v3908
          %v3951 = vunpack.c.l.b16 %v3909
          %v3952 = vunpack.c.h.b16 %v3909
          %v3953 = vunpack.c.l.b16 %v3910
          %v3954 = vunpack.c.h.b16 %v3910
          %v3955 = vunpack.c.l.b16 %v3911
          %v3956 = vunpack.c.h.b16 %v3911
          %v3957 = vunpack.c.l.b16 %v3912
          %v3958 = vunpack.c.h.b16 %v3912
          %v3959 = vunpack.c.l.b16 %v3913
          %v3960 = vunpack.c.h.b16 %v3913
          %v3961 = vunpack.c.l.b16 %v3914
          %v3962 = vunpack.c.h.b16 %v3914
          %v3963 = vunpack.c.l.b16 %v3915
          %v3964 = vunpack.c.h.b16 %v3915
          %v3965 = vunpack.c.l.b16 %v3916
          %v3966 = vunpack.c.h.b16 %v3916
          %v3967 = vunpack.c.l.b16 %v3917
          %v3968 = vunpack.c.h.b16 %v3917
          %v3969 = vunpack.c.l.b16 %v3918
          %v3970 = vunpack.c.h.b16 %v3918
          %v3971 = vunpack.c.l.b16 %v3919
          %v3972 = vunpack.c.h.b16 %v3919
          %v3973 = vunpack.c.l.b16 %v3920
          %v3974 = vunpack.c.h.b16 %v3920
          %v3975 = vunpack.c.l.b16 %v3921
          %v3976 = vunpack.c.h.b16 %v3921
          %v3977 = vunpack.c.l.b16 %v3922
          %v3978 = vunpack.c.h.b16 %v3922
          %v3979 = vunpack.c.l.b16 %v3923
          %v3980 = vunpack.c.h.b16 %v3923
          %v3981 = vpack.c.b16 %v3951, %v3949
          %v3982 = vpack.c.b16 %v3952, %v3950
          %v3983 = vpack.c.b16 %v3955, %v3953
          %v3984 = vpack.c.b16 %v3956, %v3954
          %v3985 = vpack.c.b16 %v3959, %v3957
          %v3986 = vpack.c.b16 %v3960, %v3958
          %v3987 = vpack.c.b16 %v3963, %v3961
          %v3988 = vpack.c.b16 %v3964, %v3962
          %v3989 = vpack.c.b16 %v3967, %v3965
          %v3990 = vpack.c.b16 %v3968, %v3966
          %v3991 = vpack.c.b16 %v3971, %v3969
          %v3992 = vpack.c.b16 %v3972, %v3970
          %v3993 = vpack.c.b16 %v3975, %v3973
          %v3994 = vpack.c.b16 %v3976, %v3974
          %v3995 = vpack.c.b16 %v3979, %v3977
          %v3996 = vpack.c.b16 %v3980, %v3978
          %4013 = vmatprep.subr.bf16.mxu0 %v3996
          %4014 = vmatpush1.bf16.xpose.msra.mxu0 %v3995
          %4015 = vmatprep.subr.bf16.mxu0 %v3994
          %4016 = vmatpush1.bf16.xpose.msra.mxu0 %v3993
          %4017 = vmatprep.subr.bf16.mxu0 %v3992
          %4018 = vmatpush1.bf16.xpose.msra.mxu0 %v3991
          %4019 = vmatprep.subr.bf16.mxu0 %v3990
          %4020 = vmatpush1.bf16.xpose.msra.mxu0 %v3989
          %4021 = vmatprep.subr.bf16.mxu0 %v3988
          %4022 = vmatpush1.bf16.xpose.msra.mxu0 %v3987
          %4023 = vmatprep.subr.bf16.mxu0 %v3986
          %4024 = vmatpush1.bf16.xpose.msra.mxu0 %v3985
          %4025 = vmatprep.subr.bf16.mxu0 %v3984
          %4026 = vmatpush1.bf16.xpose.msra.mxu0 %v3983
          %4027 = vmatprep.subr.bf16.mxu0 %v3982
          %4028 = vmatpush1.bf16.xpose.msra.mxu0 %v3981
          %4029 = vmatprep.subr.bf16.mxu0 0
          %4030 = vmatpush2.bf16.xpose.msra.mxu0 0
          %4031 = vmatprep.subr.bf16.mxu0 0
          %4032 = vmatpush2.bf16.xpose.msra.mxu0 0
          %4033 = vmatprep.subr.bf16.mxu0 0
          %4034 = vmatpush2.bf16.xpose.msra.mxu0 0
          %4035 = vmatprep.subr.bf16.mxu0 0
          %4036 = vmatpush2.bf16.xpose.msra.mxu0 0
          %4037 = vmatprep.subr.bf16.mxu0 0
          %4038 = vmatpush2.bf16.xpose.msra.mxu0 0
          %4039 = vmatprep.subr.bf16.mxu0 0
          %4040 = vmatpush2.bf16.xpose.msra.mxu0 0
          %4041 = vmatprep.subr.bf16.mxu0 0
          %4042 = vmatpush2.bf16.xpose.msra.mxu0 0
          %4043 = vmatprep.subr.bf16.mxu0 0
          %4044 = vmatpush2.bf16.xpose.msra.mxu0 0
          %4045 = vmatprep.mubr.bf16.mxu0 %v3925
          %4046 = vmatmul.mubr.bf16.gmra.mxu0 %v3924
          %v4047 = vpop.f32.mrf.mxu0
          %v4048 = vadd.f32 %v3931, %v4047
          %v4049 = vpop.f32.mrf.mxu0
          %v4050 = vpop.f32.mrf.mxu0
          %v4051 = vpop.f32.mrf.mxu0
          %4052 = vdwg.mxu0
          %v4053 = vmul.f32 %v4048, 0.5
          %v4054 = vmul.f32 %v4048, 0.044715
          %v4055 = vmul.f32 %v4054, %v4048
          %v4056 = vmul.f32 %v4055, %v4048
          %v4057 = vadd.f32 %v4048, %v4056
          %v4058 = vmul.f32 %v4057, 0.7978846
          %v4059 = vtanh.pop %v4058
          %v4060 = vadd.f32 %v4059, 1.0
          %v4061 = vmul.f32 %v4053, %v4060
          %v4062 = vld [vmem:[%s47] sm:$0xf]
          %v4063 = vld [vmem:[%s47 + $0x4] sm:$0xf]
          %v4064 = vld [vmem:[%s47 + $0x8] sm:$0xf]
          %v4065 = vld [vmem:[%s47 + $0xc] sm:$0xf]
          %v4066 = vld [vmem:[%s47 + $0x10] sm:$0xf]
          %v4067 = vld [vmem:[%s47 + $0x14] sm:$0xf]
          %v4068 = vld [vmem:[%s47 + $0x18] sm:$0xf]
          %v4069 = vld [vmem:[%s47 + $0x1c] sm:$0xf]
          %v4070 = vpack.c.bf16 %v4061, %v4061
          %v4071 = vld [vmem:[%s49] sm:$0x1]
          %v4073 = vlaneseq
          %v4074 = vshrl.u32 %v4073, 7
          %v4075 = vsub.s32 0, %v4074
          %v4076 = vrot.slane %v4071, %v4075
          %v4086 = vunpack.c.l.b16 %v4062
          %v4087 = vunpack.c.l.b16 %v4063
          %v4088 = vunpack.c.l.b16 %v4064
          %v4089 = vunpack.c.l.b16 %v4065
          %v4090 = vunpack.c.l.b16 %v4066
          %v4091 = vunpack.c.l.b16 %v4067
          %v4092 = vunpack.c.l.b16 %v4068
          %v4093 = vunpack.c.l.b16 %v4069
          %v4094 = vpack.c.b16 %v4087, %v4086
          %v4095 = vpack.c.b16 %v4089, %v4088
          %v4096 = vpack.c.b16 %v4091, %v4090
          %v4097 = vpack.c.b16 %v4093, %v4092
          %4102 = vmatprep.subr.bf16.mxu0 0
          %4103 = vmatpush1.bf16.xpose.msra.mxu0 0
          %4104 = vmatprep.subr.bf16.mxu0 0
          %4105 = vmatpush1.bf16.xpose.msra.mxu0 0
          %4106 = vmatprep.subr.bf16.mxu0 0
          %4107 = vmatpush1.bf16.xpose.msra.mxu0 0
          %4108 = vmatprep.subr.bf16.mxu0 0
          %4109 = vmatpush1.bf16.xpose.msra.mxu0 0
          %4110 = vmatprep.subr.bf16.mxu0 0
          %4111 = vmatpush1.bf16.xpose.msra.mxu0 %v4097
          %4112 = vmatprep.subr.bf16.mxu0 0
          %4113 = vmatpush1.bf16.xpose.msra.mxu0 %v4096
          %4114 = vmatprep.subr.bf16.mxu0 0
          %4115 = vmatpush1.bf16.xpose.msra.mxu0 %v4095
          %4116 = vmatprep.subr.bf16.mxu0 0
          %4117 = vmatpush1.bf16.xpose.msra.mxu0 %v4094
          %4118 = vmatprep.subr.bf16.mxu0 0
          %4119 = vmatpush2.bf16.xpose.msra.mxu0 0
          %4120 = vmatprep.subr.bf16.mxu0 0
          %4121 = vmatpush2.bf16.xpose.msra.mxu0 0
          %4122 = vmatprep.subr.bf16.mxu0 0
          %4123 = vmatpush2.bf16.xpose.msra.mxu0 0
          %4124 = vmatprep.subr.bf16.mxu0 0
          %4125 = vmatpush2.bf16.xpose.msra.mxu0 0
          %4126 = vmatprep.subr.bf16.mxu0 0
          %4127 = vmatpush2.bf16.xpose.msra.mxu0 0
          %4128 = vmatprep.subr.bf16.mxu0 0
          %4129 = vmatpush2.bf16.xpose.msra.mxu0 0
          %4130 = vmatprep.subr.bf16.mxu0 0
          %4131 = vmatpush2.bf16.xpose.msra.mxu0 0
          %4132 = vmatprep.subr.bf16.mxu0 0
          %4133 = vmatpush2.bf16.xpose.msra.mxu0 0
          %4134 = vmatprep.mubr.bf16.mxu0 0
          %4135 = vmatmul.mubr.bf16.gmra.mxu0 %v4070
          %v4136 = vpop.f32.mrf.mxu0
          %v4137 = vadd.f32 %v4076, %v4136
          %v4138 = vpop.f32.mrf.mxu0
          %v4139 = vpop.f32.mrf.mxu0
          %v4140 = vpop.f32.mrf.mxu0
          %4141 = vdwg.mxu0
          %v4142 = vand.u32 2147483647, %v4137
          %v4143 = vsub.f32 0.0, %v4142
          %v4144 = vmul.f32 %v4143, 1.442695
          %v4145 = vpow.pop %v4144
          %vm4146 = vcmp.ge.f32.partialorder %v4137, 0.0
          %v4147 = vadd.f32 %v4145, 1.0
          %v4148 = vrcp.pop %v4147
          %v4149 = vmul.f32 1.0, %v4148
          %v4150 = vmul.f32 %v4145, %v4148
          %v4151 = vsel %vm4146, %v4149, %v4150
          %v4152 = vld [vmem:[%s51] sm:$0x1]
          %v4153 = vld [vmem:[%s53] sm:$0x1]
          %v4154 = vsel %vm3857, %v3851, 0.0
          %4155 = vadd.xlane.f32.xlu0 %v4154
          %v4156 = vpop.xlane.xlu0 %4155
          %v4157 = vrcp.pop 128.0
          %v4158 = vmul.f32 %v4156, %v4157
          %v4159 = vmul.f32 %v3851, %v3851
          %v4160 = vsel %vm3857, %v4159, 0.0
          %4161 = vadd.xlane.f32.xlu0 %v4160
          %v4162 = vpop.xlane.xlu0 %4161
          %v4163 = vmul.f32 %v4162, %v4157
          %v4164 = vmul.f32 %v4158, %v4158
          %v4165 = vsub.f32 %v4163, %v4164
          %v4166 = vmax.f32 %v4165, 0.0
          %v4167 = vsub.f32 %v3851, %v4158
          %v4168 = vadd.f32 %v4166, 1e-05
          %v4169 = vrsqrt.pop %v4168
          %v4170 = vmul.f32 %v4167, %v4169
          %v4172 = vlaneseq
          %v4173 = vshrl.u32 %v4172, 7
          %v4174 = vsub.s32 0, %v4173
          %v4175 = vrot.slane %v4152, %v4174
          %v4177 = vmul.f32 %v4170, %v4175
          %v4179 = vlaneseq
          %v4180 = vshrl.u32 %v4179, 7
          %v4181 = vsub.s32 0, %v4180
          %v4182 = vrot.slane %v4153, %v4181
          %v4184 = vadd.f32 %v4177, %v4182
          %v4185 = vld [vmem:[%s55] sm:$0xf]
          %v4186 = vld [vmem:[%s55 + $0x4] sm:$0xf]
          %v4187 = vld [vmem:[%s55 + $0x8] sm:$0xf]
          %v4188 = vld [vmem:[%s55 + $0xc] sm:$0xf]
          %v4189 = vpack.c.bf16 %v4184, %v4184
          %v4190 = vld [vmem:[%s57] sm:$0x1]
          %v4192 = vlaneseq
          %v4193 = vshrl.u32 %v4192, 7
          %v4194 = vsub.s32 0, %v4193
          %v4195 = vrot.slane %v4190, %v4194
          %v4201 = vunpack.c.l.b16 %v4185
          %v4202 = vunpack.c.l.b16 %v4186
          %v4203 = vunpack.c.l.b16 %v4187
          %v4204 = vunpack.c.l.b16 %v4188
          %v4205 = vpack.c.b16 %v4202, %v4201
          %v4206 = vpack.c.b16 %v4204, %v4203
          %4209 = vmatprep.subr.bf16.mxu0 0
          %4210 = vmatpush1.bf16.xpose.msra.mxu0 0
          %4211 = vmatprep.subr.bf16.mxu0 0
          %4212 = vmatpush1.bf16.xpose.msra.mxu0 0
          %4213 = vmatprep.subr.bf16.mxu0 0
          %4214 = vmatpush1.bf16.xpose.msra.mxu0 0
          %4215 = vmatprep.subr.bf16.mxu0 0
          %4216 = vmatpush1.bf16.xpose.msra.mxu0 0
          %4217 = vmatprep.subr.bf16.mxu0 0
          %4218 = vmatpush1.bf16.xpose.msra.mxu0 0
          %4219 = vmatprep.subr.bf16.mxu0 0
          %4220 = vmatpush1.bf16.xpose.msra.mxu0 0
          %4221 = vmatprep.subr.bf16.mxu0 0
          %4222 = vmatpush1.bf16.xpose.msra.mxu0 %v4206
          %4223 = vmatprep.subr.bf16.mxu0 0
          %4224 = vmatpush1.bf16.xpose.msra.mxu0 %v4205
          %4225 = vmatprep.subr.bf16.mxu0 0
          %4226 = vmatpush2.bf16.xpose.msra.mxu0 0
          %4227 = vmatprep.subr.bf16.mxu0 0
          %4228 = vmatpush2.bf16.xpose.msra.mxu0 0
          %4229 = vmatprep.subr.bf16.mxu0 0
          %4230 = vmatpush2.bf16.xpose.msra.mxu0 0
          %4231 = vmatprep.subr.bf16.mxu0 0
          %4232 = vmatpush2.bf16.xpose.msra.mxu0 0
          %4233 = vmatprep.subr.bf16.mxu0 0
          %4234 = vmatpush2.bf16.xpose.msra.mxu0 0
          %4235 = vmatprep.subr.bf16.mxu0 0
          %4236 = vmatpush2.bf16.xpose.msra.mxu0 0
          %4237 = vmatprep.subr.bf16.mxu0 0
          %4238 = vmatpush2.bf16.xpose.msra.mxu0 0
          %4239 = vmatprep.subr.bf16.mxu0 0
          %4240 = vmatpush2.bf16.xpose.msra.mxu0 0
          %4241 = vmatprep.mubr.bf16.mxu0 0
          %4242 = vmatmul.mubr.bf16.gmra.mxu0 %v4189
          %v4243 = vpop.f32.mrf.mxu0
          %v4244 = vadd.f32 %v4195, %v4243
          %v4245 = vpop.f32.mrf.mxu0
          %v4246 = vpop.f32.mrf.mxu0
          %v4247 = vpop.f32.mrf.mxu0
          %4248 = vdwg.mxu0
          %v4249 = vmax.f32 %v4244, 0.0
          %v4250 = vand.u32 2147483647, %v4244
          %v4251 = vsub.f32 0.0, %v4250
          %v4252 = vmul.f32 %v4251, 1.442695
          %v4253 = vpow.pop %v4252
          %v4254 = vadd.f32 %v4253, 1.0
          %v4255 = vlog2.pop %v4254
          %v4256 = vmul.f32 %v4255, 0.6931472
          %v4257 = vadd.f32 %v4249, %v4256
          %vm4258 = vcmp.gt.f32.partialorder %v4244, 20.0
          %v4259 = vsel %vm4258, %v4244, %v4257
          %v4260 = vld [vmem:[%s59] sm:$0xff]
          %v4261 = vld [vmem:[%s59 + $0x8] sm:$0xff]
          %v4262 = vld [vmem:[%s59 + $0x10] sm:$0xff]
          %v4263 = vld [vmem:[%s59 + $0x18] sm:$0xff]
          %v4264 = vld [vmem:[%s59 + $0x20] sm:$0xff]
          %v4265 = vld [vmem:[%s59 + $0x28] sm:$0xff]
          %v4266 = vld [vmem:[%s59 + $0x30] sm:$0xff]
          %v4267 = vld [vmem:[%s59 + $0x38] sm:$0xff]
          %v4268 = vld [vmem:[%s59 + $0x40] sm:$0xff]
          %v4269 = vld [vmem:[%s59 + $0x48] sm:$0xff]
          %v4270 = vld [vmem:[%s59 + $0x50] sm:$0xff]
          %v4271 = vld [vmem:[%s59 + $0x58] sm:$0xff]
          %v4272 = vld [vmem:[%s59 + $0x60] sm:$0xff]
          %v4273 = vld [vmem:[%s59 + $0x68] sm:$0xff]
          %v4274 = vld [vmem:[%s59 + $0x70] sm:$0xff]
          %v4275 = vld [vmem:[%s59 + $0x78] sm:$0xff]
          %v4276 = vpack.c.bf16 %v3852, %v3852
          %v4277 = vpack.c.bf16 %v3853, %v3853
          %v4278 = vld [vmem:[%s61] sm:$0x1]
          %v4280 = vlaneseq
          %v4281 = vshrl.u32 %v4280, 7
          %v4282 = vsub.s32 0, %v4281
          %v4283 = vrot.slane %v4278, %v4282
          %v4301 = vunpack.c.l.b16 %v4260
          %v4302 = vunpack.c.h.b16 %v4260
          %v4303 = vunpack.c.l.b16 %v4261
          %v4304 = vunpack.c.h.b16 %v4261
          %v4305 = vunpack.c.l.b16 %v4262
          %v4306 = vunpack.c.h.b16 %v4262
          %v4307 = vunpack.c.l.b16 %v4263
          %v4308 = vunpack.c.h.b16 %v4263
          %v4309 = vunpack.c.l.b16 %v4264
          %v4310 = vunpack.c.h.b16 %v4264
          %v4311 = vunpack.c.l.b16 %v4265
          %v4312 = vunpack.c.h.b16 %v4265
          %v4313 = vunpack.c.l.b16 %v4266
          %v4314 = vunpack.c.h.b16 %v4266
          %v4315 = vunpack.c.l.b16 %v4267
          %v4316 = vunpack.c.h.b16 %v4267
          %v4317 = vunpack.c.l.b16 %v4268
          %v4318 = vunpack.c.h.b16 %v4268
          %v4319 = vunpack.c.l.b16 %v4269
          %v4320 = vunpack.c.h.b16 %v4269
          %v4321 = vunpack.c.l.b16 %v4270
          %v4322 = vunpack.c.h.b16 %v4270
          %v4323 = vunpack.c.l.b16 %v4271
          %v4324 = vunpack.c.h.b16 %v4271
          %v4325 = vunpack.c.l.b16 %v4272
          %v4326 = vunpack.c.h.b16 %v4272
          %v4327 = vunpack.c.l.b16 %v4273
          %v4328 = vunpack.c.h.b16 %v4273
          %v4329 = vunpack.c.l.b16 %v4274
          %v4330 = vunpack.c.h.b16 %v4274
          %v4331 = vunpack.c.l.b16 %v4275
          %v4332 = vunpack.c.h.b16 %v4275
          %v4333 = vpack.c.b16 %v4303, %v4301
          %v4334 = vpack.c.b16 %v4304, %v4302
          %v4335 = vpack.c.b16 %v4307, %v4305
          %v4336 = vpack.c.b16 %v4308, %v4306
          %v4337 = vpack.c.b16 %v4311, %v4309
          %v4338 = vpack.c.b16 %v4312, %v4310
          %v4339 = vpack.c.b16 %v4315, %v4313
          %v4340 = vpack.c.b16 %v4316, %v4314
          %v4341 = vpack.c.b16 %v4319, %v4317
          %v4342 = vpack.c.b16 %v4320, %v4318
          %v4343 = vpack.c.b16 %v4323, %v4321
          %v4344 = vpack.c.b16 %v4324, %v4322
          %v4345 = vpack.c.b16 %v4327, %v4325
          %v4346 = vpack.c.b16 %v4328, %v4326
          %v4347 = vpack.c.b16 %v4331, %v4329
          %v4348 = vpack.c.b16 %v4332, %v4330
          %4365 = vmatprep.subr.bf16.mxu0 %v4348
          %4366 = vmatpush1.bf16.xpose.msra.mxu0 %v4347
          %4367 = vmatprep.subr.bf16.mxu0 %v4346
          %4368 = vmatpush1.bf16.xpose.msra.mxu0 %v4345
          %4369 = vmatprep.subr.bf16.mxu0 %v4344
          %4370 = vmatpush1.bf16.xpose.msra.mxu0 %v4343
          %4371 = vmatprep.subr.bf16.mxu0 %v4342
          %4372 = vmatpush1.bf16.xpose.msra.mxu0 %v4341
          %4373 = vmatprep.subr.bf16.mxu0 %v4340
          %4374 = vmatpush1.bf16.xpose.msra.mxu0 %v4339
          %4375 = vmatprep.subr.bf16.mxu0 %v4338
          %4376 = vmatpush1.bf16.xpose.msra.mxu0 %v4337
          %4377 = vmatprep.subr.bf16.mxu0 %v4336
          %4378 = vmatpush1.bf16.xpose.msra.mxu0 %v4335
          %4379 = vmatprep.subr.bf16.mxu0 %v4334
          %4380 = vmatpush1.bf16.xpose.msra.mxu0 %v4333
          %4381 = vmatprep.subr.bf16.mxu0 0
          %4382 = vmatpush2.bf16.xpose.msra.mxu0 0
          %4383 = vmatprep.subr.bf16.mxu0 0
          %4384 = vmatpush2.bf16.xpose.msra.mxu0 0
          %4385 = vmatprep.subr.bf16.mxu0 0
          %4386 = vmatpush2.bf16.xpose.msra.mxu0 0
          %4387 = vmatprep.subr.bf16.mxu0 0
          %4388 = vmatpush2.bf16.xpose.msra.mxu0 0
          %4389 = vmatprep.subr.bf16.mxu0 0
          %4390 = vmatpush2.bf16.xpose.msra.mxu0 0
          %4391 = vmatprep.subr.bf16.mxu0 0
          %4392 = vmatpush2.bf16.xpose.msra.mxu0 0
          %4393 = vmatprep.subr.bf16.mxu0 0
          %4394 = vmatpush2.bf16.xpose.msra.mxu0 0
          %4395 = vmatprep.subr.bf16.mxu0 0
          %4396 = vmatpush2.bf16.xpose.msra.mxu0 0
          %4397 = vmatprep.mubr.bf16.mxu0 %v4277
          %4398 = vmatmul.mubr.bf16.gmra.mxu0 %v4276
          %v4399 = vpop.f32.mrf.mxu0
          %v4400 = vadd.f32 %v4283, %v4399
          %v4401 = vpop.f32.mrf.mxu0
          %v4402 = vpop.f32.mrf.mxu0
          %v4403 = vpop.f32.mrf.mxu0
          %4404 = vdwg.mxu0
          %v4405 = vmul.f32 %v4400, 0.5
          %v4406 = vmul.f32 %v4400, 0.044715
          %v4407 = vmul.f32 %v4406, %v4400
          %v4408 = vmul.f32 %v4407, %v4400
          %v4409 = vadd.f32 %v4400, %v4408
          %v4410 = vmul.f32 %v4409, 0.7978846
          %v4411 = vtanh.pop %v4410
          %v4412 = vadd.f32 %v4411, 1.0
          %v4413 = vmul.f32 %v4405, %v4412
          %v4414 = vld [vmem:[%s63] sm:$0xf]
          %v4415 = vld [vmem:[%s63 + $0x4] sm:$0xf]
          %v4416 = vld [vmem:[%s63 + $0x8] sm:$0xf]
          %v4417 = vld [vmem:[%s63 + $0xc] sm:$0xf]
          %v4418 = vld [vmem:[%s63 + $0x10] sm:$0xf]
          %v4419 = vld [vmem:[%s63 + $0x14] sm:$0xf]
          %v4420 = vld [vmem:[%s63 + $0x18] sm:$0x1]
          %v4421 = vpack.c.bf16 %v4413, %v4413
          %v4422 = vld [vmem:[%s65] sm:$0x1]
          %v4424 = vlaneseq
          %v4425 = vshrl.u32 %v4424, 7
          %v4426 = vsub.s32 0, %v4425
          %v4427 = vrot.slane %v4422, %v4426
          %v4436 = vunpack.c.l.b16 %v4414
          %v4437 = vunpack.c.l.b16 %v4415
          %v4438 = vunpack.c.l.b16 %v4416
          %v4439 = vunpack.c.l.b16 %v4417
          %v4440 = vunpack.c.l.b16 %v4418
          %v4441 = vunpack.c.l.b16 %v4419
          %v4442 = vunpack.c.l.b16 %v4420
          %v4443 = vpack.c.b16 %v4437, %v4436
          %v4444 = vpack.c.b16 %v4439, %v4438
          %v4445 = vpack.c.b16 %v4441, %v4440
          %v4446 = vpack.c.b16 %v4442, %v4442
          %4451 = vmatprep.subr.bf16.mxu0 0
          %4452 = vmatpush1.bf16.xpose.msra.mxu0 0
          %4453 = vmatprep.subr.bf16.mxu0 0
          %4454 = vmatpush1.bf16.xpose.msra.mxu0 0
          %4455 = vmatprep.subr.bf16.mxu0 0
          %4456 = vmatpush1.bf16.xpose.msra.mxu0 0
          %4457 = vmatprep.subr.bf16.mxu0 0
          %4458 = vmatpush1.bf16.xpose.msra.mxu0 0
          %4459 = vmatprep.subr.bf16.mxu0 0
          %4460 = vmatpush1.bf16.xpose.msra.mxu0 %v4446
          %4461 = vmatprep.subr.bf16.mxu0 0
          %4462 = vmatpush1.bf16.xpose.msra.mxu0 %v4445
          %4463 = vmatprep.subr.bf16.mxu0 0
          %4464 = vmatpush1.bf16.xpose.msra.mxu0 %v4444
          %4465 = vmatprep.subr.bf16.mxu0 0
          %4466 = vmatpush1.bf16.xpose.msra.mxu0 %v4443
          %4467 = vmatprep.subr.bf16.mxu0 0
          %4468 = vmatpush2.bf16.xpose.msra.mxu0 0
          %4469 = vmatprep.subr.bf16.mxu0 0
          %4470 = vmatpush2.bf16.xpose.msra.mxu0 0
          %4471 = vmatprep.subr.bf16.mxu0 0
          %4472 = vmatpush2.bf16.xpose.msra.mxu0 0
          %4473 = vmatprep.subr.bf16.mxu0 0
          %4474 = vmatpush2.bf16.xpose.msra.mxu0 0
          %4475 = vmatprep.subr.bf16.mxu0 0
          %4476 = vmatpush2.bf16.xpose.msra.mxu0 0
          %4477 = vmatprep.subr.bf16.mxu0 0
          %4478 = vmatpush2.bf16.xpose.msra.mxu0 0
          %4479 = vmatprep.subr.bf16.mxu0 0
          %4480 = vmatpush2.bf16.xpose.msra.mxu0 0
          %4481 = vmatprep.subr.bf16.mxu0 0
          %4482 = vmatpush2.bf16.xpose.msra.mxu0 0
          %4483 = vmatprep.mubr.bf16.mxu0 0
          %4484 = vmatmul.mubr.bf16.gmra.mxu0 %v4421
          %v4485 = vpop.f32.mrf.mxu0
          %v4486 = vadd.f32 %v4427, %v4485
          %v4487 = vpop.f32.mrf.mxu0
          %v4488 = vpop.f32.mrf.mxu0
          %v4489 = vpop.f32.mrf.mxu0
          %4490 = vdwg.mxu0
          %v4491 = vand.u32 2147483647, %v4486
          %v4492 = vsub.f32 0.0, %v4491
          %v4493 = vmul.f32 %v4492, 1.442695
          %v4494 = vpow.pop %v4493
          %vm4495 = vcmp.ge.f32.partialorder %v4486, 0.0
          %v4496 = vadd.f32 %v4494, 1.0
          %v4497 = vrcp.pop %v4496
          %v4498 = vmul.f32 1.0, %v4497
          %v4499 = vmul.f32 %v4494, %v4497
          %v4500 = vsel %vm4495, %v4498, %v4499
          %v4501 = vld [vmem:[%s67] sm:$0xf]
          %v4502 = vpack.c.bf16 %v3854, %v3854
          %v4503 = vld [vmem:[%s69] sm:$0x1]
          %v4505 = vlaneseq
          %v4506 = vshrl.u32 %v4505, 7
          %v4507 = vsub.s32 0, %v4506
          %v4508 = vrot.slane %v4503, %v4507
          %4510 = vmatprep.subr.bf16.mxu0 0
          %4511 = vmatpush1.bf16.xpose.msra.mxu0 0
          %4512 = vmatprep.subr.bf16.mxu0 0
          %4513 = vmatpush1.bf16.xpose.msra.mxu0 0
          %4514 = vmatprep.subr.bf16.mxu0 0
          %4515 = vmatpush1.bf16.xpose.msra.mxu0 0
          %4516 = vmatprep.subr.bf16.mxu0 0
          %4517 = vmatpush1.bf16.xpose.msra.mxu0 0
          %4518 = vmatprep.subr.bf16.mxu0 0
          %4519 = vmatpush1.bf16.xpose.msra.mxu0 0
          %4520 = vmatprep.subr.bf16.mxu0 0
          %4521 = vmatpush1.bf16.xpose.msra.mxu0 0
          %4522 = vmatprep.subr.bf16.mxu0 0
          %4523 = vmatpush1.bf16.xpose.msra.mxu0 0
          %4524 = vmatprep.subr.bf16.mxu0 0
          %4525 = vmatpush1.bf16.xpose.msra.mxu0 %v4501
          %4526 = vmatprep.subr.bf16.mxu0 0
          %4527 = vmatpush2.bf16.xpose.msra.mxu0 0
          %4528 = vmatprep.subr.bf16.mxu0 0
          %4529 = vmatpush2.bf16.xpose.msra.mxu0 0
          %4530 = vmatprep.subr.bf16.mxu0 0
          %4531 = vmatpush2.bf16.xpose.msra.mxu0 0
          %4532 = vmatprep.subr.bf16.mxu0 0
          %4533 = vmatpush2.bf16.xpose.msra.mxu0 0
          %4534 = vmatprep.subr.bf16.mxu0 0
          %4535 = vmatpush2.bf16.xpose.msra.mxu0 0
          %4536 = vmatprep.subr.bf16.mxu0 0
          %4537 = vmatpush2.bf16.xpose.msra.mxu0 0
          %4538 = vmatprep.subr.bf16.mxu0 0
          %4539 = vmatpush2.bf16.xpose.msra.mxu0 0
          %4540 = vmatprep.subr.bf16.mxu0 0
          %4541 = vmatpush2.bf16.xpose.msra.mxu0 0
          %4542 = vmatprep.mubr.bf16.mxu0 0
          %4543 = vmatmul.mubr.bf16.gmra.mxu0 %v4502
          %v4544 = vpop.f32.mrf.mxu0
          %v4545 = vadd.f32 %v4508, %v4544
          %v4546 = vpop.f32.mrf.mxu0
          %v4547 = vpop.f32.mrf.mxu0
          %v4548 = vpop.f32.mrf.mxu0
          %4549 = vdwg.mxu0
          %vm4550 = vcmask 58368
          %v4551 = vsel %vm4550, %v4545, -inf
          %4552 = vmax.xlane.f32.xlu0 %v4551
          %v4553 = vpop.xlane.xlu0 %4552
          %v4554 = vsub.f32 %v4545, %v4553
          %v4555 = vmul.f32 %v4554, 1.442695
          %v4556 = vpow.pop %v4555
          %v4557 = vsel %vm4550, %v4556, 0.0
          %4558 = vadd.xlane.f32.xlu0 %v4557
          %v4559 = vpop.xlane.xlu0 %4558
          %v4560 = vrcp.pop %v4559
          %v4561 = vmul.f32 %v4556, %v4560
          %v4562 = vsel %vm1529, %v4151, 0.0
          %vm4563 = vcmask 261120
          %v4564 = vsel %vm4563, %v4259, 0.0
          %vm4565 = vcmask 408576
          %v4566 = vsel %vm4565, %v4500, 0.0
          %v4567 = vsel %vm2119, %v4561, 0.0
          %v4570 = vsel %vm3288, %v3153, %v3152
          %v4572 = vsel %vm1529, %v4570, 0.0
          %v4578 = vcombine.low %v4562, %v4564
          %v4579 = vcombine.low %v4566, %v4567
          %v4581 = vunpack.c.l.s4 1983009808
          %v4582 = vunpack.c.0.s8 %v4581
          %v4583 = vlaneseq
          %v4584 = vshrl.u32 %v4583, 7
          %v4585 = vsub.s32 %v4582, %v4584
          %v4586 = vrot.slane %v4578, %v4585
          %v4588 = vunpack.c.l.s4 1983009808
          %v4589 = vunpack.c.0.s8 %v4588
          %v4590 = vlaneseq
          %v4591 = vshrl.u32 %v4590, 7
          %v4592 = vsub.s32 %v4589, %v4591
          %v4593 = vrot.slane %v4579, %v4592
          %v4594 = vcombine.low %v4586, %v4593
          %v4596 = vunpack.c.l.s4 1983009808
          %v4597 = vunpack.c.0.s8 %v4596
          %v4598 = vlaneseq
          %v4599 = vshrl.u32 %v4598, 7
          %v4600 = vsub.s32 %v4597, %v4599
          %v4601 = vrot.slane %v4572, %v4600
          %4604 = vst [vmem:[#allocation3] sm:$0xff] %v4594
          %4605 = vst [vmem:[#allocation3 + $0x8] sm:$0x3] %v4601
        $region168: #{tpu_custom_call.1} parent=159 // pred_fallthru
          _
        // Predicated region
        $region169: #{tpu_custom_call.1} parent=159 // pred_check
          %p4606 = pneg %p891
        $region170: #{tpu_custom_call.1} parent=159 // pred_check_branch
          %4608 = sbr.rel (%p4606) target = $region172
        $region171: #{tpu_custom_call.1} parent=159 // pred_region
          %s4610 = ssub.s32 160, 160
          %4611 = vsyncadd [#allocation4], %s4610
          %s4613 = sshll.u32 [#allocation3], 4
          %s4614 = int_to_ptr.vmem [resolvable:$true] %s4613
          %4616 = dma.vmem_to_hbm [thread:$0]  %s4614, 160, %s71, [#allocation4]
        $region172: #{tpu_custom_call.1} parent=159 // pred_fallthru
          _
        // Predicated region
        $region173: #{tpu_custom_call.1} parent=159 // pred_check
          %p4617 = pneg %p891
        $region174: #{tpu_custom_call.1} parent=159 // pred_check_branch
          %4619 = sbr.rel (%p4617) target = $region176
        $region175: #{tpu_custom_call.1} parent=159 // pred_region
          %4620 = dma.done [#allocation4], 160
        $region176: #{tpu_custom_call.1} parent=159 // pred_fallthru
          _
      $region160: #{tpu_custom_call.1} parent=5 // pred_fallthru
        _
      %p4621 = scmp.le.s32.totalorder 2, %s78
      // Predicated region
      $region177: #{tpu_custom_call.1} parent=5 // pred_check
        %p4622 = pneg %p4621
      $region178: #{tpu_custom_call.1} parent=5 // pred_check_branch
        %4624 = sbr.rel (%p4622) target = $region180
      $region179: #{tpu_custom_call.1} parent=5 // pred_region
        %s4625 = ssub.s32 %s78, 2
      $region180: #{tpu_custom_call.1} parent=5 // pred_fallthru
        _
    $region6: #{tpu_custom_call.1} parent=1 // loop_footer
      %s82 = sadd.s32 1, %s78
    $region7: #{tpu_custom_call.1} parent=1 // loop_footer_branch
      %77 = sbr.rel target = $region3
    $region8: #{tpu_custom_call.1} parent=1 // loop_exit
      _
    %4626 = vsyncpa [#allocation4], 1
    %s4627 = scalar_lea.sflag [#allocation4], 1
    %4628 = vsyncpa %s4627, 1

</llo_original>
